<compile_context>
chip_gen: v7x
topology: tpu7x:2x2x1
jax: 0.10.0
libtpu: 0.0.40
codegen_flags: <defaults>
</compile_context>

<pallas_src>
import functools

import numpy as np
import jax
import jax.numpy as jnp
from jax.experimental import pallas as pl
from jax.experimental.pallas import tpu as pltpu


def _round_up(x, m):
    return (x + m - 1) // m * m


def _for_each(count, body, unroll_limit=64):
    """Python-unroll small loops; emit an scf.for (pl.loop) for big ones."""
    if count <= unroll_limit:
        for i in range(count):
            body(i)
    else:
        pl.loop(0, count)(body)


def _residual_downsample_kernel(
        x_ref, w1_ref, b1_ref, w2_ref, b2_ref, vmask_ref,
        o_ref, xpad_ref, h1pad_ref,
        *, Bt, H, W, Wp, Lin8, Lp8, Lo8):
    """Processes Bt batch elements per grid step.

    x_ref     : (Bt*Lin8, Cin)        unpadded, flattened NHWC input rows (stride Lin8/elem)
    w1_ref    : (9*Cin, Cout)         conv1 taps, tap-major (t = 3*dh + dw)
    w2_ref    : (9*Cout + Cin, Cout)  conv2 taps + 1x1 shortcut weight appended
    b1_ref    : (1, Cout)             conv1 bias
    b2_ref    : (1, Cout)             conv2 bias + shortcut bias (pre-summed)
    vmask_ref : (Mc, 1)               1.0 on conv-output rows that are valid pixels
    o_ref     : (Bt*Lo8, Cout)        pooled output rows (stride Lo8/elem)
    xpad_ref  : VMEM (Bt*Lp8, Cin)    zero-padded input scratch (built in-kernel)
    h1pad_ref : VMEM (Bt*Lp8, Cout)   padded conv1 output; reused for h2 and pool pre-sums
    """
    Cout = h1pad_ref.shape[-1]
    Ho, Wo = H // 2, W // 2
    Lo = Ho * Wo
    body = Wp + 1                     # flat offset of output pixel (0, 0) in a padded element
    Mc = Bt * Lp8 - 3 * Wp            # conv-output rows computed per step
    Msum = Mc - Wp - 1                # rows of the 2x2 pre-pooled sum

    # ---- in-kernel zero padding of the input (replaces two wrapper-side XLA pads) ----
    xpad_ref[...] = jnp.zeros_like(xpad_ref)

    def copy_row(i):
        b = i // H
        h = i % H
        dst = b * Lp8 + (h + 1) * Wp + 1
        src = b * Lin8 + h * W
        xpad_ref[pl.ds(dst, W), :] = x_ref[pl.ds(src, W), :]

    _for_each(Bt * H, copy_row)

    # ---- zero only the halo rows of h1pad; its body rows are fully overwritten below ----
    h1pad_ref[pl.ds(0, body), :] = jnp.zeros((body, Cout), jnp.float32)
    tail = 2 * Wp - 1
    h1pad_ref[pl.ds(Bt * Lp8 - tail, tail), :] = jnp.zeros((tail, Cout), jnp.float32)

    # ---- conv1 (3x3): one K = 9*Cin matmul over lane-concatenated shifted taps ----
    taps1 = [xpad_ref[pl.ds(dh * Wp + dw, Mc), :]
             for dh in range(3) for dw in range(3)]
    a1 = jnp.maximum(jnp.concatenate(taps1, axis=1), 0.0)       # ReLU(x), applied once
    h1 = jnp.dot(a1, w1_ref[...], preferred_element_type=jnp.float32)
    h1pad_ref[pl.ds(body, Mc), :] = (
        jnp.maximum(h1 + b1_ref[...], 0.0) * vmask_ref[...])

    # ---- conv2 (3x3) + 1x1 shortcut fused into one K = 9*Cout + Cin matmul ----
    taps2 = [h1pad_ref[pl.ds(dh * Wp + dw, Mc), :]
             for dh in range(3) for dw in range(3)]
    taps2.append(xpad_ref[pl.ds(body, Mc), :])                  # raw x lanes for the shortcut
    a2 = jnp.concatenate(taps2, axis=1)
    h2 = jnp.dot(a2, w2_ref[...], preferred_element_type=jnp.float32) + b2_ref[...]

    # ---- AvgPool2d(2): pre-reduce 2x2 sums over the whole slab, then 1 strided read/row ----
    h1pad_ref[pl.ds(body, Mc), :] = h2
    s = 0.25 * ((h1pad_ref[pl.ds(body, Msum), :] + h1pad_ref[pl.ds(body + 1, Msum), :])
                + (h1pad_ref[pl.ds(body + Wp, Msum), :]
                   + h1pad_ref[pl.ds(body + Wp + 1, Msum), :]))
    h1pad_ref[pl.ds(0, Msum), :] = s

    def pool_row(i):
        b = i // Ho
        oh = i % Ho
        src = b * Lp8 + 2 * oh * Wp
        dst = b * Lo8 + oh * Wo
        o_ref[pl.ds(dst, Wo), :] = h1pad_ref[pl.ds(src, Wo, stride=2), :].astype(o_ref.dtype)

    _for_each(Bt * Ho, pool_row)

    if Lo8 > Lo:
        # Deterministic output slab: zero the per-element alignment tail rows.
        for b in range(Bt):
            o_ref[pl.ds(b * Lo8 + Lo, Lo8 - Lo), :] = jnp.zeros((Lo8 - Lo, Cout), o_ref.dtype)


def residual_downsample(x_nchw, params, *, vmem_budget_bytes=None, max_bt=8):
    """Forward pass of Residual_Downsample. Input/output are NCHW float32."""
    w1, b1, w2, b2, wl, bl = (params[k] for k in ("w1", "b1", "w2", "b2", "wl", "bl"))
    N, Cin, H, W = x_nchw.shape
    Cout = w1.shape[0]
    assert H % 2 == 0 and W % 2 == 0, "AvgPool2d(2) path assumes even H and W"

    Wp = W + 2                          # padded row width (1 left + 1 right)
    Lp = (H + 3) * Wp                   # padded element length (1 top + 2 bottom rows)
    Lp8 = _round_up(Lp, 8)              # per-element row stride of the padded scratch
    Lin = H * W
    Lin8 = _round_up(Lin, 8)            # per-element row stride of the unpadded input
    Ho, Wo = H // 2, W // 2
    Lo = Ho * Wo
    Lo8 = _round_up(Lo, 8)              # per-element row stride of the output

    # ---- generation-aware VMEM budget + explicit scoped-VMEM limit ----
    try:
        vmem_cap = int(pltpu.get_tpu_info().vmem_capacity_bytes)
    except Exception:
        vmem_cap = 64 << 20             # conservative: v7x per-TensorCore VMEM
    if vmem_budget_bytes is None:
        vmem_budget_bytes = min(int(0.4 * vmem_cap), 48 << 20)

    def footprint(bt):
        mc = bt * Lp8 - 3 * Wp
        return 4 * (bt * Lin8 * Cin * 2                       # input block (double buffered)
                    + bt * Lp8 * Cin                          # xpad scratch
                    + bt * Lp8 * Cout                         # h1pad scratch
                    + mc * (9 * Cin + 9 * Cout + Cin + 4 * Cout)  # live concat/matmul temps
                    + bt * Lo8 * Cout * 2)                    # output block (double buffered)

    # Largest Bt that fits the budget while keeping the grid long enough to pipeline DMAs
    # and to shard across TensorCores on v7x: at least min(N, 4) steps.
    min_steps = min(N, 4)
    Bt = 1
    for cand in range(1, min(N, max_bt) + 1):
        if N % cand != 0 or N // cand < min_steps:
            continue
        if footprint(cand) <= vmem_budget_bytes:
            Bt = cand
    grid = (N // Bt,)
    Mc = Bt * Lp8 - 3 * Wp

    vmem_limit = int(min(0.75 * vmem_cap, max(footprint(Bt) + (16 << 20), 32 << 20)))

    # ---- minimal layout glue: NCHW -> flattened NHWC rows (zero-padding is in-kernel) ----
    x = jnp.transpose(x_nchw, (0, 2, 3, 1)).astype(jnp.float32).reshape(N, Lin, Cin)
    if Lin8 != Lin:
        x = jnp.pad(x, ((0, 0), (0, Lin8 - Lin), (0, 0)))
    x = x.reshape(N * Lin8, Cin)

    # Fold the 9 conv taps into single wide-K weights; fold the 1x1 shortcut into conv2.
    w1k = jnp.transpose(w1, (2, 3, 1, 0)).reshape(9 * Cin, Cout).astype(jnp.float32)
    w2k = jnp.transpose(w2, (2, 3, 1, 0)).reshape(9 * Cout, Cout).astype(jnp.float32)
    wlk = wl.reshape(Cout, Cin).T.astype(jnp.float32)
    w2cat = jnp.concatenate([w2k, wlk], axis=0)               # (9*Cout + Cin, Cout)
    b1k = b1.reshape(1, Cout).astype(jnp.float32)
    b2l = (b2 + bl).reshape(1, Cout).astype(jnp.float32)      # conv2 bias + shortcut bias

    # Validity mask over the Mc conv-output rows computed per grid step.
    j = np.arange(Mc)
    r = j % Lp8
    vmask = ((r // Wp < H) & (r % Wp < W)).astype(np.float32).reshape(Mc, 1)
    vmask = jnp.asarray(vmask)

    kernel = functools.partial(_residual_downsample_kernel, Bt=Bt, H=H, W=W,
                               Wp=Wp, Lin8=Lin8, Lp8=Lp8, Lo8=Lo8)
    out_flat = pl.pallas_call(
        kernel,
        out_shape=jax.ShapeDtypeStruct((N * Lo8, Cout), jnp.float32),
        grid_spec=pltpu.PrefetchScalarGridSpec(
            num_scalar_prefetch=0,
            grid=grid,
            in_specs=[
                pl.BlockSpec((Bt * Lin8, Cin), lambda i: (i, 0)),
                pl.BlockSpec((9 * Cin, Cout), lambda i: (0, 0)),
                pl.BlockSpec((1, Cout), lambda i: (0, 0)),
                pl.BlockSpec((9 * Cout + Cin, Cout), lambda i: (0, 0)),
                pl.BlockSpec((1, Cout), lambda i: (0, 0)),
                pl.BlockSpec((Mc, 1), lambda i: (0, 0)),
            ],
            out_specs=pl.BlockSpec((Bt * Lo8, Cout), lambda i: (i, 0)),
            scratch_shapes=[pltpu.VMEM((Bt * Lp8, Cin), jnp.float32),
                            pltpu.VMEM((Bt * Lp8, Cout), jnp.float32)],
        ),
        compiler_params=pltpu.CompilerParams(
            dimension_semantics=("parallel",),
            vmem_limit_bytes=vmem_limit),
    )(x, w1k, b1k, w2cat, b2l, vmask)

    out = out_flat.reshape(N, Lo8, Cout)
    if Lo8 != Lo:
        out = out[:, :Lo, :]
    out = out.reshape(N, Ho, Wo, Cout)
    return jnp.transpose(out, (0, 3, 1, 2))                   # back to NCHW


# ---------------- parameter setup (deterministic, synthetic) ----------------

def _spectral_normalize(w, key, n_iter=1, eps=1e-12):
    # nn.utils.spectral_norm: W / sigma, sigma from power iteration on (Cout, Cin*kh*kw).
    cout = w.shape[0]
    w_mat = w.reshape(cout, -1)
    u = jax.random.normal(key, (cout,), jnp.float32)
    u = u / (jnp.linalg.norm(u) + eps)
    v = w_mat.T @ u
    for _ in range(n_iter):
        v = w_mat.T @ u
        v = v / (jnp.linalg.norm(v) + eps)
        u = w_mat @ v
        u = u / (jnp.linalg.norm(u) + eps)
    sigma = u @ (w_mat @ v)
    return w / sigma


def init_params(key, in_channels, out_channels):
    ks = jax.random.split(key, 9)
    w1 = 0.2 * jax.random.normal(ks[0], (out_channels, in_channels, 3, 3), jnp.float32)
    b1 = 0.05 * jax.random.normal(ks[1], (out_channels,), jnp.float32)
    w2 = 0.2 * jax.random.normal(ks[2], (out_channels, out_channels, 3, 3), jnp.float32)
    b2 = 0.05 * jax.random.normal(ks[3], (out_channels,), jnp.float32)
    w1 = _spectral_normalize(w1, ks[6])
    w2 = _spectral_normalize(w2, ks[7])
    if out_channels != in_channels:
        wl = 0.2 * jax.random.normal(ks[4], (out_channels, in_channels, 1, 1), jnp.float32)
        bl = 0.05 * jax.random.normal(ks[5], (out_channels,), jnp.float32)
        wl = _spectral_normalize(wl, ks[8])
    else:
        # nn.Identity() shortcut == exact 1x1 identity conv with zero bias.
        wl = jnp.eye(out_channels, dtype=jnp.float32).reshape(out_channels, out_channels, 1, 1)
        bl = jnp.zeros((out_channels,), jnp.float32)
    return dict(w1=w1, b1=b1, w2=w2, b2=b2, wl=wl, bl=bl)


# ---------------- pure-JAX reference (for verification only) ----------------

def _reference(x, p):
    dn = ("NCHW", "OIHW", "NCHW")

    def conv(x, w, b, pad):
        y = jax.lax.conv_general_dilated(x, w, (1, 1), [(pad, pad), (pad, pad)],
                                         dimension_numbers=dn)
        return y + b[None, :, None, None]

    def avgpool2(x):
        s = jax.lax.reduce_window(x, 0.0, jax.lax.add, (1, 1, 2, 2), (1, 1, 2, 2), "VALID")
        return s / 4.0

    r = jax.nn.relu(x)
    r = conv(r, p["w1"], p["b1"], 1)
    r = jax.nn.relu(r)
    r = conv(r, p["w2"], p["b2"], 1)
    r = avgpool2(r)
    l = avgpool2(conv(x, p["wl"], p["bl"], 0))
    return r + l


if __name__ == "__main__":
    key = jax.random.PRNGKey(0)
    k_x, k_p = jax.random.split(key)
    N, Cin, Cout, H, W = 2, 4, 8, 16, 16

    x = jax.random.normal(k_x, (N, Cin, H, W), jnp.float32)
    params = init_params(k_p, Cin, Cout)

    out = residual_downsample(x, params)
    out = jax.block_until_ready(out)

    assert out.shape == (N, Cout, H // 2, W // 2), out.shape
    ref = _reference(x, params)
    if not np.allclose(np.asarray(out), np.asarray(ref), atol=2e-3, rtol=2e-3):
        raise AssertionError("Pallas kernel does not match JAX reference")
    print("KERNEL_OK")
</pallas_src>

<mosaic_0001>
module attributes {stable_mosaic.version = 11 : i64} {
  func.func @_residual_downsample_kernel(%arg0: i32, %arg1: memref<256x4xf32, #tpu.memory_space<vmem>>, %arg2: memref<36x8xf32, #tpu.memory_space<vmem>>, %arg3: memref<1x8xf32, #tpu.memory_space<vmem>>, %arg4: memref<76x8xf32, #tpu.memory_space<vmem>>, %arg5: memref<1x8xf32, #tpu.memory_space<vmem>>, %arg6: memref<290x1xf32, #tpu.memory_space<vmem>>, %arg7: memref<64x8xf32, #tpu.memory_space<vmem>>, %arg8: memref<344x4xf32, #tpu.memory_space<vmem>>, %arg9: memref<344x8xf32, #tpu.memory_space<vmem>>) attributes {dimension_semantics = [#tpu.dimension_semantics<parallel>], iteration_bounds = array<i64: 2>, scalar_prefetch = 0 : i64, scratch_operands = 2 : i64, tpu.core_type = #tpu.core_type<tc>, window_params = [{transform_indices = @transform_0, window_bounds = array<i64: 256, 4>}, {pipeline_mode = #tpu.pipeline_mode<synchronous>, transform_indices = @transform_1, window_bounds = array<i64: 36, 8>}, {pipeline_mode = #tpu.pipeline_mode<synchronous>, transform_indices = @transform_2, window_bounds = array<i64: 1, 8>}, {pipeline_mode = #tpu.pipeline_mode<synchronous>, transform_indices = @transform_3, window_bounds = array<i64: 76, 8>}, {pipeline_mode = #tpu.pipeline_mode<synchronous>, transform_indices = @transform_4, window_bounds = array<i64: 1, 8>}, {pipeline_mode = #tpu.pipeline_mode<synchronous>, transform_indices = @transform_5, window_bounds = array<i64: 290, 1>}, {transform_indices = @transform_6, window_bounds = array<i64: 64, 8>}]} {
    %cst = arith.constant 0.000000e+00 : f32
    %0 = vector.broadcast %cst : f32 to vector<344x4xf32>
    %c0 = arith.constant 0 : index
    %c0_0 = arith.constant 0 : index
    %1 = vector.load %arg8[%c0, %c0_0] : memref<344x4xf32, #tpu.memory_space<vmem>>, vector<344x4xf32>
    tpu.vector_store %arg8[%c0, %c0_0], %0 {strides = array<i32>} : memref<344x4xf32, #tpu.memory_space<vmem>>, vector<344x4xf32>,
    %c0_1 = arith.constant 0 : index
    %c0_2 = arith.constant 0 : index
    %2 = vector.load %arg1[%c0_1, %c0_2] : memref<256x4xf32, #tpu.memory_space<vmem>>, vector<16x4xf32>
    %c19 = arith.constant 19 : index
    %c0_3 = arith.constant 0 : index
    %3 = vector.load %arg8[%c19, %c0_3] : memref<344x4xf32, #tpu.memory_space<vmem>>, vector<16x4xf32>
    tpu.vector_store %arg8[%c19, %c0_3], %2 {strides = array<i32>} : memref<344x4xf32, #tpu.memory_space<vmem>>, vector<16x4xf32>,
    %c16 = arith.constant 16 : index
    %c0_4 = arith.constant 0 : index
    %4 = vector.load %arg1[%c16, %c0_4] : memref<256x4xf32, #tpu.memory_space<vmem>>, vector<16x4xf32>
    %c37 = arith.constant 37 : index
    %c0_5 = arith.constant 0 : index
    %5 = vector.load %arg8[%c37, %c0_5] : memref<344x4xf32, #tpu.memory_space<vmem>>, vector<16x4xf32>
    tpu.vector_store %arg8[%c37, %c0_5], %4 {strides = array<i32>} : memref<344x4xf32, #tpu.memory_space<vmem>>, vector<16x4xf32>,
    %c32 = arith.constant 32 : index
    %c0_6 = arith.constant 0 : index
    %6 = vector.load %arg1[%c32, %c0_6] : memref<256x4xf32, #tpu.memory_space<vmem>>, vector<16x4xf32>
    %c55 = arith.constant 55 : index
    %c0_7 = arith.constant 0 : index
    %7 = vector.load %arg8[%c55, %c0_7] : memref<344x4xf32, #tpu.memory_space<vmem>>, vector<16x4xf32>
    tpu.vector_store %arg8[%c55, %c0_7], %6 {strides = array<i32>} : memref<344x4xf32, #tpu.memory_space<vmem>>, vector<16x4xf32>,
    %c48 = arith.constant 48 : index
    %c0_8 = arith.constant 0 : index
    %8 = vector.load %arg1[%c48, %c0_8] : memref<256x4xf32, #tpu.memory_space<vmem>>, vector<16x4xf32>
    %c73 = arith.constant 73 : index
    %c0_9 = arith.constant 0 : index
    %9 = vector.load %arg8[%c73, %c0_9] : memref<344x4xf32, #tpu.memory_space<vmem>>, vector<16x4xf32>
    tpu.vector_store %arg8[%c73, %c0_9], %8 {strides = array<i32>} : memref<344x4xf32, #tpu.memory_space<vmem>>, vector<16x4xf32>,
    %c64 = arith.constant 64 : index
    %c0_10 = arith.constant 0 : index
    %10 = vector.load %arg1[%c64, %c0_10] : memref<256x4xf32, #tpu.memory_space<vmem>>, vector<16x4xf32>
    %c91 = arith.constant 91 : index
    %c0_11 = arith.constant 0 : index
    %11 = vector.load %arg8[%c91, %c0_11] : memref<344x4xf32, #tpu.memory_space<vmem>>, vector<16x4xf32>
    tpu.vector_store %arg8[%c91, %c0_11], %10 {strides = array<i32>} : memref<344x4xf32, #tpu.memory_space<vmem>>, vector<16x4xf32>,
    %c80 = arith.constant 80 : index
    %c0_12 = arith.constant 0 : index
    %12 = vector.load %arg1[%c80, %c0_12] : memref<256x4xf32, #tpu.memory_space<vmem>>, vector<16x4xf32>
    %c109 = arith.constant 109 : index
    %c0_13 = arith.constant 0 : index
    %13 = vector.load %arg8[%c109, %c0_13] : memref<344x4xf32, #tpu.memory_space<vmem>>, vector<16x4xf32>
    tpu.vector_store %arg8[%c109, %c0_13], %12 {strides = array<i32>} : memref<344x4xf32, #tpu.memory_space<vmem>>, vector<16x4xf32>,
    %c96 = arith.constant 96 : index
    %c0_14 = arith.constant 0 : index
    %14 = vector.load %arg1[%c96, %c0_14] : memref<256x4xf32, #tpu.memory_space<vmem>>, vector<16x4xf32>
    %c127 = arith.constant 127 : index
    %c0_15 = arith.constant 0 : index
    %15 = vector.load %arg8[%c127, %c0_15] : memref<344x4xf32, #tpu.memory_space<vmem>>, vector<16x4xf32>
    tpu.vector_store %arg8[%c127, %c0_15], %14 {strides = array<i32>} : memref<344x4xf32, #tpu.memory_space<vmem>>, vector<16x4xf32>,
    %c112 = arith.constant 112 : index
    %c0_16 = arith.constant 0 : index
    %16 = vector.load %arg1[%c112, %c0_16] : memref<256x4xf32, #tpu.memory_space<vmem>>, vector<16x4xf32>
    %c145 = arith.constant 145 : index
    %c0_17 = arith.constant 0 : index
    %17 = vector.load %arg8[%c145, %c0_17] : memref<344x4xf32, #tpu.memory_space<vmem>>, vector<16x4xf32>
    tpu.vector_store %arg8[%c145, %c0_17], %16 {strides = array<i32>} : memref<344x4xf32, #tpu.memory_space<vmem>>, vector<16x4xf32>,
    %c128 = arith.constant 128 : index
    %c0_18 = arith.constant 0 : index
    %18 = vector.load %arg1[%c128, %c0_18] : memref<256x4xf32, #tpu.memory_space<vmem>>, vector<16x4xf32>
    %c163 = arith.constant 163 : index
    %c0_19 = arith.constant 0 : index
    %19 = vector.load %arg8[%c163, %c0_19] : memref<344x4xf32, #tpu.memory_space<vmem>>, vector<16x4xf32>
    tpu.vector_store %arg8[%c163, %c0_19], %18 {strides = array<i32>} : memref<344x4xf32, #tpu.memory_space<vmem>>, vector<16x4xf32>,
    %c144 = arith.constant 144 : index
    %c0_20 = arith.constant 0 : index
    %20 = vector.load %arg1[%c144, %c0_20] : memref<256x4xf32, #tpu.memory_space<vmem>>, vector<16x4xf32>
    %c181 = arith.constant 181 : index
    %c0_21 = arith.constant 0 : index
    %21 = vector.load %arg8[%c181, %c0_21] : memref<344x4xf32, #tpu.memory_space<vmem>>, vector<16x4xf32>
    tpu.vector_store %arg8[%c181, %c0_21], %20 {strides = array<i32>} : memref<344x4xf32, #tpu.memory_space<vmem>>, vector<16x4xf32>,
    %c160 = arith.constant 160 : index
    %c0_22 = arith.constant 0 : index
    %22 = vector.load %arg1[%c160, %c0_22] : memref<256x4xf32, #tpu.memory_space<vmem>>, vector<16x4xf32>
    %c199 = arith.constant 199 : index
    %c0_23 = arith.constant 0 : index
    %23 = vector.load %arg8[%c199, %c0_23] : memref<344x4xf32, #tpu.memory_space<vmem>>, vector<16x4xf32>
    tpu.vector_store %arg8[%c199, %c0_23], %22 {strides = array<i32>} : memref<344x4xf32, #tpu.memory_space<vmem>>, vector<16x4xf32>,
    %c176 = arith.constant 176 : index
    %c0_24 = arith.constant 0 : index
    %24 = vector.load %arg1[%c176, %c0_24] : memref<256x4xf32, #tpu.memory_space<vmem>>, vector<16x4xf32>
    %c217 = arith.constant 217 : index
    %c0_25 = arith.constant 0 : index
    %25 = vector.load %arg8[%c217, %c0_25] : memref<344x4xf32, #tpu.memory_space<vmem>>, vector<16x4xf32>
    tpu.vector_store %arg8[%c217, %c0_25], %24 {strides = array<i32>} : memref<344x4xf32, #tpu.memory_space<vmem>>, vector<16x4xf32>,
    %c192 = arith.constant 192 : index
    %c0_26 = arith.constant 0 : index
    %26 = vector.load %arg1[%c192, %c0_26] : memref<256x4xf32, #tpu.memory_space<vmem>>, vector<16x4xf32>
    %c235 = arith.constant 235 : index
    %c0_27 = arith.constant 0 : index
    %27 = vector.load %arg8[%c235, %c0_27] : memref<344x4xf32, #tpu.memory_space<vmem>>, vector<16x4xf32>
    tpu.vector_store %arg8[%c235, %c0_27], %26 {strides = array<i32>} : memref<344x4xf32, #tpu.memory_space<vmem>>, vector<16x4xf32>,
    %c208 = arith.constant 208 : index
    %c0_28 = arith.constant 0 : index
    %28 = vector.load %arg1[%c208, %c0_28] : memref<256x4xf32, #tpu.memory_space<vmem>>, vector<16x4xf32>
    %c253 = arith.constant 253 : index
    %c0_29 = arith.constant 0 : index
    %29 = vector.load %arg8[%c253, %c0_29] : memref<344x4xf32, #tpu.memory_space<vmem>>, vector<16x4xf32>
    tpu.vector_store %arg8[%c253, %c0_29], %28 {strides = array<i32>} : memref<344x4xf32, #tpu.memory_space<vmem>>, vector<16x4xf32>,
    %c224 = arith.constant 224 : index
    %c0_30 = arith.constant 0 : index
    %30 = vector.load %arg1[%c224, %c0_30] : memref<256x4xf32, #tpu.memory_space<vmem>>, vector<16x4xf32>
    %c271 = arith.constant 271 : index
    %c0_31 = arith.constant 0 : index
    %31 = vector.load %arg8[%c271, %c0_31] : memref<344x4xf32, #tpu.memory_space<vmem>>, vector<16x4xf32>
    tpu.vector_store %arg8[%c271, %c0_31], %30 {strides = array<i32>} : memref<344x4xf32, #tpu.memory_space<vmem>>, vector<16x4xf32>,
    %c240 = arith.constant 240 : index
    %c0_32 = arith.constant 0 : index
    %32 = vector.load %arg1[%c240, %c0_32] : memref<256x4xf32, #tpu.memory_space<vmem>>, vector<16x4xf32>
    %c289 = arith.constant 289 : index
    %c0_33 = arith.constant 0 : index
    %33 = vector.load %arg8[%c289, %c0_33] : memref<344x4xf32, #tpu.memory_space<vmem>>, vector<16x4xf32>
    tpu.vector_store %arg8[%c289, %c0_33], %32 {strides = array<i32>} : memref<344x4xf32, #tpu.memory_space<vmem>>, vector<16x4xf32>,
    %cst_34 = arith.constant 0.000000e+00 : f32
    %34 = vector.broadcast %cst_34 : f32 to vector<19x8xf32>
    %c0_35 = arith.constant 0 : index
    %c0_36 = arith.constant 0 : index
    %35 = vector.load %arg9[%c0_35, %c0_36] : memref<344x8xf32, #tpu.memory_space<vmem>>, vector<19x8xf32>
    tpu.vector_store %arg9[%c0_35, %c0_36], %34 {strides = array<i32>} : memref<344x8xf32, #tpu.memory_space<vmem>>, vector<19x8xf32>,
    %cst_37 = arith.constant 0.000000e+00 : f32
    %36 = vector.broadcast %cst_37 : f32 to vector<35x8xf32>
    %c309 = arith.constant 309 : index
    %c0_38 = arith.constant 0 : index
    %37 = vector.load %arg9[%c309, %c0_38] : memref<344x8xf32, #tpu.memory_space<vmem>>, vector<35x8xf32>
    tpu.vector_store %arg9[%c309, %c0_38], %36 {strides = array<i32>} : memref<344x8xf32, #tpu.memory_space<vmem>>, vector<35x8xf32>,
    %c0_39 = arith.constant 0 : index
    %c0_40 = arith.constant 0 : index
    %38 = vector.load %arg8[%c0_39, %c0_40] : memref<344x4xf32, #tpu.memory_space<vmem>>, vector<290x4xf32>
    %c1 = arith.constant 1 : index
    %c0_41 = arith.constant 0 : index
    %39 = vector.load %arg8[%c1, %c0_41] : memref<344x4xf32, #tpu.memory_space<vmem>>, vector<290x4xf32>
    %c2 = arith.constant 2 : index
    %c0_42 = arith.constant 0 : index
    %40 = vector.load %arg8[%c2, %c0_42] : memref<344x4xf32, #tpu.memory_space<vmem>>, vector<290x4xf32>
    %c18 = arith.constant 18 : index
    %c0_43 = arith.constant 0 : index
    %41 = vector.load %arg8[%c18, %c0_43] : memref<344x4xf32, #tpu.memory_space<vmem>>, vector<290x4xf32>
    %c19_44 = arith.constant 19 : index
    %c0_45 = arith.constant 0 : index
    %42 = vector.load %arg8[%c19_44, %c0_45] : memref<344x4xf32, #tpu.memory_space<vmem>>, vector<290x4xf32>
    %c20 = arith.constant 20 : index
    %c0_46 = arith.constant 0 : index
    %43 = vector.load %arg8[%c20, %c0_46] : memref<344x4xf32, #tpu.memory_space<vmem>>, vector<290x4xf32>
    %c36 = arith.constant 36 : index
    %c0_47 = arith.constant 0 : index
    %44 = vector.load %arg8[%c36, %c0_47] : memref<344x4xf32, #tpu.memory_space<vmem>>, vector<290x4xf32>
    %c37_48 = arith.constant 37 : index
    %c0_49 = arith.constant 0 : index
    %45 = vector.load %arg8[%c37_48, %c0_49] : memref<344x4xf32, #tpu.memory_space<vmem>>, vector<290x4xf32>
    %c38 = arith.constant 38 : index
    %c0_50 = arith.constant 0 : index
    %46 = vector.load %arg8[%c38, %c0_50] : memref<344x4xf32, #tpu.memory_space<vmem>>, vector<290x4xf32>
    %47 = tpu.concatenate %38, %39, %40, %41, %42, %43, %44, %45, %46 in 1 : vector<290x4xf32>, vector<290x4xf32>, vector<290x4xf32>, vector<290x4xf32>, vector<290x4xf32>, vector<290x4xf32>, vector<290x4xf32>, vector<290x4xf32>, vector<290x4xf32> -> vector<290x36xf32>
    %cst_51 = arith.constant 0.000000e+00 : f32
    %48 = vector.broadcast %cst_51 : f32 to vector<290x36xf32>
    %49 = arith.maximumf %47, %48 : vector<290x36xf32>
    %c0_52 = arith.constant 0 : index
    %c0_53 = arith.constant 0 : index
    %50 = vector.load %arg2[%c0_52, %c0_53] : memref<36x8xf32, #tpu.memory_space<vmem>>, vector<36x8xf32>
    %cst_54 = arith.constant dense<0.000000e+00> : vector<290x8xf32>
    %51 = tpu.matmul %49, %50, %cst_54 {dimension_numbers = #tpu.dot_dimension_numbers<[1], [0], [0], [1], [0, 0, 1, 1], [], []>} : vector<290x36xf32>, vector<36x8xf32>, vector<290x8xf32> -> vector<290x8xf32>
    %c0_55 = arith.constant 0 : index
    %c0_56 = arith.constant 0 : index
    %52 = vector.load %arg3[%c0_55, %c0_56] : memref<1x8xf32, #tpu.memory_space<vmem>>, vector<1x8xf32>
    %53 = vector.broadcast %52 : vector<1x8xf32> to vector<290x8xf32>
    %54 = arith.addf %51, %53 : vector<290x8xf32>
    %cst_57 = arith.constant 0.000000e+00 : f32
    %55 = vector.broadcast %cst_57 : f32 to vector<290x8xf32>
    %56 = arith.maximumf %54, %55 : vector<290x8xf32>
    %c0_58 = arith.constant 0 : index
    %c0_59 = arith.constant 0 : index
    %57 = vector.load %arg6[%c0_58, %c0_59] : memref<290x1xf32, #tpu.memory_space<vmem>>, vector<290x1xf32>
    %58 = vector.broadcast %57 : vector<290x1xf32> to vector<290x8xf32>
    %59 = arith.mulf %56, %58 : vector<290x8xf32>
    %c19_60 = arith.constant 19 : index
    %c0_61 = arith.constant 0 : index
    %60 = vector.load %arg9[%c19_60, %c0_61] : memref<344x8xf32, #tpu.memory_space<vmem>>, vector<290x8xf32>
    tpu.vector_store %arg9[%c19_60, %c0_61], %59 {strides = array<i32>} : memref<344x8xf32, #tpu.memory_space<vmem>>, vector<290x8xf32>,
    %c0_62 = arith.constant 0 : index
    %c0_63 = arith.constant 0 : index
    %61 = vector.load %arg9[%c0_62, %c0_63] : memref<344x8xf32, #tpu.memory_space<vmem>>, vector<290x8xf32>
    %c1_64 = arith.constant 1 : index
    %c0_65 = arith.constant 0 : index
    %62 = vector.load %arg9[%c1_64, %c0_65] : memref<344x8xf32, #tpu.memory_space<vmem>>, vector<290x8xf32>
    %c2_66 = arith.constant 2 : index
    %c0_67 = arith.constant 0 : index
    %63 = vector.load %arg9[%c2_66, %c0_67] : memref<344x8xf32, #tpu.memory_space<vmem>>, vector<290x8xf32>
    %c18_68 = arith.constant 18 : index
    %c0_69 = arith.constant 0 : index
    %64 = vector.load %arg9[%c18_68, %c0_69] : memref<344x8xf32, #tpu.memory_space<vmem>>, vector<290x8xf32>
    %c19_70 = arith.constant 19 : index
    %c0_71 = arith.constant 0 : index
    %65 = vector.load %arg9[%c19_70, %c0_71] : memref<344x8xf32, #tpu.memory_space<vmem>>, vector<290x8xf32>
    %c20_72 = arith.constant 20 : index
    %c0_73 = arith.constant 0 : index
    %66 = vector.load %arg9[%c20_72, %c0_73] : memref<344x8xf32, #tpu.memory_space<vmem>>, vector<290x8xf32>
    %c36_74 = arith.constant 36 : index
    %c0_75 = arith.constant 0 : index
    %67 = vector.load %arg9[%c36_74, %c0_75] : memref<344x8xf32, #tpu.memory_space<vmem>>, vector<290x8xf32>
    %c37_76 = arith.constant 37 : index
    %c0_77 = arith.constant 0 : index
    %68 = vector.load %arg9[%c37_76, %c0_77] : memref<344x8xf32, #tpu.memory_space<vmem>>, vector<290x8xf32>
    %c38_78 = arith.constant 38 : index
    %c0_79 = arith.constant 0 : index
    %69 = vector.load %arg9[%c38_78, %c0_79] : memref<344x8xf32, #tpu.memory_space<vmem>>, vector<290x8xf32>
    %c19_80 = arith.constant 19 : index
    %c0_81 = arith.constant 0 : index
    %70 = vector.load %arg8[%c19_80, %c0_81] : memref<344x4xf32, #tpu.memory_space<vmem>>, vector<290x4xf32>
    %71 = tpu.concatenate %61, %62, %63, %64, %65, %66, %67, %68, %69, %70 in 1 : vector<290x8xf32>, vector<290x8xf32>, vector<290x8xf32>, vector<290x8xf32>, vector<290x8xf32>, vector<290x8xf32>, vector<290x8xf32>, vector<290x8xf32>, vector<290x8xf32>, vector<290x4xf32> -> vector<290x76xf32>
    %c0_82 = arith.constant 0 : index
    %c0_83 = arith.constant 0 : index
    %72 = vector.load %arg4[%c0_82, %c0_83] : memref<76x8xf32, #tpu.memory_space<vmem>>, vector<76x8xf32>
    %cst_84 = arith.constant dense<0.000000e+00> : vector<290x8xf32>
    %73 = tpu.matmul %71, %72, %cst_84 {dimension_numbers = #tpu.dot_dimension_numbers<[1], [0], [0], [1], [0, 0, 1, 1], [], []>} : vector<290x76xf32>, vector<76x8xf32>, vector<290x8xf32> -> vector<290x8xf32>
    %c0_85 = arith.constant 0 : index
    %c0_86 = arith.constant 0 : index
    %74 = vector.load %arg5[%c0_85, %c0_86] : memref<1x8xf32, #tpu.memory_space<vmem>>, vector<1x8xf32>
    %75 = vector.broadcast %74 : vector<1x8xf32> to vector<290x8xf32>
    %76 = arith.addf %73, %75 : vector<290x8xf32>
    %c19_87 = arith.constant 19 : index
    %c0_88 = arith.constant 0 : index
    %77 = vector.load %arg9[%c19_87, %c0_88] : memref<344x8xf32, #tpu.memory_space<vmem>>, vector<290x8xf32>
    tpu.vector_store %arg9[%c19_87, %c0_88], %76 {strides = array<i32>} : memref<344x8xf32, #tpu.memory_space<vmem>>, vector<290x8xf32>,
    %c19_89 = arith.constant 19 : index
    %c0_90 = arith.constant 0 : index
    %78 = vector.load %arg9[%c19_89, %c0_90] : memref<344x8xf32, #tpu.memory_space<vmem>>, vector<271x8xf32>
    %c20_91 = arith.constant 20 : index
    %c0_92 = arith.constant 0 : index
    %79 = vector.load %arg9[%c20_91, %c0_92] : memref<344x8xf32, #tpu.memory_space<vmem>>, vector<271x8xf32>
    %80 = arith.addf %78, %79 : vector<271x8xf32>
    %c37_93 = arith.constant 37 : index
    %c0_94 = arith.constant 0 : index
    %81 = vector.load %arg9[%c37_93, %c0_94] : memref<344x8xf32, #tpu.memory_space<vmem>>, vector<271x8xf32>
    %c38_95 = arith.constant 38 : index
    %c0_96 = arith.constant 0 : index
    %82 = vector.load %arg9[%c38_95, %c0_96] : memref<344x8xf32, #tpu.memory_space<vmem>>, vector<271x8xf32>
    %83 = arith.addf %81, %82 : vector<271x8xf32>
    %84 = arith.addf %80, %83 : vector<271x8xf32>
    %cst_97 = arith.constant 2.500000e-01 : f32
    %85 = vector.broadcast %cst_97 : f32 to vector<271x8xf32>
    %86 = arith.mulf %85, %84 : vector<271x8xf32>
    %c0_98 = arith.constant 0 : index
    %c0_99 = arith.constant 0 : index
    %87 = vector.load %arg9[%c0_98, %c0_99] : memref<344x8xf32, #tpu.memory_space<vmem>>, vector<271x8xf32>
    tpu.vector_store %arg9[%c0_98, %c0_99], %86 {strides = array<i32>} : memref<344x8xf32, #tpu.memory_space<vmem>>, vector<271x8xf32>,
    %c0_100 = arith.constant 0 : index
    %c0_101 = arith.constant 0 : index
    %88 = tpu.strided_load %arg9[%c0_100, %c0_101] {strides = array<i32: 2, 1>} : memref<344x8xf32, #tpu.memory_space<vmem>>, vector<8x8xf32>
    %c0_102 = arith.constant 0 : index
    %c0_103 = arith.constant 0 : index
    %89 = vector.load %arg7[%c0_102, %c0_103] : memref<64x8xf32, #tpu.memory_space<vmem>>, vector<8x8xf32>
    tpu.vector_store %arg7[%c0_102, %c0_103], %88 {strides = array<i32>} : memref<64x8xf32, #tpu.memory_space<vmem>>, vector<8x8xf32>,
    %c36_104 = arith.constant 36 : index
    %c0_105 = arith.constant 0 : index
    %90 = tpu.strided_load %arg9[%c36_104, %c0_105] {strides = array<i32: 2, 1>} : memref<344x8xf32, #tpu.memory_space<vmem>>, vector<8x8xf32>
    %c8 = arith.constant 8 : index
    %c0_106 = arith.constant 0 : index
    %91 = vector.load %arg7[%c8, %c0_106] : memref<64x8xf32, #tpu.memory_space<vmem>>, vector<8x8xf32>
    tpu.vector_store %arg7[%c8, %c0_106], %90 {strides = array<i32>} : memref<64x8xf32, #tpu.memory_space<vmem>>, vector<8x8xf32>,
    %c72 = arith.constant 72 : index
    %c0_107 = arith.constant 0 : index
    %92 = tpu.strided_load %arg9[%c72, %c0_107] {strides = array<i32: 2, 1>} : memref<344x8xf32, #tpu.memory_space<vmem>>, vector<8x8xf32>
    %c16_108 = arith.constant 16 : index
    %c0_109 = arith.constant 0 : index
    %93 = vector.load %arg7[%c16_108, %c0_109] : memref<64x8xf32, #tpu.memory_space<vmem>>, vector<8x8xf32>
    tpu.vector_store %arg7[%c16_108, %c0_109], %92 {strides = array<i32>} : memref<64x8xf32, #tpu.memory_space<vmem>>, vector<8x8xf32>,
    %c108 = arith.constant 108 : index
    %c0_110 = arith.constant 0 : index
    %94 = tpu.strided_load %arg9[%c108, %c0_110] {strides = array<i32: 2, 1>} : memref<344x8xf32, #tpu.memory_space<vmem>>, vector<8x8xf32>
    %c24 = arith.constant 24 : index
    %c0_111 = arith.constant 0 : index
    %95 = vector.load %arg7[%c24, %c0_111] : memref<64x8xf32, #tpu.memory_space<vmem>>, vector<8x8xf32>
    tpu.vector_store %arg7[%c24, %c0_111], %94 {strides = array<i32>} : memref<64x8xf32, #tpu.memory_space<vmem>>, vector<8x8xf32>,
    %c144_112 = arith.constant 144 : index
    %c0_113 = arith.constant 0 : index
    %96 = tpu.strided_load %arg9[%c144_112, %c0_113] {strides = array<i32: 2, 1>} : memref<344x8xf32, #tpu.memory_space<vmem>>, vector<8x8xf32>
    %c32_114 = arith.constant 32 : index
    %c0_115 = arith.constant 0 : index
    %97 = vector.load %arg7[%c32_114, %c0_115] : memref<64x8xf32, #tpu.memory_space<vmem>>, vector<8x8xf32>
    tpu.vector_store %arg7[%c32_114, %c0_115], %96 {strides = array<i32>} : memref<64x8xf32, #tpu.memory_space<vmem>>, vector<8x8xf32>,
    %c180 = arith.constant 180 : index
    %c0_116 = arith.constant 0 : index
    %98 = tpu.strided_load %arg9[%c180, %c0_116] {strides = array<i32: 2, 1>} : memref<344x8xf32, #tpu.memory_space<vmem>>, vector<8x8xf32>
    %c40 = arith.constant 40 : index
    %c0_117 = arith.constant 0 : index
    %99 = vector.load %arg7[%c40, %c0_117] : memref<64x8xf32, #tpu.memory_space<vmem>>, vector<8x8xf32>
    tpu.vector_store %arg7[%c40, %c0_117], %98 {strides = array<i32>} : memref<64x8xf32, #tpu.memory_space<vmem>>, vector<8x8xf32>,
    %c216 = arith.constant 216 : index
    %c0_118 = arith.constant 0 : index
    %100 = tpu.strided_load %arg9[%c216, %c0_118] {strides = array<i32: 2, 1>} : memref<344x8xf32, #tpu.memory_space<vmem>>, vector<8x8xf32>
    %c48_119 = arith.constant 48 : index
    %c0_120 = arith.constant 0 : index
    %101 = vector.load %arg7[%c48_119, %c0_120] : memref<64x8xf32, #tpu.memory_space<vmem>>, vector<8x8xf32>
    tpu.vector_store %arg7[%c48_119, %c0_120], %100 {strides = array<i32>} : memref<64x8xf32, #tpu.memory_space<vmem>>, vector<8x8xf32>,
    %c252 = arith.constant 252 : index
    %c0_121 = arith.constant 0 : index
    %102 = tpu.strided_load %arg9[%c252, %c0_121] {strides = array<i32: 2, 1>} : memref<344x8xf32, #tpu.memory_space<vmem>>, vector<8x8xf32>
    %c56 = arith.constant 56 : index
    %c0_122 = arith.constant 0 : index
    %103 = vector.load %arg7[%c56, %c0_122] : memref<64x8xf32, #tpu.memory_space<vmem>>, vector<8x8xf32>
    tpu.vector_store %arg7[%c56, %c0_122], %102 {strides = array<i32>} : memref<64x8xf32, #tpu.memory_space<vmem>>, vector<8x8xf32>,
    return
  }
  func.func @transform_0(%arg0: i32) -> (i32, i32) {
    %c0_i32 = arith.constant 0 : i32
    %c0_i32_0 = arith.constant 0 : i32
    return %arg0, %c0_i32 : i32, i32
  }
  func.func @transform_1(%arg0: i32) -> (i32, i32) {
    %c0_i32 = arith.constant 0 : i32
    %c0_i32_0 = arith.constant 0 : i32
    %c0_i32_1 = arith.constant 0 : i32
    return %c0_i32, %c0_i32_0 : i32, i32
  }
  func.func @transform_2(%arg0: i32) -> (i32, i32) {
    %c0_i32 = arith.constant 0 : i32
    %c0_i32_0 = arith.constant 0 : i32
    %c0_i32_1 = arith.constant 0 : i32
    return %c0_i32, %c0_i32_0 : i32, i32
  }
  func.func @transform_3(%arg0: i32) -> (i32, i32) {
    %c0_i32 = arith.constant 0 : i32
    %c0_i32_0 = arith.constant 0 : i32
    %c0_i32_1 = arith.constant 0 : i32
    return %c0_i32, %c0_i32_0 : i32, i32
  }
  func.func @transform_4(%arg0: i32) -> (i32, i32) {
    %c0_i32 = arith.constant 0 : i32
    %c0_i32_0 = arith.constant 0 : i32
    %c0_i32_1 = arith.constant 0 : i32
    return %c0_i32, %c0_i32_0 : i32, i32
  }
  func.func @transform_5(%arg0: i32) -> (i32, i32) {
    %c0_i32 = arith.constant 0 : i32
    %c0_i32_0 = arith.constant 0 : i32
    %c0_i32_1 = arith.constant 0 : i32
    return %c0_i32, %c0_i32_0 : i32, i32
  }
  func.func @transform_6(%arg0: i32) -> (i32, i32) {
    %c0_i32 = arith.constant 0 : i32
    %c0_i32_0 = arith.constant 0 : i32
    return %arg0, %c0_i32 : i32, i32
  }
}

</mosaic_0001>

<llo_original>
// kernel: tpu_custom_call.1
$region0: #{tpu_custom_call.1}
  #allocation0 [shape = 'u32[]', space=smem, size = 0x4, offset = 0x4, fixed_abs, tag = 'smem constant byte address 0x4 - core index']
  #allocation1 [shape = 'u32[144,128]{1,0:T(1,128)}', space=vmem, size = 0x12000, scoped, tag = 'internal scratch']
  #allocation2 [shape = 'f32[344,4]{1,0:T(8,128)}', space=vmem, size = 0x2b000, scoped, tag = 'scratch operand']
  #allocation3 [shape = 'f32[344,8]{1,0:T(8,128)}', space=vmem, size = 0x2b000, scoped, tag = 'scratch operand']
  %s0 = inlined_call_operand.vmem [shape: f32[512,4], index: 0, kind: input, shape index: {}]
  %s1 = inlined_call_operand.vmem [shape: f32[36,8], index: 1, kind: input, shape index: {}]
  %s2 = inlined_call_operand.vmem [shape: f32[1,8], index: 2, kind: input, shape index: {}]
  %s3 = inlined_call_operand.vmem [shape: f32[76,8], index: 3, kind: input, shape index: {}]
  %s4 = inlined_call_operand.vmem [shape: f32[1,8], index: 4, kind: input, shape index: {}]
  %s5 = inlined_call_operand.vmem [shape: f32[290,1], index: 5, kind: input, shape index: {}]
  %s6 = inlined_call_operand.vmem [shape: f32[128,8], index: 6, kind: output, shape index: {}]
  %s7 = sld [smem:[#allocation0]]
  $region57: #{tpu_custom_call.1} parent=0
    _
  %s9 = ssub.s32 1, %s7
  %s10 = scalar_select 0, %s9, %s7
  loop: start=0, step=1, limit=4
  $region2: #{tpu_custom_call.1} parent=0 // loop_pre_header
    _
  $region3: #{tpu_custom_call.1} parent=0 // loop_header
    %s12 = sphi 0, %s16
    %p13 = scmp.ge.s32.totalorder %s12, 4
    %s22 = sphi 0, %s24
    %s25 = sphi 0, %s22
    %s26 = sphi 0, %s25
    %s42 = sphi 0, %s26
    %s46 = sphi 0, %s46
    %s48 = sphi 0, %s46
    %s49 = sphi 0, %s48
    %s63 = sphi 0, %s49
    %s67 = sphi 0, %s67
    %s69 = sphi 0, %s67
    %s70 = sphi 0, %s69
    %s84 = sphi 0, %s70
    %s88 = sphi 0, %s88
    %s90 = sphi 0, %s88
    %s91 = sphi 0, %s90
    %s105 = sphi 0, %s91
    %s109 = sphi 0, %s109
    %s111 = sphi 0, %s109
    %s112 = sphi 0, %s111
    %s126 = sphi 0, %s112
    %s130 = sphi 0, %s130
    %s132 = sphi 0, %s130
    %s133 = sphi 0, %s132
    %s147 = sphi 0, %s133
    %s153 = sphi 0, %s155
    %s156 = sphi 0, %s153
    %s157 = sphi 0, %s156
    %s173 = sphi 0, %s157
  $region4: #{tpu_custom_call.1} parent=0 // loop_header_branch
    %15 = sbr.rel (%p13) target = $region8
  $region5: #{tpu_custom_call.1} parent=0 // loop_body
    %s17 = ssub.s32 %s12, 1
    %s18 = ssub.s32 %s12, 2
    %s19 = sadd.s32 %s12, 1
    %s20 = ssub.s32 %s12, %s19
    %p21 = scmp.eq.s32.totalorder %s20, 0
    %s23 = sadd.s32 %s22, 1
    %s24 = scalar_select %p21, %s22, %s23
    %p27 = pneg %p21
    %p28 = scmp.eq.s32.totalorder %s12, 1
    %p29 = por %p27, %p28
    %p30 = scmp.ne.s32.totalorder %s22, %s25
    %p31 = scmp.eq.s32.totalorder %s12, 0
    %p32 = por %p30, %p31
    %p33 = scmp.ne.s32.totalorder %s22, %s25
    %p34 = scmp.eq.s32.totalorder %s17, 1
    %p35 = por %p33, %p34
    %p36 = scmp.ne.s32.totalorder %s25, %s26
    %p37 = scmp.eq.s32.totalorder %s17, 0
    %p38 = por %p36, %p37
    %p39 = scmp.ne.s32.totalorder %s25, %s26
    %p40 = scmp.eq.s32.totalorder %s18, 1
    %p41 = por %p39, %p40
    %p43 = scmp.ne.s32.totalorder %s26, %s42
    %p44 = scmp.eq.s32.totalorder %s18, 0
    %p45 = por %p43, %p44
    %s47 = sadd.s32 %s46, 1
    %p50 = scmp.eq.s32.totalorder %s12, 1
    %p51 = scmp.ne.s32.totalorder %s46, %s48
    %p52 = scmp.eq.s32.totalorder %s12, 0
    %p53 = por %p51, %p52
    %p54 = scmp.ne.s32.totalorder %s46, %s48
    %p55 = scmp.eq.s32.totalorder %s17, 1
    %p56 = por %p54, %p55
    %p57 = scmp.ne.s32.totalorder %s48, %s49
    %p58 = scmp.eq.s32.totalorder %s17, 0
    %p59 = por %p57, %p58
    %p60 = scmp.ne.s32.totalorder %s48, %s49
    %p61 = scmp.eq.s32.totalorder %s18, 1
    %p62 = por %p60, %p61
    %p64 = scmp.ne.s32.totalorder %s49, %s63
    %p65 = scmp.eq.s32.totalorder %s18, 0
    %p66 = por %p64, %p65
    %s68 = sadd.s32 %s67, 1
    %p71 = scmp.eq.s32.totalorder %s12, 1
    %p72 = scmp.ne.s32.totalorder %s67, %s69
    %p73 = scmp.eq.s32.totalorder %s12, 0
    %p74 = por %p72, %p73
    %p75 = scmp.ne.s32.totalorder %s67, %s69
    %p76 = scmp.eq.s32.totalorder %s17, 1
    %p77 = por %p75, %p76
    %p78 = scmp.ne.s32.totalorder %s69, %s70
    %p79 = scmp.eq.s32.totalorder %s17, 0
    %p80 = por %p78, %p79
    %p81 = scmp.ne.s32.totalorder %s69, %s70
    %p82 = scmp.eq.s32.totalorder %s18, 1
    %p83 = por %p81, %p82
    %p85 = scmp.ne.s32.totalorder %s70, %s84
    %p86 = scmp.eq.s32.totalorder %s18, 0
    %p87 = por %p85, %p86
    %s89 = sadd.s32 %s88, 1
    %p92 = scmp.eq.s32.totalorder %s12, 1
    %p93 = scmp.ne.s32.totalorder %s88, %s90
    %p94 = scmp.eq.s32.totalorder %s12, 0
    %p95 = por %p93, %p94
    %p96 = scmp.ne.s32.totalorder %s88, %s90
    %p97 = scmp.eq.s32.totalorder %s17, 1
    %p98 = por %p96, %p97
    %p99 = scmp.ne.s32.totalorder %s90, %s91
    %p100 = scmp.eq.s32.totalorder %s17, 0
    %p101 = por %p99, %p100
    %p102 = scmp.ne.s32.totalorder %s90, %s91
    %p103 = scmp.eq.s32.totalorder %s18, 1
    %p104 = por %p102, %p103
    %p106 = scmp.ne.s32.totalorder %s91, %s105
    %p107 = scmp.eq.s32.totalorder %s18, 0
    %p108 = por %p106, %p107
    %s110 = sadd.s32 %s109, 1
    %p113 = scmp.eq.s32.totalorder %s12, 1
    %p114 = scmp.ne.s32.totalorder %s109, %s111
    %p115 = scmp.eq.s32.totalorder %s12, 0
    %p116 = por %p114, %p115
    %p117 = scmp.ne.s32.totalorder %s109, %s111
    %p118 = scmp.eq.s32.totalorder %s17, 1
    %p119 = por %p117, %p118
    %p120 = scmp.ne.s32.totalorder %s111, %s112
    %p121 = scmp.eq.s32.totalorder %s17, 0
    %p122 = por %p120, %p121
    %p123 = scmp.ne.s32.totalorder %s111, %s112
    %p124 = scmp.eq.s32.totalorder %s18, 1
    %p125 = por %p123, %p124
    %p127 = scmp.ne.s32.totalorder %s112, %s126
    %p128 = scmp.eq.s32.totalorder %s18, 0
    %p129 = por %p127, %p128
    %s131 = sadd.s32 %s130, 1
    %p134 = scmp.eq.s32.totalorder %s12, 1
    %p135 = scmp.ne.s32.totalorder %s130, %s132
    %p136 = scmp.eq.s32.totalorder %s12, 0
    %p137 = por %p135, %p136
    %p138 = scmp.ne.s32.totalorder %s130, %s132
    %p139 = scmp.eq.s32.totalorder %s17, 1
    %p140 = por %p138, %p139
    %p141 = scmp.ne.s32.totalorder %s132, %s133
    %p142 = scmp.eq.s32.totalorder %s17, 0
    %p143 = por %p141, %p142
    %p144 = scmp.ne.s32.totalorder %s132, %s133
    %p145 = scmp.eq.s32.totalorder %s18, 1
    %p146 = por %p144, %p145
    %p148 = scmp.ne.s32.totalorder %s133, %s147
    %p149 = scmp.eq.s32.totalorder %s18, 0
    %p150 = por %p148, %p149
    %s151 = ssub.s32 %s12, %s19
    %p152 = scmp.eq.s32.totalorder %s151, 0
    %s154 = sadd.s32 %s153, 1
    %s155 = scalar_select %p152, %s153, %s154
    %p158 = pneg %p152
    %p159 = scmp.eq.s32.totalorder %s12, 1
    %p160 = por %p158, %p159
    %p161 = scmp.ne.s32.totalorder %s153, %s156
    %p162 = scmp.eq.s32.totalorder %s12, 0
    %p163 = por %p161, %p162
    %p164 = scmp.ne.s32.totalorder %s153, %s156
    %p165 = scmp.eq.s32.totalorder %s17, 1
    %p166 = por %p164, %p165
    %p167 = scmp.ne.s32.totalorder %s156, %s157
    %p168 = scmp.eq.s32.totalorder %s17, 0
    %p169 = por %p167, %p168
    %p170 = scmp.ne.s32.totalorder %s156, %s157
    %p171 = scmp.eq.s32.totalorder %s18, 1
    %p172 = por %p170, %p171
    %p174 = scmp.ne.s32.totalorder %s157, %s173
    %p175 = scmp.eq.s32.totalorder %s18, 0
    %p176 = por %p174, %p175
    %p177 = scmp.le.s32.totalorder 1, %s12
    %p178 = scmp.lt.s32.totalorder %s12, 3
    %p179 = pnand %p177, %p178
    %p180 = pneg %p179
    // Predicated region
    $region9: #{tpu_custom_call.1} parent=5 // pred_check
      _
    $region10: #{tpu_custom_call.1} parent=5 // pred_check_branch
      %182 = sbr.rel (%p179) target = $region12
    $region11: #{tpu_custom_call.1} parent=5 // pred_region
      %s183 = ssub.s32 %s12, 1
      // Predicated region
      $region13: #{tpu_custom_call.1} parent=11 // pred_check
        %p184 = pneg %p59
      $region14: #{tpu_custom_call.1} parent=11 // pred_check_branch
        %186 = sbr.rel (%p184) target = $region16
      $region15: #{tpu_custom_call.1} parent=11 // pred_region
        _
      $region16: #{tpu_custom_call.1} parent=11 // pred_fallthru
        _
      // Predicated region
      $region17: #{tpu_custom_call.1} parent=11 // pred_check
        %p187 = pneg %p80
      $region18: #{tpu_custom_call.1} parent=11 // pred_check_branch
        %189 = sbr.rel (%p187) target = $region20
      $region19: #{tpu_custom_call.1} parent=11 // pred_region
        _
      $region20: #{tpu_custom_call.1} parent=11 // pred_fallthru
        _
      // Predicated region
      $region21: #{tpu_custom_call.1} parent=11 // pred_check
        %p190 = pneg %p101
      $region22: #{tpu_custom_call.1} parent=11 // pred_check_branch
        %192 = sbr.rel (%p190) target = $region24
      $region23: #{tpu_custom_call.1} parent=11 // pred_region
        _
      $region24: #{tpu_custom_call.1} parent=11 // pred_fallthru
        _
      // Predicated region
      $region25: #{tpu_custom_call.1} parent=11 // pred_check
        %p193 = pneg %p122
      $region26: #{tpu_custom_call.1} parent=11 // pred_check_branch
        %195 = sbr.rel (%p193) target = $region28
      $region27: #{tpu_custom_call.1} parent=11 // pred_region
        _
      $region28: #{tpu_custom_call.1} parent=11 // pred_fallthru
        _
      // Predicated region
      $region29: #{tpu_custom_call.1} parent=11 // pred_check
        %p196 = pneg %p143
      $region30: #{tpu_custom_call.1} parent=11 // pred_check_branch
        %198 = sbr.rel (%p196) target = $region32
      $region31: #{tpu_custom_call.1} parent=11 // pred_region
        _
      $region32: #{tpu_custom_call.1} parent=11 // pred_fallthru
        _
    $region12: #{tpu_custom_call.1} parent=5 // pred_fallthru
      _
    %p199 = scmp.lt.s32.totalorder %s12, 2
    // Predicated region
    $region33: #{tpu_custom_call.1} parent=5 // pred_check
      %p200 = pneg %p199
    $region34: #{tpu_custom_call.1} parent=5 // pred_check_branch
      %202 = sbr.rel (%p200) target = $region36
    $region35: #{tpu_custom_call.1} parent=5 // pred_region
      // Predicated region
      $region37: #{tpu_custom_call.1} parent=35 // pred_check
        %p203 = pneg %p32
      $region38: #{tpu_custom_call.1} parent=35 // pred_check_branch
        %205 = sbr.rel (%p203) target = $region40
      $region39: #{tpu_custom_call.1} parent=35 // pred_region
        %s206 = smul.u32 32, %s12
        %p207 = scmp.lt.s32.totalorder %s206, 63
        %s208 = scalar_select %p207, %s206, 63
        %s209 = smul.addr %s208, 8
        %s210 = scalar_lea.vmem %s0, %s209
        %s211 = smul.u32 32, %s12
      $region40: #{tpu_custom_call.1} parent=35 // pred_fallthru
        _
    $region36: #{tpu_custom_call.1} parent=5 // pred_fallthru
      _
    %p212 = scmp.le.s32.totalorder 1, %s12
    %p213 = scmp.lt.s32.totalorder %s12, 3
    %p214 = pnand %p212, %p213
    %p215 = pneg %p214
    // Predicated region
    $region41: #{tpu_custom_call.1} parent=5 // pred_check
      _
    $region42: #{tpu_custom_call.1} parent=5 // pred_check_branch
      %217 = sbr.rel (%p214) target = $region44
    $region43: #{tpu_custom_call.1} parent=5 // pred_region
      %s218 = ssub.s32 %s12, 1
      %s219 = smul.u32 32, %s17
      %p220 = scmp.lt.s32.totalorder %s219, 63
      %s221 = scalar_select %p220, %s219, 63
      %s222 = smul.addr %s221, 8
      %s223 = scalar_lea.vmem %s0, %s222
      %p224 = pneg %p38
      %p225 = pneg %p35
      %p226 = pneg %p59
      %p227 = pneg %p56
      %p228 = pneg %p80
      %p229 = pneg %p77
      %p230 = pneg %p101
      %p231 = pneg %p98
      %p232 = pneg %p122
      %p233 = pneg %p119
      %p234 = pneg %p143
      %p235 = pneg %p140
      %p236 = pneg %p169
      %p237 = pneg %p166
      %s238 = smul.u32 8, %s17
      %p239 = scmp.lt.s32.totalorder %s238, 15
      %s240 = scalar_select %p239, %s238, 15
      %s241 = smul.addr %s240, 8
      %s242 = scalar_lea.vmem %s6, %s241
      %s243 = smul.u32 32, %s17
      %p244 = scmp.lt.s32.totalorder %s243, 63
      %s245 = scalar_select %p244, %s243, 63
      %s246 = smul.addr %s245, 8
      %s247 = scalar_lea.vmem %s0, %s246
      %s248 = smul.u32 32, %s17
      %s249 = smul.u32 8, %s17
      %p250 = scmp.lt.s32.totalorder %s249, 15
      %s251 = scalar_select %p250, %s249, 15
      %s252 = smul.addr %s251, 8
      %s253 = scalar_lea.vmem %s6, %s252
      %s254 = smul.u32 8, %s17
      %vm255 = vcmask 31744
      %256 = vst.msk [vmem:[#allocation2] sm:$0xff] %vm255, 0.0
      %257 = vst.msk [vmem:[#allocation2 + $0x8] sm:$0xff] %vm255, 0.0
      %258 = vst.msk [vmem:[#allocation2 + $0x10] sm:$0xff] %vm255, 0.0
      %259 = vst.msk [vmem:[#allocation2 + $0x18] sm:$0xff] %vm255, 0.0
      %260 = vst.msk [vmem:[#allocation2 + $0x20] sm:$0xff] %vm255, 0.0
      %261 = vst.msk [vmem:[#allocation2 + $0x28] sm:$0xff] %vm255, 0.0
      %262 = vst.msk [vmem:[#allocation2 + $0x30] sm:$0xff] %vm255, 0.0
      %263 = vst.msk [vmem:[#allocation2 + $0x38] sm:$0xff] %vm255, 0.0
      %264 = vst.msk [vmem:[#allocation2 + $0x40] sm:$0xff] %vm255, 0.0
      %265 = vst.msk [vmem:[#allocation2 + $0x48] sm:$0xff] %vm255, 0.0
      %266 = vst.msk [vmem:[#allocation2 + $0x50] sm:$0xff] %vm255, 0.0
      %267 = vst.msk [vmem:[#allocation2 + $0x58] sm:$0xff] %vm255, 0.0
      %268 = vst.msk [vmem:[#allocation2 + $0x60] sm:$0xff] %vm255, 0.0
      %269 = vst.msk [vmem:[#allocation2 + $0x68] sm:$0xff] %vm255, 0.0
      %270 = vst.msk [vmem:[#allocation2 + $0x70] sm:$0xff] %vm255, 0.0
      %271 = vst.msk [vmem:[#allocation2 + $0x78] sm:$0xff] %vm255, 0.0
      %272 = vst.msk [vmem:[#allocation2 + $0x80] sm:$0xff] %vm255, 0.0
      %273 = vst.msk [vmem:[#allocation2 + $0x88] sm:$0xff] %vm255, 0.0
      %274 = vst.msk [vmem:[#allocation2 + $0x90] sm:$0xff] %vm255, 0.0
      %275 = vst.msk [vmem:[#allocation2 + $0x98] sm:$0xff] %vm255, 0.0
      %276 = vst.msk [vmem:[#allocation2 + $0xa0] sm:$0xff] %vm255, 0.0
      %277 = vst.msk [vmem:[#allocation2 + $0xa8] sm:$0xff] %vm255, 0.0
      %278 = vst.msk [vmem:[#allocation2 + $0xb0] sm:$0xff] %vm255, 0.0
      %279 = vst.msk [vmem:[#allocation2 + $0xb8] sm:$0xff] %vm255, 0.0
      %280 = vst.msk [vmem:[#allocation2 + $0xc0] sm:$0xff] %vm255, 0.0
      %281 = vst.msk [vmem:[#allocation2 + $0xc8] sm:$0xff] %vm255, 0.0
      %282 = vst.msk [vmem:[#allocation2 + $0xd0] sm:$0xff] %vm255, 0.0
      %283 = vst.msk [vmem:[#allocation2 + $0xd8] sm:$0xff] %vm255, 0.0
      %284 = vst.msk [vmem:[#allocation2 + $0xe0] sm:$0xff] %vm255, 0.0
      %285 = vst.msk [vmem:[#allocation2 + $0xe8] sm:$0xff] %vm255, 0.0
      %286 = vst.msk [vmem:[#allocation2 + $0xf0] sm:$0xff] %vm255, 0.0
      %287 = vst.msk [vmem:[#allocation2 + $0xf8] sm:$0xff] %vm255, 0.0
      %288 = vst.msk [vmem:[#allocation2 + $0x100] sm:$0xff] %vm255, 0.0
      %289 = vst.msk [vmem:[#allocation2 + $0x108] sm:$0xff] %vm255, 0.0
      %290 = vst.msk [vmem:[#allocation2 + $0x110] sm:$0xff] %vm255, 0.0
      %291 = vst.msk [vmem:[#allocation2 + $0x118] sm:$0xff] %vm255, 0.0
      %292 = vst.msk [vmem:[#allocation2 + $0x120] sm:$0xff] %vm255, 0.0
      %293 = vst.msk [vmem:[#allocation2 + $0x128] sm:$0xff] %vm255, 0.0
      %294 = vst.msk [vmem:[#allocation2 + $0x130] sm:$0xff] %vm255, 0.0
      %295 = vst.msk [vmem:[#allocation2 + $0x138] sm:$0xff] %vm255, 0.0
      %296 = vst.msk [vmem:[#allocation2 + $0x140] sm:$0xff] %vm255, 0.0
      %297 = vst.msk [vmem:[#allocation2 + $0x148] sm:$0xff] %vm255, 0.0
      %298 = vst.msk [vmem:[#allocation2 + $0x150] sm:$0xff] %vm255, 0.0
      %v299 = vld [vmem:[%s247] sm:$0xff]
      %v300 = vld [vmem:[%s247 + $0x8] sm:$0xff]
      %301 = vst.msk [vmem:[#allocation2 + $0x13] sm:$0xff] %vm255, %v299
      %302 = vst.msk [vmem:[#allocation2 + $0x1b] sm:$0xff] %vm255, %v300
      %v303 = vld [vmem:[%s247 + $0x10] sm:$0xff]
      %v304 = vld [vmem:[%s247 + $0x18] sm:$0xff]
      %305 = vst.msk [vmem:[#allocation2 + $0x25] sm:$0xff] %vm255, %v303
      %306 = vst.msk [vmem:[#allocation2 + $0x2d] sm:$0xff] %vm255, %v304
      %v307 = vld [vmem:[%s247 + $0x20] sm:$0xff]
      %v308 = vld [vmem:[%s247 + $0x28] sm:$0xff]
      %309 = vst.msk [vmem:[#allocation2 + $0x37] sm:$0xff] %vm255, %v307
      %310 = vst.msk [vmem:[#allocation2 + $0x3f] sm:$0xff] %vm255, %v308
      %v311 = vld [vmem:[%s247 + $0x30] sm:$0xff]
      %v312 = vld [vmem:[%s247 + $0x38] sm:$0xff]
      %313 = vst.msk [vmem:[#allocation2 + $0x49] sm:$0xff] %vm255, %v311
      %314 = vst.msk [vmem:[#allocation2 + $0x51] sm:$0xff] %vm255, %v312
      %v315 = vld [vmem:[%s247 + $0x40] sm:$0xff]
      %v316 = vld [vmem:[%s247 + $0x48] sm:$0xff]
      %317 = vst.msk [vmem:[#allocation2 + $0x5b] sm:$0xff] %vm255, %v315
      %318 = vst.msk [vmem:[#allocation2 + $0x63] sm:$0xff] %vm255, %v316
      %v319 = vld [vmem:[%s247 + $0x50] sm:$0xff]
      %v320 = vld [vmem:[%s247 + $0x58] sm:$0xff]
      %321 = vst.msk [vmem:[#allocation2 + $0x6d] sm:$0xff] %vm255, %v319
      %322 = vst.msk [vmem:[#allocation2 + $0x75] sm:$0xff] %vm255, %v320
      %v323 = vld [vmem:[%s247 + $0x60] sm:$0xff]
      %v324 = vld [vmem:[%s247 + $0x68] sm:$0xff]
      %325 = vst.msk [vmem:[#allocation2 + $0x7f] sm:$0xff] %vm255, %v323
      %326 = vst.msk [vmem:[#allocation2 + $0x87] sm:$0xff] %vm255, %v324
      %v327 = vld [vmem:[%s247 + $0x70] sm:$0xff]
      %v328 = vld [vmem:[%s247 + $0x78] sm:$0xff]
      %329 = vst.msk [vmem:[#allocation2 + $0x91] sm:$0xff] %vm255, %v327
      %330 = vst.msk [vmem:[#allocation2 + $0x99] sm:$0xff] %vm255, %v328
      %v331 = vld [vmem:[%s247 + $0x80] sm:$0xff]
      %v332 = vld [vmem:[%s247 + $0x88] sm:$0xff]
      %333 = vst.msk [vmem:[#allocation2 + $0xa3] sm:$0xff] %vm255, %v331
      %334 = vst.msk [vmem:[#allocation2 + $0xab] sm:$0xff] %vm255, %v332
      %v335 = vld [vmem:[%s247 + $0x90] sm:$0xff]
      %v336 = vld [vmem:[%s247 + $0x98] sm:$0xff]
      %337 = vst.msk [vmem:[#allocation2 + $0xb5] sm:$0xff] %vm255, %v335
      %338 = vst.msk [vmem:[#allocation2 + $0xbd] sm:$0xff] %vm255, %v336
      %v339 = vld [vmem:[%s247 + $0xa0] sm:$0xff]
      %v340 = vld [vmem:[%s247 + $0xa8] sm:$0xff]
      %341 = vst.msk [vmem:[#allocation2 + $0xc7] sm:$0xff] %vm255, %v339
      %342 = vst.msk [vmem:[#allocation2 + $0xcf] sm:$0xff] %vm255, %v340
      %v343 = vld [vmem:[%s247 + $0xb0] sm:$0xff]
      %v344 = vld [vmem:[%s247 + $0xb8] sm:$0xff]
      %345 = vst.msk [vmem:[#allocation2 + $0xd9] sm:$0xff] %vm255, %v343
      %346 = vst.msk [vmem:[#allocation2 + $0xe1] sm:$0xff] %vm255, %v344
      %v347 = vld [vmem:[%s247 + $0xc0] sm:$0xff]
      %v348 = vld [vmem:[%s247 + $0xc8] sm:$0xff]
      %349 = vst.msk [vmem:[#allocation2 + $0xeb] sm:$0xff] %vm255, %v347
      %350 = vst.msk [vmem:[#allocation2 + $0xf3] sm:$0xff] %vm255, %v348
      %v351 = vld [vmem:[%s247 + $0xd0] sm:$0xff]
      %v352 = vld [vmem:[%s247 + $0xd8] sm:$0xff]
      %353 = vst.msk [vmem:[#allocation2 + $0xfd] sm:$0xff] %vm255, %v351
      %354 = vst.msk [vmem:[#allocation2 + $0x105] sm:$0xff] %vm255, %v352
      %v355 = vld [vmem:[%s247 + $0xe0] sm:$0xff]
      %v356 = vld [vmem:[%s247 + $0xe8] sm:$0xff]
      %357 = vst.msk [vmem:[#allocation2 + $0x10f] sm:$0xff] %vm255, %v355
      %358 = vst.msk [vmem:[#allocation2 + $0x117] sm:$0xff] %vm255, %v356
      %v359 = vld [vmem:[%s247 + $0xf0] sm:$0xff]
      %v360 = vld [vmem:[%s247 + $0xf8] sm:$0xff]
      %361 = vst.msk [vmem:[#allocation2 + $0x121] sm:$0xff] %vm255, %v359
      %362 = vst.msk [vmem:[#allocation2 + $0x129] sm:$0xff] %vm255, %v360
      %vm363 = vcmask 64512
      %364 = vst.msk [vmem:[#allocation3] sm:$0xff] %vm363, 0.0
      %365 = vst.msk [vmem:[#allocation3 + $0x8] sm:$0xff] %vm363, 0.0
      %vm366 = vcmask 59392
      %367 = vst.msk [vmem:[#allocation3 + $0x10] sm:$0x7] %vm366, 0.0
      %368 = vst.msk [vmem:[#allocation3 + $0x135] sm:$0xff] %vm363, 0.0
      %369 = vst.msk [vmem:[#allocation3 + $0x13d] sm:$0xff] %vm363, 0.0
      %370 = vst.msk [vmem:[#allocation3 + $0x145] sm:$0xff] %vm363, 0.0
      %371 = vst.msk [vmem:[#allocation3 + $0x14d] sm:$0xff] %vm363, 0.0
      %372 = vst.msk [vmem:[#allocation3 + $0x155] sm:$0x7] %vm366, 0.0
      %v373 = vld [vmem:[#allocation2] sm:$0xff]
      %v374 = vld [vmem:[#allocation2 + $0x8] sm:$0xff]
      %v375 = vld [vmem:[#allocation2 + $0x10] sm:$0xff]
      %v376 = vld [vmem:[#allocation2 + $0x18] sm:$0xff]
      %v377 = vld [vmem:[#allocation2 + $0x20] sm:$0xff]
      %v378 = vld [vmem:[#allocation2 + $0x28] sm:$0xff]
      %v379 = vld [vmem:[#allocation2 + $0x30] sm:$0xff]
      %v380 = vld [vmem:[#allocation2 + $0x38] sm:$0xff]
      %v381 = vld [vmem:[#allocation2 + $0x40] sm:$0xff]
      %v382 = vld [vmem:[#allocation2 + $0x48] sm:$0xff]
      %v383 = vld [vmem:[#allocation2 + $0x50] sm:$0xff]
      %v384 = vld [vmem:[#allocation2 + $0x58] sm:$0xff]
      %v385 = vld [vmem:[#allocation2 + $0x60] sm:$0xff]
      %v386 = vld [vmem:[#allocation2 + $0x68] sm:$0xff]
      %v387 = vld [vmem:[#allocation2 + $0x70] sm:$0xff]
      %v388 = vld [vmem:[#allocation2 + $0x78] sm:$0xff]
      %v389 = vld [vmem:[#allocation2 + $0x80] sm:$0xff]
      %v390 = vld [vmem:[#allocation2 + $0x88] sm:$0xff]
      %v391 = vld [vmem:[#allocation2 + $0x90] sm:$0xff]
      %v392 = vld [vmem:[#allocation2 + $0x98] sm:$0xff]
      %v393 = vld [vmem:[#allocation2 + $0xa0] sm:$0xff]
      %v394 = vld [vmem:[#allocation2 + $0xa8] sm:$0xff]
      %v395 = vld [vmem:[#allocation2 + $0xb0] sm:$0xff]
      %v396 = vld [vmem:[#allocation2 + $0xb8] sm:$0xff]
      %v397 = vld [vmem:[#allocation2 + $0xc0] sm:$0xff]
      %v398 = vld [vmem:[#allocation2 + $0xc8] sm:$0xff]
      %v399 = vld [vmem:[#allocation2 + $0xd0] sm:$0xff]
      %v400 = vld [vmem:[#allocation2 + $0xd8] sm:$0xff]
      %v401 = vld [vmem:[#allocation2 + $0xe0] sm:$0xff]
      %v402 = vld [vmem:[#allocation2 + $0xe8] sm:$0xff]
      %v403 = vld [vmem:[#allocation2 + $0xf0] sm:$0xff]
      %v404 = vld [vmem:[#allocation2 + $0xf8] sm:$0xff]
      %v405 = vld [vmem:[#allocation2 + $0x100] sm:$0xff]
      %v406 = vld [vmem:[#allocation2 + $0x108] sm:$0xff]
      %v407 = vld [vmem:[#allocation2 + $0x110] sm:$0xff]
      %v408 = vld [vmem:[#allocation2 + $0x118] sm:$0xff]
      %v409 = vld [vmem:[#allocation2 + $0x120] sm:$0x3]
      %v410 = vld [vmem:[#allocation2 + $0x1] sm:$0xff]
      %v411 = vld [vmem:[#allocation2 + $0x9] sm:$0xff]
      %v412 = vld [vmem:[#allocation2 + $0x11] sm:$0xff]
      %v413 = vld [vmem:[#allocation2 + $0x19] sm:$0xff]
      %v414 = vld [vmem:[#allocation2 + $0x21] sm:$0xff]
      %v415 = vld [vmem:[#allocation2 + $0x29] sm:$0xff]
      %v416 = vld [vmem:[#allocation2 + $0x31] sm:$0xff]
      %v417 = vld [vmem:[#allocation2 + $0x39] sm:$0xff]
      %v418 = vld [vmem:[#allocation2 + $0x41] sm:$0xff]
      %v419 = vld [vmem:[#allocation2 + $0x49] sm:$0xff]
      %v420 = vld [vmem:[#allocation2 + $0x51] sm:$0xff]
      %v421 = vld [vmem:[#allocation2 + $0x59] sm:$0xff]
      %v422 = vld [vmem:[#allocation2 + $0x61] sm:$0xff]
      %v423 = vld [vmem:[#allocation2 + $0x69] sm:$0xff]
      %v424 = vld [vmem:[#allocation2 + $0x71] sm:$0xff]
      %v425 = vld [vmem:[#allocation2 + $0x79] sm:$0xff]
      %v426 = vld [vmem:[#allocation2 + $0x81] sm:$0xff]
      %v427 = vld [vmem:[#allocation2 + $0x89] sm:$0xff]
      %v428 = vld [vmem:[#allocation2 + $0x91] sm:$0xff]
      %v429 = vld [vmem:[#allocation2 + $0x99] sm:$0xff]
      %v430 = vld [vmem:[#allocation2 + $0xa1] sm:$0xff]
      %v431 = vld [vmem:[#allocation2 + $0xa9] sm:$0xff]
      %v432 = vld [vmem:[#allocation2 + $0xb1] sm:$0xff]
      %v433 = vld [vmem:[#allocation2 + $0xb9] sm:$0xff]
      %v434 = vld [vmem:[#allocation2 + $0xc1] sm:$0xff]
      %v435 = vld [vmem:[#allocation2 + $0xc9] sm:$0xff]
      %v436 = vld [vmem:[#allocation2 + $0xd1] sm:$0xff]
      %v437 = vld [vmem:[#allocation2 + $0xd9] sm:$0xff]
      %v438 = vld [vmem:[#allocation2 + $0xe1] sm:$0xff]
      %v439 = vld [vmem:[#allocation2 + $0xe9] sm:$0xff]
      %v440 = vld [vmem:[#allocation2 + $0xf1] sm:$0xff]
      %v441 = vld [vmem:[#allocation2 + $0xf9] sm:$0xff]
      %v442 = vld [vmem:[#allocation2 + $0x101] sm:$0xff]
      %v443 = vld [vmem:[#allocation2 + $0x109] sm:$0xff]
      %v444 = vld [vmem:[#allocation2 + $0x111] sm:$0xff]
      %v445 = vld [vmem:[#allocation2 + $0x119] sm:$0xff]
      %v446 = vld [vmem:[#allocation2 + $0x121] sm:$0x3]
      %v447 = vld [vmem:[#allocation2 + $0x2] sm:$0xff]
      %v448 = vld [vmem:[#allocation2 + $0xa] sm:$0xff]
      %v449 = vld [vmem:[#allocation2 + $0x12] sm:$0xff]
      %v450 = vld [vmem:[#allocation2 + $0x1a] sm:$0xff]
      %v451 = vld [vmem:[#allocation2 + $0x22] sm:$0xff]
      %v452 = vld [vmem:[#allocation2 + $0x2a] sm:$0xff]
      %v453 = vld [vmem:[#allocation2 + $0x32] sm:$0xff]
      %v454 = vld [vmem:[#allocation2 + $0x3a] sm:$0xff]
      %v455 = vld [vmem:[#allocation2 + $0x42] sm:$0xff]
      %v456 = vld [vmem:[#allocation2 + $0x4a] sm:$0xff]
      %v457 = vld [vmem:[#allocation2 + $0x52] sm:$0xff]
      %v458 = vld [vmem:[#allocation2 + $0x5a] sm:$0xff]
      %v459 = vld [vmem:[#allocation2 + $0x62] sm:$0xff]
      %v460 = vld [vmem:[#allocation2 + $0x6a] sm:$0xff]
      %v461 = vld [vmem:[#allocation2 + $0x72] sm:$0xff]
      %v462 = vld [vmem:[#allocation2 + $0x7a] sm:$0xff]
      %v463 = vld [vmem:[#allocation2 + $0x82] sm:$0xff]
      %v464 = vld [vmem:[#allocation2 + $0x8a] sm:$0xff]
      %v465 = vld [vmem:[#allocation2 + $0x92] sm:$0xff]
      %v466 = vld [vmem:[#allocation2 + $0x9a] sm:$0xff]
      %v467 = vld [vmem:[#allocation2 + $0xa2] sm:$0xff]
      %v468 = vld [vmem:[#allocation2 + $0xaa] sm:$0xff]
      %v469 = vld [vmem:[#allocation2 + $0xb2] sm:$0xff]
      %v470 = vld [vmem:[#allocation2 + $0xba] sm:$0xff]
      %v471 = vld [vmem:[#allocation2 + $0xc2] sm:$0xff]
      %v472 = vld [vmem:[#allocation2 + $0xca] sm:$0xff]
      %v473 = vld [vmem:[#allocation2 + $0xd2] sm:$0xff]
      %v474 = vld [vmem:[#allocation2 + $0xda] sm:$0xff]
      %v475 = vld [vmem:[#allocation2 + $0xe2] sm:$0xff]
      %v476 = vld [vmem:[#allocation2 + $0xea] sm:$0xff]
      %v477 = vld [vmem:[#allocation2 + $0xf2] sm:$0xff]
      %v478 = vld [vmem:[#allocation2 + $0xfa] sm:$0xff]
      %v479 = vld [vmem:[#allocation2 + $0x102] sm:$0xff]
      %v480 = vld [vmem:[#allocation2 + $0x10a] sm:$0xff]
      %v481 = vld [vmem:[#allocation2 + $0x112] sm:$0xff]
      %v482 = vld [vmem:[#allocation2 + $0x11a] sm:$0xff]
      %v483 = vld [vmem:[#allocation2 + $0x122] sm:$0x3]
      %v484 = vld [vmem:[#allocation2 + $0x122] sm:$0xff]
      %v485 = vld [vmem:[#allocation2 + $0x12a] sm:$0xff]
      %v486 = vld [vmem:[#allocation2 + $0x132] sm:$0x3]
      %v487 = vld [vmem:[#allocation2 + $0x13] sm:$0xff]
      %v488 = vld [vmem:[#allocation2 + $0x1b] sm:$0xff]
      %v489 = vld [vmem:[#allocation2 + $0x23] sm:$0xff]
      %v490 = vld [vmem:[#allocation2 + $0x2b] sm:$0xff]
      %v491 = vld [vmem:[#allocation2 + $0x33] sm:$0xff]
      %v492 = vld [vmem:[#allocation2 + $0x3b] sm:$0xff]
      %v493 = vld [vmem:[#allocation2 + $0x43] sm:$0xff]
      %v494 = vld [vmem:[#allocation2 + $0x4b] sm:$0xff]
      %v495 = vld [vmem:[#allocation2 + $0x53] sm:$0xff]
      %v496 = vld [vmem:[#allocation2 + $0x5b] sm:$0xff]
      %v497 = vld [vmem:[#allocation2 + $0x63] sm:$0xff]
      %v498 = vld [vmem:[#allocation2 + $0x6b] sm:$0xff]
      %v499 = vld [vmem:[#allocation2 + $0x73] sm:$0xff]
      %v500 = vld [vmem:[#allocation2 + $0x7b] sm:$0xff]
      %v501 = vld [vmem:[#allocation2 + $0x83] sm:$0xff]
      %v502 = vld [vmem:[#allocation2 + $0x8b] sm:$0xff]
      %v503 = vld [vmem:[#allocation2 + $0x93] sm:$0xff]
      %v504 = vld [vmem:[#allocation2 + $0x9b] sm:$0xff]
      %v505 = vld [vmem:[#allocation2 + $0xa3] sm:$0xff]
      %v506 = vld [vmem:[#allocation2 + $0xab] sm:$0xff]
      %v507 = vld [vmem:[#allocation2 + $0xb3] sm:$0xff]
      %v508 = vld [vmem:[#allocation2 + $0xbb] sm:$0xff]
      %v509 = vld [vmem:[#allocation2 + $0xc3] sm:$0xff]
      %v510 = vld [vmem:[#allocation2 + $0xcb] sm:$0xff]
      %v511 = vld [vmem:[#allocation2 + $0xd3] sm:$0xff]
      %v512 = vld [vmem:[#allocation2 + $0xdb] sm:$0xff]
      %v513 = vld [vmem:[#allocation2 + $0xe3] sm:$0xff]
      %v514 = vld [vmem:[#allocation2 + $0xeb] sm:$0xff]
      %v515 = vld [vmem:[#allocation2 + $0xf3] sm:$0xff]
      %v516 = vld [vmem:[#allocation2 + $0xfb] sm:$0xff]
      %v517 = vld [vmem:[#allocation2 + $0x103] sm:$0xff]
      %v518 = vld [vmem:[#allocation2 + $0x10b] sm:$0xff]
      %v519 = vld [vmem:[#allocation2 + $0x113] sm:$0xff]
      %v520 = vld [vmem:[#allocation2 + $0x11b] sm:$0xff]
      %v521 = vld [vmem:[#allocation2 + $0x123] sm:$0xff]
      %v522 = vld [vmem:[#allocation2 + $0x12b] sm:$0xff]
      %v523 = vld [vmem:[#allocation2 + $0x133] sm:$0x3]
      %v524 = vld [vmem:[#allocation2 + $0x14] sm:$0xff]
      %v525 = vld [vmem:[#allocation2 + $0x1c] sm:$0xff]
      %v526 = vld [vmem:[#allocation2 + $0x24] sm:$0xff]
      %v527 = vld [vmem:[#allocation2 + $0x2c] sm:$0xff]
      %v528 = vld [vmem:[#allocation2 + $0x34] sm:$0xff]
      %v529 = vld [vmem:[#allocation2 + $0x3c] sm:$0xff]
      %v530 = vld [vmem:[#allocation2 + $0x44] sm:$0xff]
      %v531 = vld [vmem:[#allocation2 + $0x4c] sm:$0xff]
      %v532 = vld [vmem:[#allocation2 + $0x54] sm:$0xff]
      %v533 = vld [vmem:[#allocation2 + $0x5c] sm:$0xff]
      %v534 = vld [vmem:[#allocation2 + $0x64] sm:$0xff]
      %v535 = vld [vmem:[#allocation2 + $0x6c] sm:$0xff]
      %v536 = vld [vmem:[#allocation2 + $0x74] sm:$0xff]
      %v537 = vld [vmem:[#allocation2 + $0x7c] sm:$0xff]
      %v538 = vld [vmem:[#allocation2 + $0x84] sm:$0xff]
      %v539 = vld [vmem:[#allocation2 + $0x8c] sm:$0xff]
      %v540 = vld [vmem:[#allocation2 + $0x94] sm:$0xff]
      %v541 = vld [vmem:[#allocation2 + $0x9c] sm:$0xff]
      %v542 = vld [vmem:[#allocation2 + $0xa4] sm:$0xff]
      %v543 = vld [vmem:[#allocation2 + $0xac] sm:$0xff]
      %v544 = vld [vmem:[#allocation2 + $0xb4] sm:$0xff]
      %v545 = vld [vmem:[#allocation2 + $0xbc] sm:$0xff]
      %v546 = vld [vmem:[#allocation2 + $0xc4] sm:$0xff]
      %v547 = vld [vmem:[#allocation2 + $0xcc] sm:$0xff]
      %v548 = vld [vmem:[#allocation2 + $0xd4] sm:$0xff]
      %v549 = vld [vmem:[#allocation2 + $0xdc] sm:$0xff]
      %v550 = vld [vmem:[#allocation2 + $0xe4] sm:$0xff]
      %v551 = vld [vmem:[#allocation2 + $0xec] sm:$0xff]
      %v552 = vld [vmem:[#allocation2 + $0xf4] sm:$0xff]
      %v553 = vld [vmem:[#allocation2 + $0xfc] sm:$0xff]
      %v554 = vld [vmem:[#allocation2 + $0x104] sm:$0xff]
      %v555 = vld [vmem:[#allocation2 + $0x10c] sm:$0xff]
      %v556 = vld [vmem:[#allocation2 + $0x114] sm:$0xff]
      %v557 = vld [vmem:[#allocation2 + $0x11c] sm:$0xff]
      %v558 = vld [vmem:[#allocation2 + $0x124] sm:$0xff]
      %v559 = vld [vmem:[#allocation2 + $0x12c] sm:$0xff]
      %v560 = vld [vmem:[#allocation2 + $0x134] sm:$0x3]
      %v561 = vld [vmem:[#allocation2 + $0x134] sm:$0xff]
      %v562 = vld [vmem:[#allocation2 + $0x13c] sm:$0xff]
      %v563 = vld [vmem:[#allocation2 + $0x144] sm:$0x3]
      %v564 = vld [vmem:[#allocation2 + $0x25] sm:$0xff]
      %v565 = vld [vmem:[#allocation2 + $0x2d] sm:$0xff]
      %v566 = vld [vmem:[#allocation2 + $0x35] sm:$0xff]
      %v567 = vld [vmem:[#allocation2 + $0x3d] sm:$0xff]
      %v568 = vld [vmem:[#allocation2 + $0x45] sm:$0xff]
      %v569 = vld [vmem:[#allocation2 + $0x4d] sm:$0xff]
      %v570 = vld [vmem:[#allocation2 + $0x55] sm:$0xff]
      %v571 = vld [vmem:[#allocation2 + $0x5d] sm:$0xff]
      %v572 = vld [vmem:[#allocation2 + $0x65] sm:$0xff]
      %v573 = vld [vmem:[#allocation2 + $0x6d] sm:$0xff]
      %v574 = vld [vmem:[#allocation2 + $0x75] sm:$0xff]
      %v575 = vld [vmem:[#allocation2 + $0x7d] sm:$0xff]
      %v576 = vld [vmem:[#allocation2 + $0x85] sm:$0xff]
      %v577 = vld [vmem:[#allocation2 + $0x8d] sm:$0xff]
      %v578 = vld [vmem:[#allocation2 + $0x95] sm:$0xff]
      %v579 = vld [vmem:[#allocation2 + $0x9d] sm:$0xff]
      %v580 = vld [vmem:[#allocation2 + $0xa5] sm:$0xff]
      %v581 = vld [vmem:[#allocation2 + $0xad] sm:$0xff]
      %v582 = vld [vmem:[#allocation2 + $0xb5] sm:$0xff]
      %v583 = vld [vmem:[#allocation2 + $0xbd] sm:$0xff]
      %v584 = vld [vmem:[#allocation2 + $0xc5] sm:$0xff]
      %v585 = vld [vmem:[#allocation2 + $0xcd] sm:$0xff]
      %v586 = vld [vmem:[#allocation2 + $0xd5] sm:$0xff]
      %v587 = vld [vmem:[#allocation2 + $0xdd] sm:$0xff]
      %v588 = vld [vmem:[#allocation2 + $0xe5] sm:$0xff]
      %v589 = vld [vmem:[#allocation2 + $0xed] sm:$0xff]
      %v590 = vld [vmem:[#allocation2 + $0xf5] sm:$0xff]
      %v591 = vld [vmem:[#allocation2 + $0xfd] sm:$0xff]
      %v592 = vld [vmem:[#allocation2 + $0x105] sm:$0xff]
      %v593 = vld [vmem:[#allocation2 + $0x10d] sm:$0xff]
      %v594 = vld [vmem:[#allocation2 + $0x115] sm:$0xff]
      %v595 = vld [vmem:[#allocation2 + $0x11d] sm:$0xff]
      %v596 = vld [vmem:[#allocation2 + $0x125] sm:$0xff]
      %v597 = vld [vmem:[#allocation2 + $0x12d] sm:$0xff]
      %v598 = vld [vmem:[#allocation2 + $0x135] sm:$0xff]
      %v599 = vld [vmem:[#allocation2 + $0x13d] sm:$0xff]
      %v600 = vld [vmem:[#allocation2 + $0x145] sm:$0x3]
      %v601 = vld [vmem:[#allocation2 + $0x26] sm:$0xff]
      %v602 = vld [vmem:[#allocation2 + $0x2e] sm:$0xff]
      %v603 = vld [vmem:[#allocation2 + $0x36] sm:$0xff]
      %v604 = vld [vmem:[#allocation2 + $0x3e] sm:$0xff]
      %v605 = vld [vmem:[#allocation2 + $0x46] sm:$0xff]
      %v606 = vld [vmem:[#allocation2 + $0x4e] sm:$0xff]
      %v607 = vld [vmem:[#allocation2 + $0x56] sm:$0xff]
      %v608 = vld [vmem:[#allocation2 + $0x5e] sm:$0xff]
      %v609 = vld [vmem:[#allocation2 + $0x66] sm:$0xff]
      %v610 = vld [vmem:[#allocation2 + $0x6e] sm:$0xff]
      %v611 = vld [vmem:[#allocation2 + $0x76] sm:$0xff]
      %v612 = vld [vmem:[#allocation2 + $0x7e] sm:$0xff]
      %v613 = vld [vmem:[#allocation2 + $0x86] sm:$0xff]
      %v614 = vld [vmem:[#allocation2 + $0x8e] sm:$0xff]
      %v615 = vld [vmem:[#allocation2 + $0x96] sm:$0xff]
      %v616 = vld [vmem:[#allocation2 + $0x9e] sm:$0xff]
      %v617 = vld [vmem:[#allocation2 + $0xa6] sm:$0xff]
      %v618 = vld [vmem:[#allocation2 + $0xae] sm:$0xff]
      %v619 = vld [vmem:[#allocation2 + $0xb6] sm:$0xff]
      %v620 = vld [vmem:[#allocation2 + $0xbe] sm:$0xff]
      %v621 = vld [vmem:[#allocation2 + $0xc6] sm:$0xff]
      %v622 = vld [vmem:[#allocation2 + $0xce] sm:$0xff]
      %v623 = vld [vmem:[#allocation2 + $0xd6] sm:$0xff]
      %v624 = vld [vmem:[#allocation2 + $0xde] sm:$0xff]
      %v625 = vld [vmem:[#allocation2 + $0xe6] sm:$0xff]
      %v626 = vld [vmem:[#allocation2 + $0xee] sm:$0xff]
      %v627 = vld [vmem:[#allocation2 + $0xf6] sm:$0xff]
      %v628 = vld [vmem:[#allocation2 + $0xfe] sm:$0xff]
      %v629 = vld [vmem:[#allocation2 + $0x106] sm:$0xff]
      %v630 = vld [vmem:[#allocation2 + $0x10e] sm:$0xff]
      %v631 = vld [vmem:[#allocation2 + $0x116] sm:$0xff]
      %v632 = vld [vmem:[#allocation2 + $0x11e] sm:$0xff]
      %v633 = vld [vmem:[#allocation2 + $0x126] sm:$0xff]
      %v634 = vld [vmem:[#allocation2 + $0x12e] sm:$0xff]
      %v635 = vld [vmem:[#allocation2 + $0x136] sm:$0xff]
      %v636 = vld [vmem:[#allocation2 + $0x13e] sm:$0xff]
      %v637 = vld [vmem:[#allocation2 + $0x146] sm:$0x3]
      %675 = vrot.lane.b32.xlu0 %v410, 4
      %v676 = vpop.permute.xlu0 %675
      %677 = vrot.lane.b32.xlu0 %v411, 4
      %v678 = vpop.permute.xlu0 %677
      %679 = vrot.lane.b32.xlu0 %v412, 4
      %v680 = vpop.permute.xlu0 %679
      %681 = vrot.lane.b32.xlu0 %v413, 4
      %v682 = vpop.permute.xlu0 %681
      %683 = vrot.lane.b32.xlu0 %v414, 4
      %v684 = vpop.permute.xlu0 %683
      %685 = vrot.lane.b32.xlu0 %v415, 4
      %v686 = vpop.permute.xlu0 %685
      %687 = vrot.lane.b32.xlu0 %v416, 4
      %v688 = vpop.permute.xlu0 %687
      %689 = vrot.lane.b32.xlu0 %v417, 4
      %v690 = vpop.permute.xlu0 %689
      %691 = vrot.lane.b32.xlu0 %v418, 4
      %v692 = vpop.permute.xlu0 %691
      %693 = vrot.lane.b32.xlu0 %v419, 4
      %v694 = vpop.permute.xlu0 %693
      %695 = vrot.lane.b32.xlu0 %v420, 4
      %v696 = vpop.permute.xlu0 %695
      %697 = vrot.lane.b32.xlu0 %v421, 4
      %v698 = vpop.permute.xlu0 %697
      %699 = vrot.lane.b32.xlu0 %v422, 4
      %v700 = vpop.permute.xlu0 %699
      %701 = vrot.lane.b32.xlu0 %v423, 4
      %v702 = vpop.permute.xlu0 %701
      %703 = vrot.lane.b32.xlu0 %v424, 4
      %v704 = vpop.permute.xlu0 %703
      %705 = vrot.lane.b32.xlu0 %v425, 4
      %v706 = vpop.permute.xlu0 %705
      %707 = vrot.lane.b32.xlu0 %v426, 4
      %v708 = vpop.permute.xlu0 %707
      %709 = vrot.lane.b32.xlu0 %v427, 4
      %v710 = vpop.permute.xlu0 %709
      %711 = vrot.lane.b32.xlu0 %v428, 4
      %v712 = vpop.permute.xlu0 %711
      %713 = vrot.lane.b32.xlu0 %v429, 4
      %v714 = vpop.permute.xlu0 %713
      %715 = vrot.lane.b32.xlu0 %v430, 4
      %v716 = vpop.permute.xlu0 %715
      %717 = vrot.lane.b32.xlu0 %v431, 4
      %v718 = vpop.permute.xlu0 %717
      %719 = vrot.lane.b32.xlu0 %v432, 4
      %v720 = vpop.permute.xlu0 %719
      %721 = vrot.lane.b32.xlu0 %v433, 4
      %v722 = vpop.permute.xlu0 %721
      %723 = vrot.lane.b32.xlu0 %v434, 4
      %v724 = vpop.permute.xlu0 %723
      %725 = vrot.lane.b32.xlu0 %v435, 4
      %v726 = vpop.permute.xlu0 %725
      %727 = vrot.lane.b32.xlu0 %v436, 4
      %v728 = vpop.permute.xlu0 %727
      %729 = vrot.lane.b32.xlu0 %v437, 4
      %v730 = vpop.permute.xlu0 %729
      %731 = vrot.lane.b32.xlu0 %v438, 4
      %v732 = vpop.permute.xlu0 %731
      %733 = vrot.lane.b32.xlu0 %v439, 4
      %v734 = vpop.permute.xlu0 %733
      %735 = vrot.lane.b32.xlu0 %v440, 4
      %v736 = vpop.permute.xlu0 %735
      %737 = vrot.lane.b32.xlu0 %v441, 4
      %v738 = vpop.permute.xlu0 %737
      %739 = vrot.lane.b32.xlu0 %v442, 4
      %v740 = vpop.permute.xlu0 %739
      %741 = vrot.lane.b32.xlu0 %v443, 4
      %v742 = vpop.permute.xlu0 %741
      %743 = vrot.lane.b32.xlu0 %v444, 4
      %v744 = vpop.permute.xlu0 %743
      %745 = vrot.lane.b32.xlu0 %v445, 4
      %v746 = vpop.permute.xlu0 %745
      %747 = vrot.lane.b32.xlu0 %v446, 4
      %v748 = vpop.permute.xlu0 %747
      %823 = vrot.lane.b32.xlu0 %v447, 8
      %v824 = vpop.permute.xlu0 %823
      %825 = vrot.lane.b32.xlu0 %v448, 8
      %v826 = vpop.permute.xlu0 %825
      %827 = vrot.lane.b32.xlu0 %v449, 8
      %v828 = vpop.permute.xlu0 %827
      %829 = vrot.lane.b32.xlu0 %v450, 8
      %v830 = vpop.permute.xlu0 %829
      %831 = vrot.lane.b32.xlu0 %v451, 8
      %v832 = vpop.permute.xlu0 %831
      %833 = vrot.lane.b32.xlu0 %v452, 8
      %v834 = vpop.permute.xlu0 %833
      %835 = vrot.lane.b32.xlu0 %v453, 8
      %v836 = vpop.permute.xlu0 %835
      %837 = vrot.lane.b32.xlu0 %v454, 8
      %v838 = vpop.permute.xlu0 %837
      %839 = vrot.lane.b32.xlu0 %v455, 8
      %v840 = vpop.permute.xlu0 %839
      %841 = vrot.lane.b32.xlu0 %v456, 8
      %v842 = vpop.permute.xlu0 %841
      %843 = vrot.lane.b32.xlu0 %v457, 8
      %v844 = vpop.permute.xlu0 %843
      %845 = vrot.lane.b32.xlu0 %v458, 8
      %v846 = vpop.permute.xlu0 %845
      %847 = vrot.lane.b32.xlu0 %v459, 8
      %v848 = vpop.permute.xlu0 %847
      %849 = vrot.lane.b32.xlu0 %v460, 8
      %v850 = vpop.permute.xlu0 %849
      %851 = vrot.lane.b32.xlu0 %v461, 8
      %v852 = vpop.permute.xlu0 %851
      %853 = vrot.lane.b32.xlu0 %v462, 8
      %v854 = vpop.permute.xlu0 %853
      %855 = vrot.lane.b32.xlu0 %v463, 8
      %v856 = vpop.permute.xlu0 %855
      %857 = vrot.lane.b32.xlu0 %v464, 8
      %v858 = vpop.permute.xlu0 %857
      %859 = vrot.lane.b32.xlu0 %v465, 8
      %v860 = vpop.permute.xlu0 %859
      %861 = vrot.lane.b32.xlu0 %v466, 8
      %v862 = vpop.permute.xlu0 %861
      %863 = vrot.lane.b32.xlu0 %v467, 8
      %v864 = vpop.permute.xlu0 %863
      %865 = vrot.lane.b32.xlu0 %v468, 8
      %v866 = vpop.permute.xlu0 %865
      %867 = vrot.lane.b32.xlu0 %v469, 8
      %v868 = vpop.permute.xlu0 %867
      %869 = vrot.lane.b32.xlu0 %v470, 8
      %v870 = vpop.permute.xlu0 %869
      %871 = vrot.lane.b32.xlu0 %v471, 8
      %v872 = vpop.permute.xlu0 %871
      %873 = vrot.lane.b32.xlu0 %v472, 8
      %v874 = vpop.permute.xlu0 %873
      %875 = vrot.lane.b32.xlu0 %v473, 8
      %v876 = vpop.permute.xlu0 %875
      %877 = vrot.lane.b32.xlu0 %v474, 8
      %v878 = vpop.permute.xlu0 %877
      %879 = vrot.lane.b32.xlu0 %v475, 8
      %v880 = vpop.permute.xlu0 %879
      %881 = vrot.lane.b32.xlu0 %v476, 8
      %v882 = vpop.permute.xlu0 %881
      %883 = vrot.lane.b32.xlu0 %v477, 8
      %v884 = vpop.permute.xlu0 %883
      %885 = vrot.lane.b32.xlu0 %v478, 8
      %v886 = vpop.permute.xlu0 %885
      %887 = vrot.lane.b32.xlu0 %v479, 8
      %v888 = vpop.permute.xlu0 %887
      %889 = vrot.lane.b32.xlu0 %v480, 8
      %v890 = vpop.permute.xlu0 %889
      %891 = vrot.lane.b32.xlu0 %v481, 8
      %v892 = vpop.permute.xlu0 %891
      %893 = vrot.lane.b32.xlu0 %v482, 8
      %v894 = vpop.permute.xlu0 %893
      %895 = vrot.lane.b32.xlu0 %v483, 8
      %v896 = vpop.permute.xlu0 %895
      %937 = vrot.lane.b32.xlu0 %v449, 12
      %v938 = vpop.permute.xlu0 %937
      %939 = vrot.lane.b32.xlu0 %v450, 12
      %v940 = vpop.permute.xlu0 %939
      %941 = vrot.lane.b32.xlu0 %v451, 12
      %v942 = vpop.permute.xlu0 %941
      %943 = vrot.lane.b32.xlu0 %v452, 12
      %v944 = vpop.permute.xlu0 %943
      %945 = vrot.lane.b32.xlu0 %v453, 12
      %v946 = vpop.permute.xlu0 %945
      %947 = vrot.lane.b32.xlu0 %v454, 12
      %v948 = vpop.permute.xlu0 %947
      %949 = vrot.lane.b32.xlu0 %v455, 12
      %v950 = vpop.permute.xlu0 %949
      %951 = vrot.lane.b32.xlu0 %v456, 12
      %v952 = vpop.permute.xlu0 %951
      %953 = vrot.lane.b32.xlu0 %v457, 12
      %v954 = vpop.permute.xlu0 %953
      %955 = vrot.lane.b32.xlu0 %v458, 12
      %v956 = vpop.permute.xlu0 %955
      %957 = vrot.lane.b32.xlu0 %v459, 12
      %v958 = vpop.permute.xlu0 %957
      %959 = vrot.lane.b32.xlu0 %v460, 12
      %v960 = vpop.permute.xlu0 %959
      %961 = vrot.lane.b32.xlu0 %v461, 12
      %v962 = vpop.permute.xlu0 %961
      %963 = vrot.lane.b32.xlu0 %v462, 12
      %v964 = vpop.permute.xlu0 %963
      %965 = vrot.lane.b32.xlu0 %v463, 12
      %v966 = vpop.permute.xlu0 %965
      %967 = vrot.lane.b32.xlu0 %v464, 12
      %v968 = vpop.permute.xlu0 %967
      %969 = vrot.lane.b32.xlu0 %v465, 12
      %v970 = vpop.permute.xlu0 %969
      %971 = vrot.lane.b32.xlu0 %v466, 12
      %v972 = vpop.permute.xlu0 %971
      %973 = vrot.lane.b32.xlu0 %v467, 12
      %v974 = vpop.permute.xlu0 %973
      %975 = vrot.lane.b32.xlu0 %v468, 12
      %v976 = vpop.permute.xlu0 %975
      %977 = vrot.lane.b32.xlu0 %v469, 12
      %v978 = vpop.permute.xlu0 %977
      %979 = vrot.lane.b32.xlu0 %v470, 12
      %v980 = vpop.permute.xlu0 %979
      %981 = vrot.lane.b32.xlu0 %v471, 12
      %v982 = vpop.permute.xlu0 %981
      %983 = vrot.lane.b32.xlu0 %v472, 12
      %v984 = vpop.permute.xlu0 %983
      %985 = vrot.lane.b32.xlu0 %v473, 12
      %v986 = vpop.permute.xlu0 %985
      %987 = vrot.lane.b32.xlu0 %v474, 12
      %v988 = vpop.permute.xlu0 %987
      %989 = vrot.lane.b32.xlu0 %v475, 12
      %v990 = vpop.permute.xlu0 %989
      %991 = vrot.lane.b32.xlu0 %v476, 12
      %v992 = vpop.permute.xlu0 %991
      %993 = vrot.lane.b32.xlu0 %v477, 12
      %v994 = vpop.permute.xlu0 %993
      %995 = vrot.lane.b32.xlu0 %v478, 12
      %v996 = vpop.permute.xlu0 %995
      %997 = vrot.lane.b32.xlu0 %v479, 12
      %v998 = vpop.permute.xlu0 %997
      %999 = vrot.lane.b32.xlu0 %v480, 12
      %v1000 = vpop.permute.xlu0 %999
      %1001 = vrot.lane.b32.xlu0 %v481, 12
      %v1002 = vpop.permute.xlu0 %1001
      %1003 = vrot.lane.b32.xlu0 %v482, 12
      %v1004 = vpop.permute.xlu0 %1003
      %1005 = vrot.lane.b32.xlu0 %v484, 12
      %v1006 = vpop.permute.xlu0 %1005
      %1007 = vrot.lane.b32.xlu0 %v485, 12
      %v1008 = vpop.permute.xlu0 %1007
      %1009 = vrot.lane.b32.xlu0 %v486, 12
      %v1010 = vpop.permute.xlu0 %1009
      %1085 = vrot.lane.b32.xlu0 %v487, 16
      %v1086 = vpop.permute.xlu0 %1085
      %1087 = vrot.lane.b32.xlu0 %v488, 16
      %v1088 = vpop.permute.xlu0 %1087
      %1089 = vrot.lane.b32.xlu0 %v489, 16
      %v1090 = vpop.permute.xlu0 %1089
      %1091 = vrot.lane.b32.xlu0 %v490, 16
      %v1092 = vpop.permute.xlu0 %1091
      %1093 = vrot.lane.b32.xlu0 %v491, 16
      %v1094 = vpop.permute.xlu0 %1093
      %1095 = vrot.lane.b32.xlu0 %v492, 16
      %v1096 = vpop.permute.xlu0 %1095
      %1097 = vrot.lane.b32.xlu0 %v493, 16
      %v1098 = vpop.permute.xlu0 %1097
      %1099 = vrot.lane.b32.xlu0 %v494, 16
      %v1100 = vpop.permute.xlu0 %1099
      %1101 = vrot.lane.b32.xlu0 %v495, 16
      %v1102 = vpop.permute.xlu0 %1101
      %1103 = vrot.lane.b32.xlu0 %v496, 16
      %v1104 = vpop.permute.xlu0 %1103
      %1105 = vrot.lane.b32.xlu0 %v497, 16
      %v1106 = vpop.permute.xlu0 %1105
      %1107 = vrot.lane.b32.xlu0 %v498, 16
      %v1108 = vpop.permute.xlu0 %1107
      %1109 = vrot.lane.b32.xlu0 %v499, 16
      %v1110 = vpop.permute.xlu0 %1109
      %1111 = vrot.lane.b32.xlu0 %v500, 16
      %v1112 = vpop.permute.xlu0 %1111
      %1113 = vrot.lane.b32.xlu0 %v501, 16
      %v1114 = vpop.permute.xlu0 %1113
      %1115 = vrot.lane.b32.xlu0 %v502, 16
      %v1116 = vpop.permute.xlu0 %1115
      %1117 = vrot.lane.b32.xlu0 %v503, 16
      %v1118 = vpop.permute.xlu0 %1117
      %1119 = vrot.lane.b32.xlu0 %v504, 16
      %v1120 = vpop.permute.xlu0 %1119
      %1121 = vrot.lane.b32.xlu0 %v505, 16
      %v1122 = vpop.permute.xlu0 %1121
      %1123 = vrot.lane.b32.xlu0 %v506, 16
      %v1124 = vpop.permute.xlu0 %1123
      %1125 = vrot.lane.b32.xlu0 %v507, 16
      %v1126 = vpop.permute.xlu0 %1125
      %1127 = vrot.lane.b32.xlu0 %v508, 16
      %v1128 = vpop.permute.xlu0 %1127
      %1129 = vrot.lane.b32.xlu0 %v509, 16
      %v1130 = vpop.permute.xlu0 %1129
      %1131 = vrot.lane.b32.xlu0 %v510, 16
      %v1132 = vpop.permute.xlu0 %1131
      %1133 = vrot.lane.b32.xlu0 %v511, 16
      %v1134 = vpop.permute.xlu0 %1133
      %1135 = vrot.lane.b32.xlu0 %v512, 16
      %v1136 = vpop.permute.xlu0 %1135
      %1137 = vrot.lane.b32.xlu0 %v513, 16
      %v1138 = vpop.permute.xlu0 %1137
      %1139 = vrot.lane.b32.xlu0 %v514, 16
      %v1140 = vpop.permute.xlu0 %1139
      %1141 = vrot.lane.b32.xlu0 %v515, 16
      %v1142 = vpop.permute.xlu0 %1141
      %1143 = vrot.lane.b32.xlu0 %v516, 16
      %v1144 = vpop.permute.xlu0 %1143
      %1145 = vrot.lane.b32.xlu0 %v517, 16
      %v1146 = vpop.permute.xlu0 %1145
      %1147 = vrot.lane.b32.xlu0 %v518, 16
      %v1148 = vpop.permute.xlu0 %1147
      %1149 = vrot.lane.b32.xlu0 %v519, 16
      %v1150 = vpop.permute.xlu0 %1149
      %1151 = vrot.lane.b32.xlu0 %v520, 16
      %v1152 = vpop.permute.xlu0 %1151
      %1153 = vrot.lane.b32.xlu0 %v521, 16
      %v1154 = vpop.permute.xlu0 %1153
      %1155 = vrot.lane.b32.xlu0 %v522, 16
      %v1156 = vpop.permute.xlu0 %1155
      %1157 = vrot.lane.b32.xlu0 %v523, 16
      %v1158 = vpop.permute.xlu0 %1157
      %1233 = vrot.lane.b32.xlu0 %v524, 20
      %v1234 = vpop.permute.xlu0 %1233
      %1235 = vrot.lane.b32.xlu0 %v525, 20
      %v1236 = vpop.permute.xlu0 %1235
      %1237 = vrot.lane.b32.xlu0 %v526, 20
      %v1238 = vpop.permute.xlu0 %1237
      %1239 = vrot.lane.b32.xlu0 %v527, 20
      %v1240 = vpop.permute.xlu0 %1239
      %1241 = vrot.lane.b32.xlu0 %v528, 20
      %v1242 = vpop.permute.xlu0 %1241
      %1243 = vrot.lane.b32.xlu0 %v529, 20
      %v1244 = vpop.permute.xlu0 %1243
      %1245 = vrot.lane.b32.xlu0 %v530, 20
      %v1246 = vpop.permute.xlu0 %1245
      %1247 = vrot.lane.b32.xlu0 %v531, 20
      %v1248 = vpop.permute.xlu0 %1247
      %1249 = vrot.lane.b32.xlu0 %v532, 20
      %v1250 = vpop.permute.xlu0 %1249
      %1251 = vrot.lane.b32.xlu0 %v533, 20
      %v1252 = vpop.permute.xlu0 %1251
      %1253 = vrot.lane.b32.xlu0 %v534, 20
      %v1254 = vpop.permute.xlu0 %1253
      %1255 = vrot.lane.b32.xlu0 %v535, 20
      %v1256 = vpop.permute.xlu0 %1255
      %1257 = vrot.lane.b32.xlu0 %v536, 20
      %v1258 = vpop.permute.xlu0 %1257
      %1259 = vrot.lane.b32.xlu0 %v537, 20
      %v1260 = vpop.permute.xlu0 %1259
      %1261 = vrot.lane.b32.xlu0 %v538, 20
      %v1262 = vpop.permute.xlu0 %1261
      %1263 = vrot.lane.b32.xlu0 %v539, 20
      %v1264 = vpop.permute.xlu0 %1263
      %1265 = vrot.lane.b32.xlu0 %v540, 20
      %v1266 = vpop.permute.xlu0 %1265
      %1267 = vrot.lane.b32.xlu0 %v541, 20
      %v1268 = vpop.permute.xlu0 %1267
      %1269 = vrot.lane.b32.xlu0 %v542, 20
      %v1270 = vpop.permute.xlu0 %1269
      %1271 = vrot.lane.b32.xlu0 %v543, 20
      %v1272 = vpop.permute.xlu0 %1271
      %1273 = vrot.lane.b32.xlu0 %v544, 20
      %v1274 = vpop.permute.xlu0 %1273
      %1275 = vrot.lane.b32.xlu0 %v545, 20
      %v1276 = vpop.permute.xlu0 %1275
      %1277 = vrot.lane.b32.xlu0 %v546, 20
      %v1278 = vpop.permute.xlu0 %1277
      %1279 = vrot.lane.b32.xlu0 %v547, 20
      %v1280 = vpop.permute.xlu0 %1279
      %1281 = vrot.lane.b32.xlu0 %v548, 20
      %v1282 = vpop.permute.xlu0 %1281
      %1283 = vrot.lane.b32.xlu0 %v549, 20
      %v1284 = vpop.permute.xlu0 %1283
      %1285 = vrot.lane.b32.xlu0 %v550, 20
      %v1286 = vpop.permute.xlu0 %1285
      %1287 = vrot.lane.b32.xlu0 %v551, 20
      %v1288 = vpop.permute.xlu0 %1287
      %1289 = vrot.lane.b32.xlu0 %v552, 20
      %v1290 = vpop.permute.xlu0 %1289
      %1291 = vrot.lane.b32.xlu0 %v553, 20
      %v1292 = vpop.permute.xlu0 %1291
      %1293 = vrot.lane.b32.xlu0 %v554, 20
      %v1294 = vpop.permute.xlu0 %1293
      %1295 = vrot.lane.b32.xlu0 %v555, 20
      %v1296 = vpop.permute.xlu0 %1295
      %1297 = vrot.lane.b32.xlu0 %v556, 20
      %v1298 = vpop.permute.xlu0 %1297
      %1299 = vrot.lane.b32.xlu0 %v557, 20
      %v1300 = vpop.permute.xlu0 %1299
      %1301 = vrot.lane.b32.xlu0 %v558, 20
      %v1302 = vpop.permute.xlu0 %1301
      %1303 = vrot.lane.b32.xlu0 %v559, 20
      %v1304 = vpop.permute.xlu0 %1303
      %1305 = vrot.lane.b32.xlu0 %v560, 20
      %v1306 = vpop.permute.xlu0 %1305
      %1347 = vrot.lane.b32.xlu0 %v526, 24
      %v1348 = vpop.permute.xlu0 %1347
      %1349 = vrot.lane.b32.xlu0 %v527, 24
      %v1350 = vpop.permute.xlu0 %1349
      %1351 = vrot.lane.b32.xlu0 %v528, 24
      %v1352 = vpop.permute.xlu0 %1351
      %1353 = vrot.lane.b32.xlu0 %v529, 24
      %v1354 = vpop.permute.xlu0 %1353
      %1355 = vrot.lane.b32.xlu0 %v530, 24
      %v1356 = vpop.permute.xlu0 %1355
      %1357 = vrot.lane.b32.xlu0 %v531, 24
      %v1358 = vpop.permute.xlu0 %1357
      %1359 = vrot.lane.b32.xlu0 %v532, 24
      %v1360 = vpop.permute.xlu0 %1359
      %1361 = vrot.lane.b32.xlu0 %v533, 24
      %v1362 = vpop.permute.xlu0 %1361
      %1363 = vrot.lane.b32.xlu0 %v534, 24
      %v1364 = vpop.permute.xlu0 %1363
      %1365 = vrot.lane.b32.xlu0 %v535, 24
      %v1366 = vpop.permute.xlu0 %1365
      %1367 = vrot.lane.b32.xlu0 %v536, 24
      %v1368 = vpop.permute.xlu0 %1367
      %1369 = vrot.lane.b32.xlu0 %v537, 24
      %v1370 = vpop.permute.xlu0 %1369
      %1371 = vrot.lane.b32.xlu0 %v538, 24
      %v1372 = vpop.permute.xlu0 %1371
      %1373 = vrot.lane.b32.xlu0 %v539, 24
      %v1374 = vpop.permute.xlu0 %1373
      %1375 = vrot.lane.b32.xlu0 %v540, 24
      %v1376 = vpop.permute.xlu0 %1375
      %1377 = vrot.lane.b32.xlu0 %v541, 24
      %v1378 = vpop.permute.xlu0 %1377
      %1379 = vrot.lane.b32.xlu0 %v542, 24
      %v1380 = vpop.permute.xlu0 %1379
      %1381 = vrot.lane.b32.xlu0 %v543, 24
      %v1382 = vpop.permute.xlu0 %1381
      %1383 = vrot.lane.b32.xlu0 %v544, 24
      %v1384 = vpop.permute.xlu0 %1383
      %1385 = vrot.lane.b32.xlu0 %v545, 24
      %v1386 = vpop.permute.xlu0 %1385
      %1387 = vrot.lane.b32.xlu0 %v546, 24
      %v1388 = vpop.permute.xlu0 %1387
      %1389 = vrot.lane.b32.xlu0 %v547, 24
      %v1390 = vpop.permute.xlu0 %1389
      %1391 = vrot.lane.b32.xlu0 %v548, 24
      %v1392 = vpop.permute.xlu0 %1391
      %1393 = vrot.lane.b32.xlu0 %v549, 24
      %v1394 = vpop.permute.xlu0 %1393
      %1395 = vrot.lane.b32.xlu0 %v550, 24
      %v1396 = vpop.permute.xlu0 %1395
      %1397 = vrot.lane.b32.xlu0 %v551, 24
      %v1398 = vpop.permute.xlu0 %1397
      %1399 = vrot.lane.b32.xlu0 %v552, 24
      %v1400 = vpop.permute.xlu0 %1399
      %1401 = vrot.lane.b32.xlu0 %v553, 24
      %v1402 = vpop.permute.xlu0 %1401
      %1403 = vrot.lane.b32.xlu0 %v554, 24
      %v1404 = vpop.permute.xlu0 %1403
      %1405 = vrot.lane.b32.xlu0 %v555, 24
      %v1406 = vpop.permute.xlu0 %1405
      %1407 = vrot.lane.b32.xlu0 %v556, 24
      %v1408 = vpop.permute.xlu0 %1407
      %1409 = vrot.lane.b32.xlu0 %v557, 24
      %v1410 = vpop.permute.xlu0 %1409
      %1411 = vrot.lane.b32.xlu0 %v558, 24
      %v1412 = vpop.permute.xlu0 %1411
      %1413 = vrot.lane.b32.xlu0 %v559, 24
      %v1414 = vpop.permute.xlu0 %1413
      %1415 = vrot.lane.b32.xlu0 %v561, 24
      %v1416 = vpop.permute.xlu0 %1415
      %1417 = vrot.lane.b32.xlu0 %v562, 24
      %v1418 = vpop.permute.xlu0 %1417
      %1419 = vrot.lane.b32.xlu0 %v563, 24
      %v1420 = vpop.permute.xlu0 %1419
      %1495 = vrot.lane.b32.xlu0 %v564, 28
      %v1496 = vpop.permute.xlu0 %1495
      %1497 = vrot.lane.b32.xlu0 %v565, 28
      %v1498 = vpop.permute.xlu0 %1497
      %1499 = vrot.lane.b32.xlu0 %v566, 28
      %v1500 = vpop.permute.xlu0 %1499
      %1501 = vrot.lane.b32.xlu0 %v567, 28
      %v1502 = vpop.permute.xlu0 %1501
      %1503 = vrot.lane.b32.xlu0 %v568, 28
      %v1504 = vpop.permute.xlu0 %1503
      %1505 = vrot.lane.b32.xlu0 %v569, 28
      %v1506 = vpop.permute.xlu0 %1505
      %1507 = vrot.lane.b32.xlu0 %v570, 28
      %v1508 = vpop.permute.xlu0 %1507
      %1509 = vrot.lane.b32.xlu0 %v571, 28
      %v1510 = vpop.permute.xlu0 %1509
      %1511 = vrot.lane.b32.xlu0 %v572, 28
      %v1512 = vpop.permute.xlu0 %1511
      %1513 = vrot.lane.b32.xlu0 %v573, 28
      %v1514 = vpop.permute.xlu0 %1513
      %1515 = vrot.lane.b32.xlu0 %v574, 28
      %v1516 = vpop.permute.xlu0 %1515
      %1517 = vrot.lane.b32.xlu0 %v575, 28
      %v1518 = vpop.permute.xlu0 %1517
      %1519 = vrot.lane.b32.xlu0 %v576, 28
      %v1520 = vpop.permute.xlu0 %1519
      %1521 = vrot.lane.b32.xlu0 %v577, 28
      %v1522 = vpop.permute.xlu0 %1521
      %1523 = vrot.lane.b32.xlu0 %v578, 28
      %v1524 = vpop.permute.xlu0 %1523
      %1525 = vrot.lane.b32.xlu0 %v579, 28
      %v1526 = vpop.permute.xlu0 %1525
      %1527 = vrot.lane.b32.xlu0 %v580, 28
      %v1528 = vpop.permute.xlu0 %1527
      %1529 = vrot.lane.b32.xlu0 %v581, 28
      %v1530 = vpop.permute.xlu0 %1529
      %1531 = vrot.lane.b32.xlu0 %v582, 28
      %v1532 = vpop.permute.xlu0 %1531
      %1533 = vrot.lane.b32.xlu0 %v583, 28
      %v1534 = vpop.permute.xlu0 %1533
      %1535 = vrot.lane.b32.xlu0 %v584, 28
      %v1536 = vpop.permute.xlu0 %1535
      %1537 = vrot.lane.b32.xlu0 %v585, 28
      %v1538 = vpop.permute.xlu0 %1537
      %1539 = vrot.lane.b32.xlu0 %v586, 28
      %v1540 = vpop.permute.xlu0 %1539
      %1541 = vrot.lane.b32.xlu0 %v587, 28
      %v1542 = vpop.permute.xlu0 %1541
      %1543 = vrot.lane.b32.xlu0 %v588, 28
      %v1544 = vpop.permute.xlu0 %1543
      %1545 = vrot.lane.b32.xlu0 %v589, 28
      %v1546 = vpop.permute.xlu0 %1545
      %1547 = vrot.lane.b32.xlu0 %v590, 28
      %v1548 = vpop.permute.xlu0 %1547
      %1549 = vrot.lane.b32.xlu0 %v591, 28
      %v1550 = vpop.permute.xlu0 %1549
      %1551 = vrot.lane.b32.xlu0 %v592, 28
      %v1552 = vpop.permute.xlu0 %1551
      %1553 = vrot.lane.b32.xlu0 %v593, 28
      %v1554 = vpop.permute.xlu0 %1553
      %1555 = vrot.lane.b32.xlu0 %v594, 28
      %v1556 = vpop.permute.xlu0 %1555
      %1557 = vrot.lane.b32.xlu0 %v595, 28
      %v1558 = vpop.permute.xlu0 %1557
      %1559 = vrot.lane.b32.xlu0 %v596, 28
      %v1560 = vpop.permute.xlu0 %1559
      %1561 = vrot.lane.b32.xlu0 %v597, 28
      %v1562 = vpop.permute.xlu0 %1561
      %1563 = vrot.lane.b32.xlu0 %v598, 28
      %v1564 = vpop.permute.xlu0 %1563
      %1565 = vrot.lane.b32.xlu0 %v599, 28
      %v1566 = vpop.permute.xlu0 %1565
      %1567 = vrot.lane.b32.xlu0 %v600, 28
      %v1568 = vpop.permute.xlu0 %1567
      %1643 = vrot.lane.b32.xlu0 %v601, 32
      %v1644 = vpop.permute.xlu0 %1643
      %1645 = vrot.lane.b32.xlu0 %v602, 32
      %v1646 = vpop.permute.xlu0 %1645
      %1647 = vrot.lane.b32.xlu0 %v603, 32
      %v1648 = vpop.permute.xlu0 %1647
      %1649 = vrot.lane.b32.xlu0 %v604, 32
      %v1650 = vpop.permute.xlu0 %1649
      %1651 = vrot.lane.b32.xlu0 %v605, 32
      %v1652 = vpop.permute.xlu0 %1651
      %1653 = vrot.lane.b32.xlu0 %v606, 32
      %v1654 = vpop.permute.xlu0 %1653
      %1655 = vrot.lane.b32.xlu0 %v607, 32
      %v1656 = vpop.permute.xlu0 %1655
      %1657 = vrot.lane.b32.xlu0 %v608, 32
      %v1658 = vpop.permute.xlu0 %1657
      %1659 = vrot.lane.b32.xlu0 %v609, 32
      %v1660 = vpop.permute.xlu0 %1659
      %1661 = vrot.lane.b32.xlu0 %v610, 32
      %v1662 = vpop.permute.xlu0 %1661
      %1663 = vrot.lane.b32.xlu0 %v611, 32
      %v1664 = vpop.permute.xlu0 %1663
      %1665 = vrot.lane.b32.xlu0 %v612, 32
      %v1666 = vpop.permute.xlu0 %1665
      %1667 = vrot.lane.b32.xlu0 %v613, 32
      %v1668 = vpop.permute.xlu0 %1667
      %1669 = vrot.lane.b32.xlu0 %v614, 32
      %v1670 = vpop.permute.xlu0 %1669
      %1671 = vrot.lane.b32.xlu0 %v615, 32
      %v1672 = vpop.permute.xlu0 %1671
      %1673 = vrot.lane.b32.xlu0 %v616, 32
      %v1674 = vpop.permute.xlu0 %1673
      %1675 = vrot.lane.b32.xlu0 %v617, 32
      %v1676 = vpop.permute.xlu0 %1675
      %1677 = vrot.lane.b32.xlu0 %v618, 32
      %v1678 = vpop.permute.xlu0 %1677
      %1679 = vrot.lane.b32.xlu0 %v619, 32
      %v1680 = vpop.permute.xlu0 %1679
      %1681 = vrot.lane.b32.xlu0 %v620, 32
      %v1682 = vpop.permute.xlu0 %1681
      %1683 = vrot.lane.b32.xlu0 %v621, 32
      %v1684 = vpop.permute.xlu0 %1683
      %1685 = vrot.lane.b32.xlu0 %v622, 32
      %v1686 = vpop.permute.xlu0 %1685
      %1687 = vrot.lane.b32.xlu0 %v623, 32
      %v1688 = vpop.permute.xlu0 %1687
      %1689 = vrot.lane.b32.xlu0 %v624, 32
      %v1690 = vpop.permute.xlu0 %1689
      %1691 = vrot.lane.b32.xlu0 %v625, 32
      %v1692 = vpop.permute.xlu0 %1691
      %1693 = vrot.lane.b32.xlu0 %v626, 32
      %v1694 = vpop.permute.xlu0 %1693
      %1695 = vrot.lane.b32.xlu0 %v627, 32
      %v1696 = vpop.permute.xlu0 %1695
      %1697 = vrot.lane.b32.xlu0 %v628, 32
      %v1698 = vpop.permute.xlu0 %1697
      %1699 = vrot.lane.b32.xlu0 %v629, 32
      %v1700 = vpop.permute.xlu0 %1699
      %1701 = vrot.lane.b32.xlu0 %v630, 32
      %v1702 = vpop.permute.xlu0 %1701
      %1703 = vrot.lane.b32.xlu0 %v631, 32
      %v1704 = vpop.permute.xlu0 %1703
      %1705 = vrot.lane.b32.xlu0 %v632, 32
      %v1706 = vpop.permute.xlu0 %1705
      %1707 = vrot.lane.b32.xlu0 %v633, 32
      %v1708 = vpop.permute.xlu0 %1707
      %1709 = vrot.lane.b32.xlu0 %v634, 32
      %v1710 = vpop.permute.xlu0 %1709
      %1711 = vrot.lane.b32.xlu0 %v635, 32
      %v1712 = vpop.permute.xlu0 %1711
      %1713 = vrot.lane.b32.xlu0 %v636, 32
      %v1714 = vpop.permute.xlu0 %1713
      %1715 = vrot.lane.b32.xlu0 %v637, 32
      %v1716 = vpop.permute.xlu0 %1715
      %v1754 = vsel %vm255, %v373, %v676
      %v1755 = vsel %vm255, %v374, %v678
      %v1756 = vsel %vm255, %v375, %v680
      %v1757 = vsel %vm255, %v376, %v682
      %v1758 = vsel %vm255, %v377, %v684
      %v1759 = vsel %vm255, %v378, %v686
      %v1760 = vsel %vm255, %v379, %v688
      %v1761 = vsel %vm255, %v380, %v690
      %v1762 = vsel %vm255, %v381, %v692
      %v1763 = vsel %vm255, %v382, %v694
      %v1764 = vsel %vm255, %v383, %v696
      %v1765 = vsel %vm255, %v384, %v698
      %v1766 = vsel %vm255, %v385, %v700
      %v1767 = vsel %vm255, %v386, %v702
      %v1768 = vsel %vm255, %v387, %v704
      %v1769 = vsel %vm255, %v388, %v706
      %v1770 = vsel %vm255, %v389, %v708
      %v1771 = vsel %vm255, %v390, %v710
      %v1772 = vsel %vm255, %v391, %v712
      %v1773 = vsel %vm255, %v392, %v714
      %v1774 = vsel %vm255, %v393, %v716
      %v1775 = vsel %vm255, %v394, %v718
      %v1776 = vsel %vm255, %v395, %v720
      %v1777 = vsel %vm255, %v396, %v722
      %v1778 = vsel %vm255, %v397, %v724
      %v1779 = vsel %vm255, %v398, %v726
      %v1780 = vsel %vm255, %v399, %v728
      %v1781 = vsel %vm255, %v400, %v730
      %v1782 = vsel %vm255, %v401, %v732
      %v1783 = vsel %vm255, %v402, %v734
      %v1784 = vsel %vm255, %v403, %v736
      %v1785 = vsel %vm255, %v404, %v738
      %v1786 = vsel %vm255, %v405, %v740
      %v1787 = vsel %vm255, %v406, %v742
      %v1788 = vsel %vm255, %v407, %v744
      %v1789 = vsel %vm255, %v408, %v746
      %v1790 = vsel %vm255, %v409, %v748
      %v1791 = vsel %vm363, %v1754, %v824
      %v1792 = vsel %vm363, %v1755, %v826
      %v1793 = vsel %vm363, %v1756, %v828
      %v1794 = vsel %vm363, %v1757, %v830
      %v1795 = vsel %vm363, %v1758, %v832
      %v1796 = vsel %vm363, %v1759, %v834
      %v1797 = vsel %vm363, %v1760, %v836
      %v1798 = vsel %vm363, %v1761, %v838
      %v1799 = vsel %vm363, %v1762, %v840
      %v1800 = vsel %vm363, %v1763, %v842
      %v1801 = vsel %vm363, %v1764, %v844
      %v1802 = vsel %vm363, %v1765, %v846
      %v1803 = vsel %vm363, %v1766, %v848
      %v1804 = vsel %vm363, %v1767, %v850
      %v1805 = vsel %vm363, %v1768, %v852
      %v1806 = vsel %vm363, %v1769, %v854
      %v1807 = vsel %vm363, %v1770, %v856
      %v1808 = vsel %vm363, %v1771, %v858
      %v1809 = vsel %vm363, %v1772, %v860
      %v1810 = vsel %vm363, %v1773, %v862
      %v1811 = vsel %vm363, %v1774, %v864
      %v1812 = vsel %vm363, %v1775, %v866
      %v1813 = vsel %vm363, %v1776, %v868
      %v1814 = vsel %vm363, %v1777, %v870
      %v1815 = vsel %vm363, %v1778, %v872
      %v1816 = vsel %vm363, %v1779, %v874
      %v1817 = vsel %vm363, %v1780, %v876
      %v1818 = vsel %vm363, %v1781, %v878
      %v1819 = vsel %vm363, %v1782, %v880
      %v1820 = vsel %vm363, %v1783, %v882
      %v1821 = vsel %vm363, %v1784, %v884
      %v1822 = vsel %vm363, %v1785, %v886
      %v1823 = vsel %vm363, %v1786, %v888
      %v1824 = vsel %vm363, %v1787, %v890
      %v1825 = vsel %vm363, %v1788, %v892
      %v1826 = vsel %vm363, %v1789, %v894
      %v1827 = vsel %vm363, %v1790, %v896
      %vm1828 = vcmask 97280
      %v1829 = vsel %vm1828, %v1791, %v938
      %v1830 = vsel %vm1828, %v1792, %v940
      %v1831 = vsel %vm1828, %v1793, %v942
      %v1832 = vsel %vm1828, %v1794, %v944
      %v1833 = vsel %vm1828, %v1795, %v946
      %v1834 = vsel %vm1828, %v1796, %v948
      %v1835 = vsel %vm1828, %v1797, %v950
      %v1836 = vsel %vm1828, %v1798, %v952
      %v1837 = vsel %vm1828, %v1799, %v954
      %v1838 = vsel %vm1828, %v1800, %v956
      %v1839 = vsel %vm1828, %v1801, %v958
      %v1840 = vsel %vm1828, %v1802, %v960
      %v1841 = vsel %vm1828, %v1803, %v962
      %v1842 = vsel %vm1828, %v1804, %v964
      %v1843 = vsel %vm1828, %v1805, %v966
      %v1844 = vsel %vm1828, %v1806, %v968
      %v1845 = vsel %vm1828, %v1807, %v970
      %v1846 = vsel %vm1828, %v1808, %v972
      %v1847 = vsel %vm1828, %v1809, %v974
      %v1848 = vsel %vm1828, %v1810, %v976
      %v1849 = vsel %vm1828, %v1811, %v978
      %v1850 = vsel %vm1828, %v1812, %v980
      %v1851 = vsel %vm1828, %v1813, %v982
      %v1852 = vsel %vm1828, %v1814, %v984
      %v1853 = vsel %vm1828, %v1815, %v986
      %v1854 = vsel %vm1828, %v1816, %v988
      %v1855 = vsel %vm1828, %v1817, %v990
      %v1856 = vsel %vm1828, %v1818, %v992
      %v1857 = vsel %vm1828, %v1819, %v994
      %v1858 = vsel %vm1828, %v1820, %v996
      %v1859 = vsel %vm1828, %v1821, %v998
      %v1860 = vsel %vm1828, %v1822, %v1000
      %v1861 = vsel %vm1828, %v1823, %v1002
      %v1862 = vsel %vm1828, %v1824, %v1004
      %v1863 = vsel %vm1828, %v1825, %v1006
      %v1864 = vsel %vm1828, %v1826, %v1008
      %v1865 = vsel %vm1828, %v1827, %v1010
      %vm1866 = vcmask 130048
      %v1867 = vsel %vm1866, %v1829, %v1086
      %v1868 = vsel %vm1866, %v1830, %v1088
      %v1869 = vsel %vm1866, %v1831, %v1090
      %v1870 = vsel %vm1866, %v1832, %v1092
      %v1871 = vsel %vm1866, %v1833, %v1094
      %v1872 = vsel %vm1866, %v1834, %v1096
      %v1873 = vsel %vm1866, %v1835, %v1098
      %v1874 = vsel %vm1866, %v1836, %v1100
      %v1875 = vsel %vm1866, %v1837, %v1102
      %v1876 = vsel %vm1866, %v1838, %v1104
      %v1877 = vsel %vm1866, %v1839, %v1106
      %v1878 = vsel %vm1866, %v1840, %v1108
      %v1879 = vsel %vm1866, %v1841, %v1110
      %v1880 = vsel %vm1866, %v1842, %v1112
      %v1881 = vsel %vm1866, %v1843, %v1114
      %v1882 = vsel %vm1866, %v1844, %v1116
      %v1883 = vsel %vm1866, %v1845, %v1118
      %v1884 = vsel %vm1866, %v1846, %v1120
      %v1885 = vsel %vm1866, %v1847, %v1122
      %v1886 = vsel %vm1866, %v1848, %v1124
      %v1887 = vsel %vm1866, %v1849, %v1126
      %v1888 = vsel %vm1866, %v1850, %v1128
      %v1889 = vsel %vm1866, %v1851, %v1130
      %v1890 = vsel %vm1866, %v1852, %v1132
      %v1891 = vsel %vm1866, %v1853, %v1134
      %v1892 = vsel %vm1866, %v1854, %v1136
      %v1893 = vsel %vm1866, %v1855, %v1138
      %v1894 = vsel %vm1866, %v1856, %v1140
      %v1895 = vsel %vm1866, %v1857, %v1142
      %v1896 = vsel %vm1866, %v1858, %v1144
      %v1897 = vsel %vm1866, %v1859, %v1146
      %v1898 = vsel %vm1866, %v1860, %v1148
      %v1899 = vsel %vm1866, %v1861, %v1150
      %v1900 = vsel %vm1866, %v1862, %v1152
      %v1901 = vsel %vm1866, %v1863, %v1154
      %v1902 = vsel %vm1866, %v1864, %v1156
      %v1903 = vsel %vm1866, %v1865, %v1158
      %vm1904 = vcmask 162816
      %v1905 = vsel %vm1904, %v1867, %v1234
      %v1906 = vsel %vm1904, %v1868, %v1236
      %v1907 = vsel %vm1904, %v1869, %v1238
      %v1908 = vsel %vm1904, %v1870, %v1240
      %v1909 = vsel %vm1904, %v1871, %v1242
      %v1910 = vsel %vm1904, %v1872, %v1244
      %v1911 = vsel %vm1904, %v1873, %v1246
      %v1912 = vsel %vm1904, %v1874, %v1248
      %v1913 = vsel %vm1904, %v1875, %v1250
      %v1914 = vsel %vm1904, %v1876, %v1252
      %v1915 = vsel %vm1904, %v1877, %v1254
      %v1916 = vsel %vm1904, %v1878, %v1256
      %v1917 = vsel %vm1904, %v1879, %v1258
      %v1918 = vsel %vm1904, %v1880, %v1260
      %v1919 = vsel %vm1904, %v1881, %v1262
      %v1920 = vsel %vm1904, %v1882, %v1264
      %v1921 = vsel %vm1904, %v1883, %v1266
      %v1922 = vsel %vm1904, %v1884, %v1268
      %v1923 = vsel %vm1904, %v1885, %v1270
      %v1924 = vsel %vm1904, %v1886, %v1272
      %v1925 = vsel %vm1904, %v1887, %v1274
      %v1926 = vsel %vm1904, %v1888, %v1276
      %v1927 = vsel %vm1904, %v1889, %v1278
      %v1928 = vsel %vm1904, %v1890, %v1280
      %v1929 = vsel %vm1904, %v1891, %v1282
      %v1930 = vsel %vm1904, %v1892, %v1284
      %v1931 = vsel %vm1904, %v1893, %v1286
      %v1932 = vsel %vm1904, %v1894, %v1288
      %v1933 = vsel %vm1904, %v1895, %v1290
      %v1934 = vsel %vm1904, %v1896, %v1292
      %v1935 = vsel %vm1904, %v1897, %v1294
      %v1936 = vsel %vm1904, %v1898, %v1296
      %v1937 = vsel %vm1904, %v1899, %v1298
      %v1938 = vsel %vm1904, %v1900, %v1300
      %v1939 = vsel %vm1904, %v1901, %v1302
      %v1940 = vsel %vm1904, %v1902, %v1304
      %v1941 = vsel %vm1904, %v1903, %v1306
      %vm1942 = vcmask 195584
      %v1943 = vsel %vm1942, %v1905, %v1348
      %v1944 = vsel %vm1942, %v1906, %v1350
      %v1945 = vsel %vm1942, %v1907, %v1352
      %v1946 = vsel %vm1942, %v1908, %v1354
      %v1947 = vsel %vm1942, %v1909, %v1356
      %v1948 = vsel %vm1942, %v1910, %v1358
      %v1949 = vsel %vm1942, %v1911, %v1360
      %v1950 = vsel %vm1942, %v1912, %v1362
      %v1951 = vsel %vm1942, %v1913, %v1364
      %v1952 = vsel %vm1942, %v1914, %v1366
      %v1953 = vsel %vm1942, %v1915, %v1368
      %v1954 = vsel %vm1942, %v1916, %v1370
      %v1955 = vsel %vm1942, %v1917, %v1372
      %v1956 = vsel %vm1942, %v1918, %v1374
      %v1957 = vsel %vm1942, %v1919, %v1376
      %v1958 = vsel %vm1942, %v1920, %v1378
      %v1959 = vsel %vm1942, %v1921, %v1380
      %v1960 = vsel %vm1942, %v1922, %v1382
      %v1961 = vsel %vm1942, %v1923, %v1384
      %v1962 = vsel %vm1942, %v1924, %v1386
      %v1963 = vsel %vm1942, %v1925, %v1388
      %v1964 = vsel %vm1942, %v1926, %v1390
      %v1965 = vsel %vm1942, %v1927, %v1392
      %v1966 = vsel %vm1942, %v1928, %v1394
      %v1967 = vsel %vm1942, %v1929, %v1396
      %v1968 = vsel %vm1942, %v1930, %v1398
      %v1969 = vsel %vm1942, %v1931, %v1400
      %v1970 = vsel %vm1942, %v1932, %v1402
      %v1971 = vsel %vm1942, %v1933, %v1404
      %v1972 = vsel %vm1942, %v1934, %v1406
      %v1973 = vsel %vm1942, %v1935, %v1408
      %v1974 = vsel %vm1942, %v1936, %v1410
      %v1975 = vsel %vm1942, %v1937, %v1412
      %v1976 = vsel %vm1942, %v1938, %v1414
      %v1977 = vsel %vm1942, %v1939, %v1416
      %v1978 = vsel %vm1942, %v1940, %v1418
      %v1979 = vsel %vm1942, %v1941, %v1420
      %vm1980 = vcmask 228352
      %v1981 = vsel %vm1980, %v1943, %v1496
      %v1982 = vsel %vm1980, %v1944, %v1498
      %v1983 = vsel %vm1980, %v1945, %v1500
      %v1984 = vsel %vm1980, %v1946, %v1502
      %v1985 = vsel %vm1980, %v1947, %v1504
      %v1986 = vsel %vm1980, %v1948, %v1506
      %v1987 = vsel %vm1980, %v1949, %v1508
      %v1988 = vsel %vm1980, %v1950, %v1510
      %v1989 = vsel %vm1980, %v1951, %v1512
      %v1990 = vsel %vm1980, %v1952, %v1514
      %v1991 = vsel %vm1980, %v1953, %v1516
      %v1992 = vsel %vm1980, %v1954, %v1518
      %v1993 = vsel %vm1980, %v1955, %v1520
      %v1994 = vsel %vm1980, %v1956, %v1522
      %v1995 = vsel %vm1980, %v1957, %v1524
      %v1996 = vsel %vm1980, %v1958, %v1526
      %v1997 = vsel %vm1980, %v1959, %v1528
      %v1998 = vsel %vm1980, %v1960, %v1530
      %v1999 = vsel %vm1980, %v1961, %v1532
      %v2000 = vsel %vm1980, %v1962, %v1534
      %v2001 = vsel %vm1980, %v1963, %v1536
      %v2002 = vsel %vm1980, %v1964, %v1538
      %v2003 = vsel %vm1980, %v1965, %v1540
      %v2004 = vsel %vm1980, %v1966, %v1542
      %v2005 = vsel %vm1980, %v1967, %v1544
      %v2006 = vsel %vm1980, %v1968, %v1546
      %v2007 = vsel %vm1980, %v1969, %v1548
      %v2008 = vsel %vm1980, %v1970, %v1550
      %v2009 = vsel %vm1980, %v1971, %v1552
      %v2010 = vsel %vm1980, %v1972, %v1554
      %v2011 = vsel %vm1980, %v1973, %v1556
      %v2012 = vsel %vm1980, %v1974, %v1558
      %v2013 = vsel %vm1980, %v1975, %v1560
      %v2014 = vsel %vm1980, %v1976, %v1562
      %v2015 = vsel %vm1980, %v1977, %v1564
      %v2016 = vsel %vm1980, %v1978, %v1566
      %v2017 = vsel %vm1980, %v1979, %v1568
      %vm2018 = vcmask 261120
      %v2019 = vsel %vm2018, %v1981, %v1644
      %v2020 = vsel %vm2018, %v1982, %v1646
      %v2021 = vsel %vm2018, %v1983, %v1648
      %v2022 = vsel %vm2018, %v1984, %v1650
      %v2023 = vsel %vm2018, %v1985, %v1652
      %v2024 = vsel %vm2018, %v1986, %v1654
      %v2025 = vsel %vm2018, %v1987, %v1656
      %v2026 = vsel %vm2018, %v1988, %v1658
      %v2027 = vsel %vm2018, %v1989, %v1660
      %v2028 = vsel %vm2018, %v1990, %v1662
      %v2029 = vsel %vm2018, %v1991, %v1664
      %v2030 = vsel %vm2018, %v1992, %v1666
      %v2031 = vsel %vm2018, %v1993, %v1668
      %v2032 = vsel %vm2018, %v1994, %v1670
      %v2033 = vsel %vm2018, %v1995, %v1672
      %v2034 = vsel %vm2018, %v1996, %v1674
      %v2035 = vsel %vm2018, %v1997, %v1676
      %v2036 = vsel %vm2018, %v1998, %v1678
      %v2037 = vsel %vm2018, %v1999, %v1680
      %v2038 = vsel %vm2018, %v2000, %v1682
      %v2039 = vsel %vm2018, %v2001, %v1684
      %v2040 = vsel %vm2018, %v2002, %v1686
      %v2041 = vsel %vm2018, %v2003, %v1688
      %v2042 = vsel %vm2018, %v2004, %v1690
      %v2043 = vsel %vm2018, %v2005, %v1692
      %v2044 = vsel %vm2018, %v2006, %v1694
      %v2045 = vsel %vm2018, %v2007, %v1696
      %v2046 = vsel %vm2018, %v2008, %v1698
      %v2047 = vsel %vm2018, %v2009, %v1700
      %v2048 = vsel %vm2018, %v2010, %v1702
      %v2049 = vsel %vm2018, %v2011, %v1704
      %v2050 = vsel %vm2018, %v2012, %v1706
      %v2051 = vsel %vm2018, %v2013, %v1708
      %v2052 = vsel %vm2018, %v2014, %v1710
      %v2053 = vsel %vm2018, %v2015, %v1712
      %v2054 = vsel %vm2018, %v2016, %v1714
      %v2055 = vsel %vm2018, %v2017, %v1716
      %v2056 = vmax.f32 %v2019, 0.0
      %v2057 = vmax.f32 %v2020, 0.0
      %v2058 = vmax.f32 %v2021, 0.0
      %v2059 = vmax.f32 %v2022, 0.0
      %v2060 = vmax.f32 %v2023, 0.0
      %v2061 = vmax.f32 %v2024, 0.0
      %v2062 = vmax.f32 %v2025, 0.0
      %v2063 = vmax.f32 %v2026, 0.0
      %v2064 = vmax.f32 %v2027, 0.0
      %v2065 = vmax.f32 %v2028, 0.0
      %v2066 = vmax.f32 %v2029, 0.0
      %v2067 = vmax.f32 %v2030, 0.0
      %v2068 = vmax.f32 %v2031, 0.0
      %v2069 = vmax.f32 %v2032, 0.0
      %v2070 = vmax.f32 %v2033, 0.0
      %v2071 = vmax.f32 %v2034, 0.0
      %v2072 = vmax.f32 %v2035, 0.0
      %v2073 = vmax.f32 %v2036, 0.0
      %v2074 = vmax.f32 %v2037, 0.0
      %v2075 = vmax.f32 %v2038, 0.0
      %v2076 = vmax.f32 %v2039, 0.0
      %v2077 = vmax.f32 %v2040, 0.0
      %v2078 = vmax.f32 %v2041, 0.0
      %v2079 = vmax.f32 %v2042, 0.0
      %v2080 = vmax.f32 %v2043, 0.0
      %v2081 = vmax.f32 %v2044, 0.0
      %v2082 = vmax.f32 %v2045, 0.0
      %v2083 = vmax.f32 %v2046, 0.0
      %v2084 = vmax.f32 %v2047, 0.0
      %v2085 = vmax.f32 %v2048, 0.0
      %v2086 = vmax.f32 %v2049, 0.0
      %v2087 = vmax.f32 %v2050, 0.0
      %v2088 = vmax.f32 %v2051, 0.0
      %v2089 = vmax.f32 %v2052, 0.0
      %v2090 = vmax.f32 %v2053, 0.0
      %v2091 = vmax.f32 %v2054, 0.0
      %v2092 = vmax.f32 %v2055, 0.0
      %v2093 = vld [vmem:[%s1] sm:$0xff]
      %v2094 = vld [vmem:[%s1 + $0x8] sm:$0xff]
      %v2095 = vld [vmem:[%s1 + $0x10] sm:$0xff]
      %v2096 = vld [vmem:[%s1 + $0x18] sm:$0xff]
      %v2097 = vld [vmem:[%s1 + $0x20] sm:$0xf]
      %v2098 = vld [vmem:[%s2] sm:$0x1]
      %v2100 = vlaneseq
      %v2101 = vshrl.u32 %v2100, 7
      %v2102 = vsub.s32 0, %v2101
      %v2103 = vrot.slane %v2098, %v2102
      %vm2105 = vcmask 293888
      %v2107 = vsel %vm2105, %v2056, 0
      %v2110 = vsel %vm2105, %v2057, 0
      %v2113 = vsel %vm2105, %v2058, 0
      %v2116 = vsel %vm2105, %v2059, 0
      %v2119 = vsel %vm2105, %v2060, 0
      %v2122 = vsel %vm2105, %v2061, 0
      %v2125 = vsel %vm2105, %v2062, 0
      %v2128 = vsel %vm2105, %v2063, 0
      %v2131 = vsel %vm2105, %v2064, 0
      %v2134 = vsel %vm2105, %v2065, 0
      %v2137 = vsel %vm2105, %v2066, 0
      %v2140 = vsel %vm2105, %v2067, 0
      %v2143 = vsel %vm2105, %v2068, 0
      %v2146 = vsel %vm2105, %v2069, 0
      %v2149 = vsel %vm2105, %v2070, 0
      %v2152 = vsel %vm2105, %v2071, 0
      %v2155 = vsel %vm2105, %v2072, 0
      %v2158 = vsel %vm2105, %v2073, 0
      %v2161 = vsel %vm2105, %v2074, 0
      %v2164 = vsel %vm2105, %v2075, 0
      %v2167 = vsel %vm2105, %v2076, 0
      %v2170 = vsel %vm2105, %v2077, 0
      %v2173 = vsel %vm2105, %v2078, 0
      %v2176 = vsel %vm2105, %v2079, 0
      %v2179 = vsel %vm2105, %v2080, 0
      %v2182 = vsel %vm2105, %v2081, 0
      %v2185 = vsel %vm2105, %v2082, 0
      %v2188 = vsel %vm2105, %v2083, 0
      %v2191 = vsel %vm2105, %v2084, 0
      %v2194 = vsel %vm2105, %v2085, 0
      %v2197 = vsel %vm2105, %v2086, 0
      %v2200 = vsel %vm2105, %v2087, 0
      %v2203 = vsel %vm2105, %v2088, 0
      %v2206 = vsel %vm2105, %v2089, 0
      %v2209 = vsel %vm2105, %v2090, 0
      %v2212 = vsel %vm2105, %v2091, 0
      %v2215 = vsel %vm2105, %v2092, 0
      %vm2217 = vcmask 1043456
      %v2219 = vsel %vm2217, %v2097, 0
      %2221 = vmatprep.subr.mxu0 0.0
      %2222 = vmatpush1.msra.mxu0 %v2093
      %2223 = vmatprep.subr.mxu0 0.0
      %2224 = vmatpush1.msra.mxu0 %v2094
      %2225 = vmatprep.subr.mxu0 0.0
      %2226 = vmatpush1.msra.mxu0 %v2095
      %2227 = vmatprep.subr.mxu0 0.0
      %2228 = vmatpush1.msra.mxu0 %v2096
      %2229 = vmatprep.subr.mxu0 0.0
      %2230 = vmatpush1.msra.mxu0 %v2219
      %2231 = vmatprep.subr.mxu0 0.0
      %2232 = vmatpush1.msra.mxu0 0.0
      %2233 = vmatprep.subr.mxu0 0.0
      %2234 = vmatpush1.msra.mxu0 0.0
      %2235 = vmatprep.subr.mxu0 0.0
      %2236 = vmatpush1.msra.mxu0 0.0
      %2237 = vmatprep.subr.mxu0 0.0
      %2238 = vmatpush1.msra.mxu0 0.0
      %2239 = vmatprep.subr.mxu0 0.0
      %2240 = vmatpush1.msra.mxu0 0.0
      %2241 = vmatprep.subr.mxu0 0.0
      %2242 = vmatpush1.msra.mxu0 0.0
      %2243 = vmatprep.subr.mxu0 0.0
      %2244 = vmatpush1.msra.mxu0 0.0
      %2245 = vmatprep.subr.mxu0 0.0
      %2246 = vmatpush1.msra.mxu0 0.0
      %2247 = vmatprep.subr.mxu0 0.0
      %2248 = vmatpush1.msra.mxu0 0.0
      %2249 = vmatprep.subr.mxu0 0.0
      %2250 = vmatpush1.msra.mxu0 0.0
      %2251 = vmatprep.subr.mxu0 0.0
      %2252 = vmatpush1.msra.mxu0 0.0
      %2253 = vmatprep.subr.mxu0 0.0
      %2254 = vmatpush1.msra.mxu0 0.0
      %2255 = vmatprep.subr.mxu0 0.0
      %2256 = vmatpush1.msra.mxu0 0.0
      %2257 = vmatprep.subr.mxu0 0.0
      %2258 = vmatpush1.msra.mxu0 0.0
      %2259 = vmatprep.subr.mxu0 0.0
      %2260 = vmatpush1.msra.mxu0 0.0
      %2261 = vmatprep.subr.mxu0 0.0
      %2262 = vmatpush1.msra.mxu0 0.0
      %2263 = vmatprep.subr.mxu0 0.0
      %2264 = vmatpush1.msra.mxu0 0.0
      %2265 = vmatprep.subr.mxu0 0.0
      %2266 = vmatpush1.msra.mxu0 0.0
      %2267 = vmatprep.subr.mxu0 0.0
      %2268 = vmatpush1.msra.mxu0 0.0
      %2269 = vmatprep.subr.mxu0 0.0
      %2270 = vmatpush1.msra.mxu0 0.0
      %2271 = vmatprep.subr.mxu0 0.0
      %2272 = vmatpush1.msra.mxu0 0.0
      %2273 = vmatprep.subr.mxu0 0.0
      %2274 = vmatpush1.msra.mxu0 0.0
      %2275 = vmatprep.subr.mxu0 0.0
      %2276 = vmatpush1.msra.mxu0 0.0
      %2277 = vmatprep.subr.mxu0 0.0
      %2278 = vmatpush1.msra.mxu0 0.0
      %2279 = vmatprep.subr.mxu0 0.0
      %2280 = vmatpush1.msra.mxu0 0.0
      %2281 = vmatprep.subr.mxu0 0.0
      %2282 = vmatpush1.msra.mxu0 0.0
      %2283 = vmatprep.subr.mxu0 0.0
      %2284 = vmatpush1.msra.mxu0 0.0
      %2285 = vmatprep.mubr.f32.mxu0 0.0
      %2286 = vmatmul.mubr.f32.gmra.mrb[0].mxu0 %v2107
      %v2287 = vpop.f32.mrb[0].mxu0
      %v2288 = vadd.f32 %v2103, %v2287
      %v2289 = vpop.f32.mrb[0].mxu0
      %2290 = vmatprep.mubr.f32.mxu0 0.0
      %2291 = vmatmul.mubr.f32.gmra.mrb[0].mxu0 %v2110
      %v2292 = vpop.f32.mrb[0].mxu0
      %v2293 = vadd.f32 %v2103, %v2292
      %v2294 = vpop.f32.mrb[0].mxu0
      %2295 = vmatprep.mubr.f32.mxu0 0.0
      %2296 = vmatmul.mubr.f32.gmra.mrb[0].mxu0 %v2113
      %v2297 = vpop.f32.mrb[0].mxu0
      %v2298 = vadd.f32 %v2103, %v2297
      %v2299 = vpop.f32.mrb[0].mxu0
      %2300 = vmatprep.mubr.f32.mxu0 0.0
      %2301 = vmatmul.mubr.f32.gmra.mrb[0].mxu0 %v2116
      %v2302 = vpop.f32.mrb[0].mxu0
      %v2303 = vadd.f32 %v2103, %v2302
      %v2304 = vpop.f32.mrb[0].mxu0
      %2305 = vmatprep.mubr.f32.mxu0 0.0
      %2306 = vmatmul.mubr.f32.gmra.mrb[0].mxu0 %v2119
      %v2307 = vpop.f32.mrb[0].mxu0
      %v2308 = vadd.f32 %v2103, %v2307
      %v2309 = vpop.f32.mrb[0].mxu0
      %2310 = vmatprep.mubr.f32.mxu0 0.0
      %2311 = vmatmul.mubr.f32.gmra.mrb[0].mxu0 %v2122
      %v2312 = vpop.f32.mrb[0].mxu0
      %v2313 = vadd.f32 %v2103, %v2312
      %v2314 = vpop.f32.mrb[0].mxu0
      %2315 = vmatprep.mubr.f32.mxu0 0.0
      %2316 = vmatmul.mubr.f32.gmra.mrb[0].mxu0 %v2125
      %v2317 = vpop.f32.mrb[0].mxu0
      %v2318 = vadd.f32 %v2103, %v2317
      %v2319 = vpop.f32.mrb[0].mxu0
      %2320 = vmatprep.mubr.f32.mxu0 0.0
      %2321 = vmatmul.mubr.f32.gmra.mrb[0].mxu0 %v2128
      %v2322 = vpop.f32.mrb[0].mxu0
      %v2323 = vadd.f32 %v2103, %v2322
      %v2324 = vpop.f32.mrb[0].mxu0
      %2325 = vmatprep.mubr.f32.mxu0 0.0
      %2326 = vmatmul.mubr.f32.gmra.mrb[0].mxu0 %v2131
      %v2327 = vpop.f32.mrb[0].mxu0
      %v2328 = vadd.f32 %v2103, %v2327
      %v2329 = vpop.f32.mrb[0].mxu0
      %2330 = vmatprep.mubr.f32.mxu0 0.0
      %2331 = vmatmul.mubr.f32.gmra.mrb[0].mxu0 %v2134
      %v2332 = vpop.f32.mrb[0].mxu0
      %v2333 = vadd.f32 %v2103, %v2332
      %v2334 = vpop.f32.mrb[0].mxu0
      %2335 = vmatprep.mubr.f32.mxu0 0.0
      %2336 = vmatmul.mubr.f32.gmra.mrb[0].mxu0 %v2137
      %v2337 = vpop.f32.mrb[0].mxu0
      %v2338 = vadd.f32 %v2103, %v2337
      %v2339 = vpop.f32.mrb[0].mxu0
      %2340 = vmatprep.mubr.f32.mxu0 0.0
      %2341 = vmatmul.mubr.f32.gmra.mrb[0].mxu0 %v2140
      %v2342 = vpop.f32.mrb[0].mxu0
      %v2343 = vadd.f32 %v2103, %v2342
      %v2344 = vpop.f32.mrb[0].mxu0
      %2345 = vmatprep.mubr.f32.mxu0 0.0
      %2346 = vmatmul.mubr.f32.gmra.mrb[0].mxu0 %v2143
      %v2347 = vpop.f32.mrb[0].mxu0
      %v2348 = vadd.f32 %v2103, %v2347
      %v2349 = vpop.f32.mrb[0].mxu0
      %2350 = vmatprep.mubr.f32.mxu0 0.0
      %2351 = vmatmul.mubr.f32.gmra.mrb[0].mxu0 %v2146
      %v2352 = vpop.f32.mrb[0].mxu0
      %v2353 = vadd.f32 %v2103, %v2352
      %v2354 = vpop.f32.mrb[0].mxu0
      %2355 = vmatprep.mubr.f32.mxu0 0.0
      %2356 = vmatmul.mubr.f32.gmra.mrb[0].mxu0 %v2149
      %v2357 = vpop.f32.mrb[0].mxu0
      %v2358 = vadd.f32 %v2103, %v2357
      %v2359 = vpop.f32.mrb[0].mxu0
      %2360 = vmatprep.mubr.f32.mxu0 0.0
      %2361 = vmatmul.mubr.f32.gmra.mrb[0].mxu0 %v2152
      %v2362 = vpop.f32.mrb[0].mxu0
      %v2363 = vadd.f32 %v2103, %v2362
      %v2364 = vpop.f32.mrb[0].mxu0
      %2365 = vmatprep.mubr.f32.mxu0 0.0
      %2366 = vmatmul.mubr.f32.gmra.mrb[0].mxu0 %v2155
      %v2367 = vpop.f32.mrb[0].mxu0
      %v2368 = vadd.f32 %v2103, %v2367
      %v2369 = vpop.f32.mrb[0].mxu0
      %2370 = vmatprep.mubr.f32.mxu0 0.0
      %2371 = vmatmul.mubr.f32.gmra.mrb[0].mxu0 %v2158
      %v2372 = vpop.f32.mrb[0].mxu0
      %v2373 = vadd.f32 %v2103, %v2372
      %v2374 = vpop.f32.mrb[0].mxu0
      %2375 = vmatprep.mubr.f32.mxu0 0.0
      %2376 = vmatmul.mubr.f32.gmra.mrb[0].mxu0 %v2161
      %v2377 = vpop.f32.mrb[0].mxu0
      %v2378 = vadd.f32 %v2103, %v2377
      %v2379 = vpop.f32.mrb[0].mxu0
      %2380 = vmatprep.mubr.f32.mxu0 0.0
      %2381 = vmatmul.mubr.f32.gmra.mrb[0].mxu0 %v2164
      %v2382 = vpop.f32.mrb[0].mxu0
      %v2383 = vadd.f32 %v2103, %v2382
      %v2384 = vpop.f32.mrb[0].mxu0
      %2385 = vmatprep.mubr.f32.mxu0 0.0
      %2386 = vmatmul.mubr.f32.gmra.mrb[0].mxu0 %v2167
      %v2387 = vpop.f32.mrb[0].mxu0
      %v2388 = vadd.f32 %v2103, %v2387
      %v2389 = vpop.f32.mrb[0].mxu0
      %2390 = vmatprep.mubr.f32.mxu0 0.0
      %2391 = vmatmul.mubr.f32.gmra.mrb[0].mxu0 %v2170
      %v2392 = vpop.f32.mrb[0].mxu0
      %v2393 = vadd.f32 %v2103, %v2392
      %v2394 = vpop.f32.mrb[0].mxu0
      %2395 = vmatprep.mubr.f32.mxu0 0.0
      %2396 = vmatmul.mubr.f32.gmra.mrb[0].mxu0 %v2173
      %v2397 = vpop.f32.mrb[0].mxu0
      %v2398 = vadd.f32 %v2103, %v2397
      %v2399 = vpop.f32.mrb[0].mxu0
      %2400 = vmatprep.mubr.f32.mxu0 0.0
      %2401 = vmatmul.mubr.f32.gmra.mrb[0].mxu0 %v2176
      %v2402 = vpop.f32.mrb[0].mxu0
      %v2403 = vadd.f32 %v2103, %v2402
      %v2404 = vpop.f32.mrb[0].mxu0
      %2405 = vmatprep.mubr.f32.mxu0 0.0
      %2406 = vmatmul.mubr.f32.gmra.mrb[0].mxu0 %v2179
      %v2407 = vpop.f32.mrb[0].mxu0
      %v2408 = vadd.f32 %v2103, %v2407
      %v2409 = vpop.f32.mrb[0].mxu0
      %2410 = vmatprep.mubr.f32.mxu0 0.0
      %2411 = vmatmul.mubr.f32.gmra.mrb[0].mxu0 %v2182
      %v2412 = vpop.f32.mrb[0].mxu0
      %v2413 = vadd.f32 %v2103, %v2412
      %v2414 = vpop.f32.mrb[0].mxu0
      %2415 = vmatprep.mubr.f32.mxu0 0.0
      %2416 = vmatmul.mubr.f32.gmra.mrb[0].mxu0 %v2185
      %v2417 = vpop.f32.mrb[0].mxu0
      %v2418 = vadd.f32 %v2103, %v2417
      %v2419 = vpop.f32.mrb[0].mxu0
      %2420 = vmatprep.mubr.f32.mxu0 0.0
      %2421 = vmatmul.mubr.f32.gmra.mrb[0].mxu0 %v2188
      %v2422 = vpop.f32.mrb[0].mxu0
      %v2423 = vadd.f32 %v2103, %v2422
      %v2424 = vpop.f32.mrb[0].mxu0
      %2425 = vmatprep.mubr.f32.mxu0 0.0
      %2426 = vmatmul.mubr.f32.gmra.mrb[0].mxu0 %v2191
      %v2427 = vpop.f32.mrb[0].mxu0
      %v2428 = vadd.f32 %v2103, %v2427
      %v2429 = vpop.f32.mrb[0].mxu0
      %2430 = vmatprep.mubr.f32.mxu0 0.0
      %2431 = vmatmul.mubr.f32.gmra.mrb[0].mxu0 %v2194
      %v2432 = vpop.f32.mrb[0].mxu0
      %v2433 = vadd.f32 %v2103, %v2432
      %v2434 = vpop.f32.mrb[0].mxu0
      %2435 = vmatprep.mubr.f32.mxu0 0.0
      %2436 = vmatmul.mubr.f32.gmra.mrb[0].mxu0 %v2197
      %v2437 = vpop.f32.mrb[0].mxu0
      %v2438 = vadd.f32 %v2103, %v2437
      %v2439 = vpop.f32.mrb[0].mxu0
      %2440 = vmatprep.mubr.f32.mxu0 0.0
      %2441 = vmatmul.mubr.f32.gmra.mrb[0].mxu0 %v2200
      %v2442 = vpop.f32.mrb[0].mxu0
      %v2443 = vadd.f32 %v2103, %v2442
      %v2444 = vpop.f32.mrb[0].mxu0
      %2445 = vmatprep.mubr.f32.mxu0 0.0
      %2446 = vmatmul.mubr.f32.gmra.mrb[0].mxu0 %v2203
      %v2447 = vpop.f32.mrb[0].mxu0
      %v2448 = vadd.f32 %v2103, %v2447
      %v2449 = vpop.f32.mrb[0].mxu0
      %2450 = vmatprep.mubr.f32.mxu0 0.0
      %2451 = vmatmul.mubr.f32.gmra.mrb[0].mxu0 %v2206
      %v2452 = vpop.f32.mrb[0].mxu0
      %v2453 = vadd.f32 %v2103, %v2452
      %v2454 = vpop.f32.mrb[0].mxu0
      %2455 = vmatprep.mubr.f32.mxu0 0.0
      %2456 = vmatmul.mubr.f32.gmra.mrb[0].mxu0 %v2209
      %v2457 = vpop.f32.mrb[0].mxu0
      %v2458 = vadd.f32 %v2103, %v2457
      %v2459 = vpop.f32.mrb[0].mxu0
      %2460 = vmatprep.mubr.f32.mxu0 0.0
      %2461 = vmatmul.mubr.f32.gmra.mrb[0].mxu0 %v2212
      %v2462 = vpop.f32.mrb[0].mxu0
      %v2463 = vadd.f32 %v2103, %v2462
      %v2464 = vpop.f32.mrb[0].mxu0
      %2465 = vmatprep.mubr.f32.mxu0 0.0
      %2466 = vmatmul.mubr.f32.gmra.mrb[0].mxu0 %v2215
      %v2467 = vpop.f32.mrb[0].mxu0
      %v2468 = vadd.f32 %v2103, %v2467
      %v2469 = vpop.f32.mrb[0].mxu0
      %2470 = vdwg.mxu0
      %v2471 = vmax.f32 %v2288, 0.0
      %v2472 = vmax.f32 %v2293, 0.0
      %v2473 = vmax.f32 %v2298, 0.0
      %v2474 = vmax.f32 %v2303, 0.0
      %v2475 = vmax.f32 %v2308, 0.0
      %v2476 = vmax.f32 %v2313, 0.0
      %v2477 = vmax.f32 %v2318, 0.0
      %v2478 = vmax.f32 %v2323, 0.0
      %v2479 = vmax.f32 %v2328, 0.0
      %v2480 = vmax.f32 %v2333, 0.0
      %v2481 = vmax.f32 %v2338, 0.0
      %v2482 = vmax.f32 %v2343, 0.0
      %v2483 = vmax.f32 %v2348, 0.0
      %v2484 = vmax.f32 %v2353, 0.0
      %v2485 = vmax.f32 %v2358, 0.0
      %v2486 = vmax.f32 %v2363, 0.0
      %v2487 = vmax.f32 %v2368, 0.0
      %v2488 = vmax.f32 %v2373, 0.0
      %v2489 = vmax.f32 %v2378, 0.0
      %v2490 = vmax.f32 %v2383, 0.0
      %v2491 = vmax.f32 %v2388, 0.0
      %v2492 = vmax.f32 %v2393, 0.0
      %v2493 = vmax.f32 %v2398, 0.0
      %v2494 = vmax.f32 %v2403, 0.0
      %v2495 = vmax.f32 %v2408, 0.0
      %v2496 = vmax.f32 %v2413, 0.0
      %v2497 = vmax.f32 %v2418, 0.0
      %v2498 = vmax.f32 %v2423, 0.0
      %v2499 = vmax.f32 %v2428, 0.0
      %v2500 = vmax.f32 %v2433, 0.0
      %v2501 = vmax.f32 %v2438, 0.0
      %v2502 = vmax.f32 %v2443, 0.0
      %v2503 = vmax.f32 %v2448, 0.0
      %v2504 = vmax.f32 %v2453, 0.0
      %v2505 = vmax.f32 %v2458, 0.0
      %v2506 = vmax.f32 %v2463, 0.0
      %v2507 = vmax.f32 %v2468, 0.0
      %v2508 = vld [vmem:[%s5] sm:$0xff]
      %v2509 = vld [vmem:[%s5 + $0x8] sm:$0xff]
      %v2510 = vld [vmem:[%s5 + $0x10] sm:$0xff]
      %v2511 = vld [vmem:[%s5 + $0x18] sm:$0xff]
      %v2512 = vld [vmem:[%s5 + $0x20] sm:$0xff]
      %v2513 = vld [vmem:[%s5 + $0x28] sm:$0xff]
      %v2514 = vld [vmem:[%s5 + $0x30] sm:$0xff]
      %v2515 = vld [vmem:[%s5 + $0x38] sm:$0xff]
      %v2516 = vld [vmem:[%s5 + $0x40] sm:$0xff]
      %v2517 = vld [vmem:[%s5 + $0x48] sm:$0xff]
      %v2518 = vld [vmem:[%s5 + $0x50] sm:$0xff]
      %v2519 = vld [vmem:[%s5 + $0x58] sm:$0xff]
      %v2520 = vld [vmem:[%s5 + $0x60] sm:$0xff]
      %v2521 = vld [vmem:[%s5 + $0x68] sm:$0xff]
      %v2522 = vld [vmem:[%s5 + $0x70] sm:$0xff]
      %v2523 = vld [vmem:[%s5 + $0x78] sm:$0xff]
      %v2524 = vld [vmem:[%s5 + $0x80] sm:$0xff]
      %v2525 = vld [vmem:[%s5 + $0x88] sm:$0xff]
      %v2526 = vld [vmem:[%s5 + $0x90] sm:$0xff]
      %v2527 = vld [vmem:[%s5 + $0x98] sm:$0xff]
      %v2528 = vld [vmem:[%s5 + $0xa0] sm:$0xff]
      %v2529 = vld [vmem:[%s5 + $0xa8] sm:$0xff]
      %v2530 = vld [vmem:[%s5 + $0xb0] sm:$0xff]
      %v2531 = vld [vmem:[%s5 + $0xb8] sm:$0xff]
      %v2532 = vld [vmem:[%s5 + $0xc0] sm:$0xff]
      %v2533 = vld [vmem:[%s5 + $0xc8] sm:$0xff]
      %v2534 = vld [vmem:[%s5 + $0xd0] sm:$0xff]
      %v2535 = vld [vmem:[%s5 + $0xd8] sm:$0xff]
      %v2536 = vld [vmem:[%s5 + $0xe0] sm:$0xff]
      %v2537 = vld [vmem:[%s5 + $0xe8] sm:$0xff]
      %v2538 = vld [vmem:[%s5 + $0xf0] sm:$0xff]
      %v2539 = vld [vmem:[%s5 + $0xf8] sm:$0xff]
      %v2540 = vld [vmem:[%s5 + $0x100] sm:$0xff]
      %v2541 = vld [vmem:[%s5 + $0x108] sm:$0xff]
      %v2542 = vld [vmem:[%s5 + $0x110] sm:$0xff]
      %v2543 = vld [vmem:[%s5 + $0x118] sm:$0xff]
      %v2544 = vld [vmem:[%s5 + $0x120] sm:$0x3]
      %2546 = vset.pattern.permute.xlu0 0
      %2547 = vperm.xlu0 %2546, %v2508
      %v2548 = vpop.permute.xlu0 %2547
      %2551 = vset.pattern.permute.xlu0 0
      %2552 = vperm.xlu0 %2551, %v2509
      %v2553 = vpop.permute.xlu0 %2552
      %2556 = vset.pattern.permute.xlu0 0
      %2557 = vperm.xlu0 %2556, %v2510
      %v2558 = vpop.permute.xlu0 %2557
      %2561 = vset.pattern.permute.xlu0 0
      %2562 = vperm.xlu0 %2561, %v2511
      %v2563 = vpop.permute.xlu0 %2562
      %2566 = vset.pattern.permute.xlu0 0
      %2567 = vperm.xlu0 %2566, %v2512
      %v2568 = vpop.permute.xlu0 %2567
      %2571 = vset.pattern.permute.xlu0 0
      %2572 = vperm.xlu0 %2571, %v2513
      %v2573 = vpop.permute.xlu0 %2572
      %2576 = vset.pattern.permute.xlu0 0
      %2577 = vperm.xlu0 %2576, %v2514
      %v2578 = vpop.permute.xlu0 %2577
      %2581 = vset.pattern.permute.xlu0 0
      %2582 = vperm.xlu0 %2581, %v2515
      %v2583 = vpop.permute.xlu0 %2582
      %2586 = vset.pattern.permute.xlu0 0
      %2587 = vperm.xlu0 %2586, %v2516
      %v2588 = vpop.permute.xlu0 %2587
      %2591 = vset.pattern.permute.xlu0 0
      %2592 = vperm.xlu0 %2591, %v2517
      %v2593 = vpop.permute.xlu0 %2592
      %2596 = vset.pattern.permute.xlu0 0
      %2597 = vperm.xlu0 %2596, %v2518
      %v2598 = vpop.permute.xlu0 %2597
      %2601 = vset.pattern.permute.xlu0 0
      %2602 = vperm.xlu0 %2601, %v2519
      %v2603 = vpop.permute.xlu0 %2602
      %2606 = vset.pattern.permute.xlu0 0
      %2607 = vperm.xlu0 %2606, %v2520
      %v2608 = vpop.permute.xlu0 %2607
      %2611 = vset.pattern.permute.xlu0 0
      %2612 = vperm.xlu0 %2611, %v2521
      %v2613 = vpop.permute.xlu0 %2612
      %2616 = vset.pattern.permute.xlu0 0
      %2617 = vperm.xlu0 %2616, %v2522
      %v2618 = vpop.permute.xlu0 %2617
      %2621 = vset.pattern.permute.xlu0 0
      %2622 = vperm.xlu0 %2621, %v2523
      %v2623 = vpop.permute.xlu0 %2622
      %2626 = vset.pattern.permute.xlu0 0
      %2627 = vperm.xlu0 %2626, %v2524
      %v2628 = vpop.permute.xlu0 %2627
      %2631 = vset.pattern.permute.xlu0 0
      %2632 = vperm.xlu0 %2631, %v2525
      %v2633 = vpop.permute.xlu0 %2632
      %2636 = vset.pattern.permute.xlu0 0
      %2637 = vperm.xlu0 %2636, %v2526
      %v2638 = vpop.permute.xlu0 %2637
      %2641 = vset.pattern.permute.xlu0 0
      %2642 = vperm.xlu0 %2641, %v2527
      %v2643 = vpop.permute.xlu0 %2642
      %2646 = vset.pattern.permute.xlu0 0
      %2647 = vperm.xlu0 %2646, %v2528
      %v2648 = vpop.permute.xlu0 %2647
      %2651 = vset.pattern.permute.xlu0 0
      %2652 = vperm.xlu0 %2651, %v2529
      %v2653 = vpop.permute.xlu0 %2652
      %2656 = vset.pattern.permute.xlu0 0
      %2657 = vperm.xlu0 %2656, %v2530
      %v2658 = vpop.permute.xlu0 %2657
      %2661 = vset.pattern.permute.xlu0 0
      %2662 = vperm.xlu0 %2661, %v2531
      %v2663 = vpop.permute.xlu0 %2662
      %2666 = vset.pattern.permute.xlu0 0
      %2667 = vperm.xlu0 %2666, %v2532
      %v2668 = vpop.permute.xlu0 %2667
      %2671 = vset.pattern.permute.xlu0 0
      %2672 = vperm.xlu0 %2671, %v2533
      %v2673 = vpop.permute.xlu0 %2672
      %2676 = vset.pattern.permute.xlu0 0
      %2677 = vperm.xlu0 %2676, %v2534
      %v2678 = vpop.permute.xlu0 %2677
      %2681 = vset.pattern.permute.xlu0 0
      %2682 = vperm.xlu0 %2681, %v2535
      %v2683 = vpop.permute.xlu0 %2682
      %2686 = vset.pattern.permute.xlu0 0
      %2687 = vperm.xlu0 %2686, %v2536
      %v2688 = vpop.permute.xlu0 %2687
      %2691 = vset.pattern.permute.xlu0 0
      %2692 = vperm.xlu0 %2691, %v2537
      %v2693 = vpop.permute.xlu0 %2692
      %2696 = vset.pattern.permute.xlu0 0
      %2697 = vperm.xlu0 %2696, %v2538
      %v2698 = vpop.permute.xlu0 %2697
      %2701 = vset.pattern.permute.xlu0 0
      %2702 = vperm.xlu0 %2701, %v2539
      %v2703 = vpop.permute.xlu0 %2702
      %2706 = vset.pattern.permute.xlu0 0
      %2707 = vperm.xlu0 %2706, %v2540
      %v2708 = vpop.permute.xlu0 %2707
      %2711 = vset.pattern.permute.xlu0 0
      %2712 = vperm.xlu0 %2711, %v2541
      %v2713 = vpop.permute.xlu0 %2712
      %2716 = vset.pattern.permute.xlu0 0
      %2717 = vperm.xlu0 %2716, %v2542
      %v2718 = vpop.permute.xlu0 %2717
      %2721 = vset.pattern.permute.xlu0 0
      %2722 = vperm.xlu0 %2721, %v2543
      %v2723 = vpop.permute.xlu0 %2722
      %2726 = vset.pattern.permute.xlu0 0
      %2727 = vperm.xlu0 %2726, %v2544
      %v2728 = vpop.permute.xlu0 %2727
      %v2730 = vmul.f32 %v2471, %v2548
      %v2731 = vmul.f32 %v2472, %v2553
      %v2732 = vmul.f32 %v2473, %v2558
      %v2733 = vmul.f32 %v2474, %v2563
      %v2734 = vmul.f32 %v2475, %v2568
      %v2735 = vmul.f32 %v2476, %v2573
      %v2736 = vmul.f32 %v2477, %v2578
      %v2737 = vmul.f32 %v2478, %v2583
      %v2738 = vmul.f32 %v2479, %v2588
      %v2739 = vmul.f32 %v2480, %v2593
      %v2740 = vmul.f32 %v2481, %v2598
      %v2741 = vmul.f32 %v2482, %v2603
      %v2742 = vmul.f32 %v2483, %v2608
      %v2743 = vmul.f32 %v2484, %v2613
      %v2744 = vmul.f32 %v2485, %v2618
      %v2745 = vmul.f32 %v2486, %v2623
      %v2746 = vmul.f32 %v2487, %v2628
      %v2747 = vmul.f32 %v2488, %v2633
      %v2748 = vmul.f32 %v2489, %v2638
      %v2749 = vmul.f32 %v2490, %v2643
      %v2750 = vmul.f32 %v2491, %v2648
      %v2751 = vmul.f32 %v2492, %v2653
      %v2752 = vmul.f32 %v2493, %v2658
      %v2753 = vmul.f32 %v2494, %v2663
      %v2754 = vmul.f32 %v2495, %v2668
      %v2755 = vmul.f32 %v2496, %v2673
      %v2756 = vmul.f32 %v2497, %v2678
      %v2757 = vmul.f32 %v2498, %v2683
      %v2758 = vmul.f32 %v2499, %v2688
      %v2759 = vmul.f32 %v2500, %v2693
      %v2760 = vmul.f32 %v2501, %v2698
      %v2761 = vmul.f32 %v2502, %v2703
      %v2762 = vmul.f32 %v2503, %v2708
      %v2763 = vmul.f32 %v2504, %v2713
      %v2764 = vmul.f32 %v2505, %v2718
      %v2765 = vmul.f32 %v2506, %v2723
      %v2766 = vmul.f32 %v2507, %v2728
      %2767 = vst.msk [vmem:[#allocation3 + $0x13] sm:$0xff] %vm363, %v2730
      %2768 = vst.msk [vmem:[#allocation3 + $0x1b] sm:$0xff] %vm363, %v2731
      %2769 = vst.msk [vmem:[#allocation3 + $0x23] sm:$0xff] %vm363, %v2732
      %2770 = vst.msk [vmem:[#allocation3 + $0x2b] sm:$0xff] %vm363, %v2733
      %2771 = vst.msk [vmem:[#allocation3 + $0x33] sm:$0xff] %vm363, %v2734
      %2772 = vst.msk [vmem:[#allocation3 + $0x3b] sm:$0xff] %vm363, %v2735
      %2773 = vst.msk [vmem:[#allocation3 + $0x43] sm:$0xff] %vm363, %v2736
      %2774 = vst.msk [vmem:[#allocation3 + $0x4b] sm:$0xff] %vm363, %v2737
      %2775 = vst.msk [vmem:[#allocation3 + $0x53] sm:$0xff] %vm363, %v2738
      %2776 = vst.msk [vmem:[#allocation3 + $0x5b] sm:$0xff] %vm363, %v2739
      %2777 = vst.msk [vmem:[#allocation3 + $0x63] sm:$0xff] %vm363, %v2740
      %2778 = vst.msk [vmem:[#allocation3 + $0x6b] sm:$0xff] %vm363, %v2741
      %2779 = vst.msk [vmem:[#allocation3 + $0x73] sm:$0xff] %vm363, %v2742
      %2780 = vst.msk [vmem:[#allocation3 + $0x7b] sm:$0xff] %vm363, %v2743
      %2781 = vst.msk [vmem:[#allocation3 + $0x83] sm:$0xff] %vm363, %v2744
      %2782 = vst.msk [vmem:[#allocation3 + $0x8b] sm:$0xff] %vm363, %v2745
      %2783 = vst.msk [vmem:[#allocation3 + $0x93] sm:$0xff] %vm363, %v2746
      %2784 = vst.msk [vmem:[#allocation3 + $0x9b] sm:$0xff] %vm363, %v2747
      %2785 = vst.msk [vmem:[#allocation3 + $0xa3] sm:$0xff] %vm363, %v2748
      %2786 = vst.msk [vmem:[#allocation3 + $0xab] sm:$0xff] %vm363, %v2749
      %2787 = vst.msk [vmem:[#allocation3 + $0xb3] sm:$0xff] %vm363, %v2750
      %2788 = vst.msk [vmem:[#allocation3 + $0xbb] sm:$0xff] %vm363, %v2751
      %2789 = vst.msk [vmem:[#allocation3 + $0xc3] sm:$0xff] %vm363, %v2752
      %2790 = vst.msk [vmem:[#allocation3 + $0xcb] sm:$0xff] %vm363, %v2753
      %2791 = vst.msk [vmem:[#allocation3 + $0xd3] sm:$0xff] %vm363, %v2754
      %2792 = vst.msk [vmem:[#allocation3 + $0xdb] sm:$0xff] %vm363, %v2755
      %2793 = vst.msk [vmem:[#allocation3 + $0xe3] sm:$0xff] %vm363, %v2756
      %2794 = vst.msk [vmem:[#allocation3 + $0xeb] sm:$0xff] %vm363, %v2757
      %2795 = vst.msk [vmem:[#allocation3 + $0xf3] sm:$0xff] %vm363, %v2758
      %2796 = vst.msk [vmem:[#allocation3 + $0xfb] sm:$0xff] %vm363, %v2759
      %2797 = vst.msk [vmem:[#allocation3 + $0x103] sm:$0xff] %vm363, %v2760
      %2798 = vst.msk [vmem:[#allocation3 + $0x10b] sm:$0xff] %vm363, %v2761
      %2799 = vst.msk [vmem:[#allocation3 + $0x113] sm:$0xff] %vm363, %v2762
      %2800 = vst.msk [vmem:[#allocation3 + $0x11b] sm:$0xff] %vm363, %v2763
      %2801 = vst.msk [vmem:[#allocation3 + $0x123] sm:$0xff] %vm363, %v2764
      %2802 = vst.msk [vmem:[#allocation3 + $0x12b] sm:$0xff] %vm363, %v2765
      %vm2803 = vcmask 58368
      %2804 = vst.msk [vmem:[#allocation3 + $0x133] sm:$0x3] %vm2803, %v2766
      %v2805 = vld [vmem:[#allocation3] sm:$0xff]
      %v2806 = vld [vmem:[#allocation3 + $0x8] sm:$0xff]
      %v2807 = vld [vmem:[#allocation3 + $0x10] sm:$0xff]
      %v2808 = vld [vmem:[#allocation3 + $0x18] sm:$0xff]
      %v2809 = vld [vmem:[#allocation3 + $0x20] sm:$0xff]
      %v2810 = vld [vmem:[#allocation3 + $0x28] sm:$0xff]
      %v2811 = vld [vmem:[#allocation3 + $0x30] sm:$0xff]
      %v2812 = vld [vmem:[#allocation3 + $0x38] sm:$0xff]
      %v2813 = vld [vmem:[#allocation3 + $0x40] sm:$0xff]
      %v2814 = vld [vmem:[#allocation3 + $0x48] sm:$0xff]
      %v2815 = vld [vmem:[#allocation3 + $0x50] sm:$0xff]
      %v2816 = vld [vmem:[#allocation3 + $0x58] sm:$0xff]
      %v2817 = vld [vmem:[#allocation3 + $0x60] sm:$0xff]
      %v2818 = vld [vmem:[#allocation3 + $0x68] sm:$0xff]
      %v2819 = vld [vmem:[#allocation3 + $0x70] sm:$0xff]
      %v2820 = vld [vmem:[#allocation3 + $0x78] sm:$0xff]
      %v2821 = vld [vmem:[#allocation3 + $0x80] sm:$0xff]
      %v2822 = vld [vmem:[#allocation3 + $0x88] sm:$0xff]
      %v2823 = vld [vmem:[#allocation3 + $0x90] sm:$0xff]
      %v2824 = vld [vmem:[#allocation3 + $0x98] sm:$0xff]
      %v2825 = vld [vmem:[#allocation3 + $0xa0] sm:$0xff]
      %v2826 = vld [vmem:[#allocation3 + $0xa8] sm:$0xff]
      %v2827 = vld [vmem:[#allocation3 + $0xb0] sm:$0xff]
      %v2828 = vld [vmem:[#allocation3 + $0xb8] sm:$0xff]
      %v2829 = vld [vmem:[#allocation3 + $0xc0] sm:$0xff]
      %v2830 = vld [vmem:[#allocation3 + $0xc8] sm:$0xff]
      %v2831 = vld [vmem:[#allocation3 + $0xd0] sm:$0xff]
      %v2832 = vld [vmem:[#allocation3 + $0xd8] sm:$0xff]
      %v2833 = vld [vmem:[#allocation3 + $0xe0] sm:$0xff]
      %v2834 = vld [vmem:[#allocation3 + $0xe8] sm:$0xff]
      %v2835 = vld [vmem:[#allocation3 + $0xf0] sm:$0xff]
      %v2836 = vld [vmem:[#allocation3 + $0xf8] sm:$0xff]
      %v2837 = vld [vmem:[#allocation3 + $0x100] sm:$0xff]
      %v2838 = vld [vmem:[#allocation3 + $0x108] sm:$0xff]
      %v2839 = vld [vmem:[#allocation3 + $0x110] sm:$0xff]
      %v2840 = vld [vmem:[#allocation3 + $0x118] sm:$0xff]
      %v2841 = vld [vmem:[#allocation3 + $0x120] sm:$0x3]
      %v2842 = vld [vmem:[#allocation3 + $0x1] sm:$0xff]
      %v2843 = vld [vmem:[#allocation3 + $0x9] sm:$0xff]
      %v2844 = vld [vmem:[#allocation3 + $0x11] sm:$0xff]
      %v2845 = vld [vmem:[#allocation3 + $0x19] sm:$0xff]
      %v2846 = vld [vmem:[#allocation3 + $0x21] sm:$0xff]
      %v2847 = vld [vmem:[#allocation3 + $0x29] sm:$0xff]
      %v2848 = vld [vmem:[#allocation3 + $0x31] sm:$0xff]
      %v2849 = vld [vmem:[#allocation3 + $0x39] sm:$0xff]
      %v2850 = vld [vmem:[#allocation3 + $0x41] sm:$0xff]
      %v2851 = vld [vmem:[#allocation3 + $0x49] sm:$0xff]
      %v2852 = vld [vmem:[#allocation3 + $0x51] sm:$0xff]
      %v2853 = vld [vmem:[#allocation3 + $0x59] sm:$0xff]
      %v2854 = vld [vmem:[#allocation3 + $0x61] sm:$0xff]
      %v2855 = vld [vmem:[#allocation3 + $0x69] sm:$0xff]
      %v2856 = vld [vmem:[#allocation3 + $0x71] sm:$0xff]
      %v2857 = vld [vmem:[#allocation3 + $0x79] sm:$0xff]
      %v2858 = vld [vmem:[#allocation3 + $0x81] sm:$0xff]
      %v2859 = vld [vmem:[#allocation3 + $0x89] sm:$0xff]
      %v2860 = vld [vmem:[#allocation3 + $0x91] sm:$0xff]
      %v2861 = vld [vmem:[#allocation3 + $0x99] sm:$0xff]
      %v2862 = vld [vmem:[#allocation3 + $0xa1] sm:$0xff]
      %v2863 = vld [vmem:[#allocation3 + $0xa9] sm:$0xff]
      %v2864 = vld [vmem:[#allocation3 + $0xb1] sm:$0xff]
      %v2865 = vld [vmem:[#allocation3 + $0xb9] sm:$0xff]
      %v2866 = vld [vmem:[#allocation3 + $0xc1] sm:$0xff]
      %v2867 = vld [vmem:[#allocation3 + $0xc9] sm:$0xff]
      %v2868 = vld [vmem:[#allocation3 + $0xd1] sm:$0xff]
      %v2869 = vld [vmem:[#allocation3 + $0xd9] sm:$0xff]
      %v2870 = vld [vmem:[#allocation3 + $0xe1] sm:$0xff]
      %v2871 = vld [vmem:[#allocation3 + $0xe9] sm:$0xff]
      %v2872 = vld [vmem:[#allocation3 + $0xf1] sm:$0xff]
      %v2873 = vld [vmem:[#allocation3 + $0xf9] sm:$0xff]
      %v2874 = vld [vmem:[#allocation3 + $0x101] sm:$0xff]
      %v2875 = vld [vmem:[#allocation3 + $0x109] sm:$0xff]
      %v2876 = vld [vmem:[#allocation3 + $0x111] sm:$0xff]
      %v2877 = vld [vmem:[#allocation3 + $0x119] sm:$0xff]
      %v2878 = vld [vmem:[#allocation3 + $0x121] sm:$0x3]
      %v2879 = vld [vmem:[#allocation3 + $0x2] sm:$0xff]
      %v2880 = vld [vmem:[#allocation3 + $0xa] sm:$0xff]
      %v2881 = vld [vmem:[#allocation3 + $0x12] sm:$0xff]
      %v2882 = vld [vmem:[#allocation3 + $0x1a] sm:$0xff]
      %v2883 = vld [vmem:[#allocation3 + $0x22] sm:$0xff]
      %v2884 = vld [vmem:[#allocation3 + $0x2a] sm:$0xff]
      %v2885 = vld [vmem:[#allocation3 + $0x32] sm:$0xff]
      %v2886 = vld [vmem:[#allocation3 + $0x3a] sm:$0xff]
      %v2887 = vld [vmem:[#allocation3 + $0x42] sm:$0xff]
      %v2888 = vld [vmem:[#allocation3 + $0x4a] sm:$0xff]
      %v2889 = vld [vmem:[#allocation3 + $0x52] sm:$0xff]
      %v2890 = vld [vmem:[#allocation3 + $0x5a] sm:$0xff]
      %v2891 = vld [vmem:[#allocation3 + $0x62] sm:$0xff]
      %v2892 = vld [vmem:[#allocation3 + $0x6a] sm:$0xff]
      %v2893 = vld [vmem:[#allocation3 + $0x72] sm:$0xff]
      %v2894 = vld [vmem:[#allocation3 + $0x7a] sm:$0xff]
      %v2895 = vld [vmem:[#allocation3 + $0x82] sm:$0xff]
      %v2896 = vld [vmem:[#allocation3 + $0x8a] sm:$0xff]
      %v2897 = vld [vmem:[#allocation3 + $0x92] sm:$0xff]
      %v2898 = vld [vmem:[#allocation3 + $0x9a] sm:$0xff]
      %v2899 = vld [vmem:[#allocation3 + $0xa2] sm:$0xff]
      %v2900 = vld [vmem:[#allocation3 + $0xaa] sm:$0xff]
      %v2901 = vld [vmem:[#allocation3 + $0xb2] sm:$0xff]
      %v2902 = vld [vmem:[#allocation3 + $0xba] sm:$0xff]
      %v2903 = vld [vmem:[#allocation3 + $0xc2] sm:$0xff]
      %v2904 = vld [vmem:[#allocation3 + $0xca] sm:$0xff]
      %v2905 = vld [vmem:[#allocation3 + $0xd2] sm:$0xff]
      %v2906 = vld [vmem:[#allocation3 + $0xda] sm:$0xff]
      %v2907 = vld [vmem:[#allocation3 + $0xe2] sm:$0xff]
      %v2908 = vld [vmem:[#allocation3 + $0xea] sm:$0xff]
      %v2909 = vld [vmem:[#allocation3 + $0xf2] sm:$0xff]
      %v2910 = vld [vmem:[#allocation3 + $0xfa] sm:$0xff]
      %v2911 = vld [vmem:[#allocation3 + $0x102] sm:$0xff]
      %v2912 = vld [vmem:[#allocation3 + $0x10a] sm:$0xff]
      %v2913 = vld [vmem:[#allocation3 + $0x112] sm:$0xff]
      %v2914 = vld [vmem:[#allocation3 + $0x11a] sm:$0xff]
      %v2915 = vld [vmem:[#allocation3 + $0x122] sm:$0x3]
      %v2916 = vld [vmem:[#allocation3 + $0x122] sm:$0xff]
      %v2917 = vld [vmem:[#allocation3 + $0x12a] sm:$0xff]
      %v2918 = vld [vmem:[#allocation3 + $0x132] sm:$0x3]
      %v2919 = vld [vmem:[#allocation3 + $0x13] sm:$0xff]
      %v2920 = vld [vmem:[#allocation3 + $0x1b] sm:$0xff]
      %v2921 = vld [vmem:[#allocation3 + $0x23] sm:$0xff]
      %v2922 = vld [vmem:[#allocation3 + $0x2b] sm:$0xff]
      %v2923 = vld [vmem:[#allocation3 + $0x33] sm:$0xff]
      %v2924 = vld [vmem:[#allocation3 + $0x3b] sm:$0xff]
      %v2925 = vld [vmem:[#allocation3 + $0x43] sm:$0xff]
      %v2926 = vld [vmem:[#allocation3 + $0x4b] sm:$0xff]
      %v2927 = vld [vmem:[#allocation3 + $0x53] sm:$0xff]
      %v2928 = vld [vmem:[#allocation3 + $0x5b] sm:$0xff]
      %v2929 = vld [vmem:[#allocation3 + $0x63] sm:$0xff]
      %v2930 = vld [vmem:[#allocation3 + $0x6b] sm:$0xff]
      %v2931 = vld [vmem:[#allocation3 + $0x73] sm:$0xff]
      %v2932 = vld [vmem:[#allocation3 + $0x7b] sm:$0xff]
      %v2933 = vld [vmem:[#allocation3 + $0x83] sm:$0xff]
      %v2934 = vld [vmem:[#allocation3 + $0x8b] sm:$0xff]
      %v2935 = vld [vmem:[#allocation3 + $0x93] sm:$0xff]
      %v2936 = vld [vmem:[#allocation3 + $0x9b] sm:$0xff]
      %v2937 = vld [vmem:[#allocation3 + $0xa3] sm:$0xff]
      %v2938 = vld [vmem:[#allocation3 + $0xab] sm:$0xff]
      %v2939 = vld [vmem:[#allocation3 + $0xb3] sm:$0xff]
      %v2940 = vld [vmem:[#allocation3 + $0xbb] sm:$0xff]
      %v2941 = vld [vmem:[#allocation3 + $0xc3] sm:$0xff]
      %v2942 = vld [vmem:[#allocation3 + $0xcb] sm:$0xff]
      %v2943 = vld [vmem:[#allocation3 + $0xd3] sm:$0xff]
      %v2944 = vld [vmem:[#allocation3 + $0xdb] sm:$0xff]
      %v2945 = vld [vmem:[#allocation3 + $0xe3] sm:$0xff]
      %v2946 = vld [vmem:[#allocation3 + $0xeb] sm:$0xff]
      %v2947 = vld [vmem:[#allocation3 + $0xf3] sm:$0xff]
      %v2948 = vld [vmem:[#allocation3 + $0xfb] sm:$0xff]
      %v2949 = vld [vmem:[#allocation3 + $0x103] sm:$0xff]
      %v2950 = vld [vmem:[#allocation3 + $0x10b] sm:$0xff]
      %v2951 = vld [vmem:[#allocation3 + $0x113] sm:$0xff]
      %v2952 = vld [vmem:[#allocation3 + $0x11b] sm:$0xff]
      %v2953 = vld [vmem:[#allocation3 + $0x123] sm:$0xff]
      %v2954 = vld [vmem:[#allocation3 + $0x12b] sm:$0xff]
      %v2955 = vld [vmem:[#allocation3 + $0x133] sm:$0x3]
      %v2956 = vld [vmem:[#allocation3 + $0x14] sm:$0xff]
      %v2957 = vld [vmem:[#allocation3 + $0x1c] sm:$0xff]
      %v2958 = vld [vmem:[#allocation3 + $0x24] sm:$0xff]
      %v2959 = vld [vmem:[#allocation3 + $0x2c] sm:$0xff]
      %v2960 = vld [vmem:[#allocation3 + $0x34] sm:$0xff]
      %v2961 = vld [vmem:[#allocation3 + $0x3c] sm:$0xff]
      %v2962 = vld [vmem:[#allocation3 + $0x44] sm:$0xff]
      %v2963 = vld [vmem:[#allocation3 + $0x4c] sm:$0xff]
      %v2964 = vld [vmem:[#allocation3 + $0x54] sm:$0xff]
      %v2965 = vld [vmem:[#allocation3 + $0x5c] sm:$0xff]
      %v2966 = vld [vmem:[#allocation3 + $0x64] sm:$0xff]
      %v2967 = vld [vmem:[#allocation3 + $0x6c] sm:$0xff]
      %v2968 = vld [vmem:[#allocation3 + $0x74] sm:$0xff]
      %v2969 = vld [vmem:[#allocation3 + $0x7c] sm:$0xff]
      %v2970 = vld [vmem:[#allocation3 + $0x84] sm:$0xff]
      %v2971 = vld [vmem:[#allocation3 + $0x8c] sm:$0xff]
      %v2972 = vld [vmem:[#allocation3 + $0x94] sm:$0xff]
      %v2973 = vld [vmem:[#allocation3 + $0x9c] sm:$0xff]
      %v2974 = vld [vmem:[#allocation3 + $0xa4] sm:$0xff]
      %v2975 = vld [vmem:[#allocation3 + $0xac] sm:$0xff]
      %v2976 = vld [vmem:[#allocation3 + $0xb4] sm:$0xff]
      %v2977 = vld [vmem:[#allocation3 + $0xbc] sm:$0xff]
      %v2978 = vld [vmem:[#allocation3 + $0xc4] sm:$0xff]
      %v2979 = vld [vmem:[#allocation3 + $0xcc] sm:$0xff]
      %v2980 = vld [vmem:[#allocation3 + $0xd4] sm:$0xff]
      %v2981 = vld [vmem:[#allocation3 + $0xdc] sm:$0xff]
      %v2982 = vld [vmem:[#allocation3 + $0xe4] sm:$0xff]
      %v2983 = vld [vmem:[#allocation3 + $0xec] sm:$0xff]
      %v2984 = vld [vmem:[#allocation3 + $0xf4] sm:$0xff]
      %v2985 = vld [vmem:[#allocation3 + $0xfc] sm:$0xff]
      %v2986 = vld [vmem:[#allocation3 + $0x104] sm:$0xff]
      %v2987 = vld [vmem:[#allocation3 + $0x10c] sm:$0xff]
      %v2988 = vld [vmem:[#allocation3 + $0x114] sm:$0xff]
      %v2989 = vld [vmem:[#allocation3 + $0x11c] sm:$0xff]
      %v2990 = vld [vmem:[#allocation3 + $0x124] sm:$0xff]
      %v2991 = vld [vmem:[#allocation3 + $0x12c] sm:$0xff]
      %v2992 = vld [vmem:[#allocation3 + $0x134] sm:$0x3]
      %v2993 = vld [vmem:[#allocation3 + $0x134] sm:$0xff]
      %v2994 = vld [vmem:[#allocation3 + $0x13c] sm:$0xff]
      %v2995 = vld [vmem:[#allocation3 + $0x144] sm:$0x3]
      %v2996 = vld [vmem:[#allocation3 + $0x25] sm:$0xff]
      %v2997 = vld [vmem:[#allocation3 + $0x2d] sm:$0xff]
      %v2998 = vld [vmem:[#allocation3 + $0x35] sm:$0xff]
      %v2999 = vld [vmem:[#allocation3 + $0x3d] sm:$0xff]
      %v3000 = vld [vmem:[#allocation3 + $0x45] sm:$0xff]
      %v3001 = vld [vmem:[#allocation3 + $0x4d] sm:$0xff]
      %v3002 = vld [vmem:[#allocation3 + $0x55] sm:$0xff]
      %v3003 = vld [vmem:[#allocation3 + $0x5d] sm:$0xff]
      %v3004 = vld [vmem:[#allocation3 + $0x65] sm:$0xff]
      %v3005 = vld [vmem:[#allocation3 + $0x6d] sm:$0xff]
      %v3006 = vld [vmem:[#allocation3 + $0x75] sm:$0xff]
      %v3007 = vld [vmem:[#allocation3 + $0x7d] sm:$0xff]
      %v3008 = vld [vmem:[#allocation3 + $0x85] sm:$0xff]
      %v3009 = vld [vmem:[#allocation3 + $0x8d] sm:$0xff]
      %v3010 = vld [vmem:[#allocation3 + $0x95] sm:$0xff]
      %v3011 = vld [vmem:[#allocation3 + $0x9d] sm:$0xff]
      %v3012 = vld [vmem:[#allocation3 + $0xa5] sm:$0xff]
      %v3013 = vld [vmem:[#allocation3 + $0xad] sm:$0xff]
      %v3014 = vld [vmem:[#allocation3 + $0xb5] sm:$0xff]
      %v3015 = vld [vmem:[#allocation3 + $0xbd] sm:$0xff]
      %v3016 = vld [vmem:[#allocation3 + $0xc5] sm:$0xff]
      %v3017 = vld [vmem:[#allocation3 + $0xcd] sm:$0xff]
      %v3018 = vld [vmem:[#allocation3 + $0xd5] sm:$0xff]
      %v3019 = vld [vmem:[#allocation3 + $0xdd] sm:$0xff]
      %v3020 = vld [vmem:[#allocation3 + $0xe5] sm:$0xff]
      %v3021 = vld [vmem:[#allocation3 + $0xed] sm:$0xff]
      %v3022 = vld [vmem:[#allocation3 + $0xf5] sm:$0xff]
      %v3023 = vld [vmem:[#allocation3 + $0xfd] sm:$0xff]
      %v3024 = vld [vmem:[#allocation3 + $0x105] sm:$0xff]
      %v3025 = vld [vmem:[#allocation3 + $0x10d] sm:$0xff]
      %v3026 = vld [vmem:[#allocation3 + $0x115] sm:$0xff]
      %v3027 = vld [vmem:[#allocation3 + $0x11d] sm:$0xff]
      %v3028 = vld [vmem:[#allocation3 + $0x125] sm:$0xff]
      %v3029 = vld [vmem:[#allocation3 + $0x12d] sm:$0xff]
      %v3030 = vld [vmem:[#allocation3 + $0x135] sm:$0xff]
      %v3031 = vld [vmem:[#allocation3 + $0x13d] sm:$0xff]
      %v3032 = vld [vmem:[#allocation3 + $0x145] sm:$0x3]
      %v3033 = vld [vmem:[#allocation3 + $0x26] sm:$0xff]
      %v3034 = vld [vmem:[#allocation3 + $0x2e] sm:$0xff]
      %v3035 = vld [vmem:[#allocation3 + $0x36] sm:$0xff]
      %v3036 = vld [vmem:[#allocation3 + $0x3e] sm:$0xff]
      %v3037 = vld [vmem:[#allocation3 + $0x46] sm:$0xff]
      %v3038 = vld [vmem:[#allocation3 + $0x4e] sm:$0xff]
      %v3039 = vld [vmem:[#allocation3 + $0x56] sm:$0xff]
      %v3040 = vld [vmem:[#allocation3 + $0x5e] sm:$0xff]
      %v3041 = vld [vmem:[#allocation3 + $0x66] sm:$0xff]
      %v3042 = vld [vmem:[#allocation3 + $0x6e] sm:$0xff]
      %v3043 = vld [vmem:[#allocation3 + $0x76] sm:$0xff]
      %v3044 = vld [vmem:[#allocation3 + $0x7e] sm:$0xff]
      %v3045 = vld [vmem:[#allocation3 + $0x86] sm:$0xff]
      %v3046 = vld [vmem:[#allocation3 + $0x8e] sm:$0xff]
      %v3047 = vld [vmem:[#allocation3 + $0x96] sm:$0xff]
      %v3048 = vld [vmem:[#allocation3 + $0x9e] sm:$0xff]
      %v3049 = vld [vmem:[#allocation3 + $0xa6] sm:$0xff]
      %v3050 = vld [vmem:[#allocation3 + $0xae] sm:$0xff]
      %v3051 = vld [vmem:[#allocation3 + $0xb6] sm:$0xff]
      %v3052 = vld [vmem:[#allocation3 + $0xbe] sm:$0xff]
      %v3053 = vld [vmem:[#allocation3 + $0xc6] sm:$0xff]
      %v3054 = vld [vmem:[#allocation3 + $0xce] sm:$0xff]
      %v3055 = vld [vmem:[#allocation3 + $0xd6] sm:$0xff]
      %v3056 = vld [vmem:[#allocation3 + $0xde] sm:$0xff]
      %v3057 = vld [vmem:[#allocation3 + $0xe6] sm:$0xff]
      %v3058 = vld [vmem:[#allocation3 + $0xee] sm:$0xff]
      %v3059 = vld [vmem:[#allocation3 + $0xf6] sm:$0xff]
      %v3060 = vld [vmem:[#allocation3 + $0xfe] sm:$0xff]
      %v3061 = vld [vmem:[#allocation3 + $0x106] sm:$0xff]
      %v3062 = vld [vmem:[#allocation3 + $0x10e] sm:$0xff]
      %v3063 = vld [vmem:[#allocation3 + $0x116] sm:$0xff]
      %v3064 = vld [vmem:[#allocation3 + $0x11e] sm:$0xff]
      %v3065 = vld [vmem:[#allocation3 + $0x126] sm:$0xff]
      %v3066 = vld [vmem:[#allocation3 + $0x12e] sm:$0xff]
      %v3067 = vld [vmem:[#allocation3 + $0x136] sm:$0xff]
      %v3068 = vld [vmem:[#allocation3 + $0x13e] sm:$0xff]
      %v3069 = vld [vmem:[#allocation3 + $0x146] sm:$0x3]
      %v3070 = vld [vmem:[#allocation2 + $0x13] sm:$0xff]
      %v3071 = vld [vmem:[#allocation2 + $0x1b] sm:$0xff]
      %v3072 = vld [vmem:[#allocation2 + $0x23] sm:$0xff]
      %v3073 = vld [vmem:[#allocation2 + $0x2b] sm:$0xff]
      %v3074 = vld [vmem:[#allocation2 + $0x33] sm:$0xff]
      %v3075 = vld [vmem:[#allocation2 + $0x3b] sm:$0xff]
      %v3076 = vld [vmem:[#allocation2 + $0x43] sm:$0xff]
      %v3077 = vld [vmem:[#allocation2 + $0x4b] sm:$0xff]
      %v3078 = vld [vmem:[#allocation2 + $0x53] sm:$0xff]
      %v3079 = vld [vmem:[#allocation2 + $0x5b] sm:$0xff]
      %v3080 = vld [vmem:[#allocation2 + $0x63] sm:$0xff]
      %v3081 = vld [vmem:[#allocation2 + $0x6b] sm:$0xff]
      %v3082 = vld [vmem:[#allocation2 + $0x73] sm:$0xff]
      %v3083 = vld [vmem:[#allocation2 + $0x7b] sm:$0xff]
      %v3084 = vld [vmem:[#allocation2 + $0x83] sm:$0xff]
      %v3085 = vld [vmem:[#allocation2 + $0x8b] sm:$0xff]
      %v3086 = vld [vmem:[#allocation2 + $0x93] sm:$0xff]
      %v3087 = vld [vmem:[#allocation2 + $0x9b] sm:$0xff]
      %v3088 = vld [vmem:[#allocation2 + $0xa3] sm:$0xff]
      %v3089 = vld [vmem:[#allocation2 + $0xab] sm:$0xff]
      %v3090 = vld [vmem:[#allocation2 + $0xb3] sm:$0xff]
      %v3091 = vld [vmem:[#allocation2 + $0xbb] sm:$0xff]
      %v3092 = vld [vmem:[#allocation2 + $0xc3] sm:$0xff]
      %v3093 = vld [vmem:[#allocation2 + $0xcb] sm:$0xff]
      %v3094 = vld [vmem:[#allocation2 + $0xd3] sm:$0xff]
      %v3095 = vld [vmem:[#allocation2 + $0xdb] sm:$0xff]
      %v3096 = vld [vmem:[#allocation2 + $0xe3] sm:$0xff]
      %v3097 = vld [vmem:[#allocation2 + $0xeb] sm:$0xff]
      %v3098 = vld [vmem:[#allocation2 + $0xf3] sm:$0xff]
      %v3099 = vld [vmem:[#allocation2 + $0xfb] sm:$0xff]
      %v3100 = vld [vmem:[#allocation2 + $0x103] sm:$0xff]
      %v3101 = vld [vmem:[#allocation2 + $0x10b] sm:$0xff]
      %v3102 = vld [vmem:[#allocation2 + $0x113] sm:$0xff]
      %v3103 = vld [vmem:[#allocation2 + $0x11b] sm:$0xff]
      %v3104 = vld [vmem:[#allocation2 + $0x123] sm:$0xff]
      %v3105 = vld [vmem:[#allocation2 + $0x12b] sm:$0xff]
      %v3106 = vld [vmem:[#allocation2 + $0x133] sm:$0x3]
      %3144 = vrot.lane.b32.xlu0 %v2842, 8
      %v3145 = vpop.permute.xlu0 %3144
      %3146 = vrot.lane.b32.xlu0 %v2843, 8
      %v3147 = vpop.permute.xlu0 %3146
      %3148 = vrot.lane.b32.xlu0 %v2844, 8
      %v3149 = vpop.permute.xlu0 %3148
      %3150 = vrot.lane.b32.xlu0 %v2845, 8
      %v3151 = vpop.permute.xlu0 %3150
      %3152 = vrot.lane.b32.xlu0 %v2846, 8
      %v3153 = vpop.permute.xlu0 %3152
      %3154 = vrot.lane.b32.xlu0 %v2847, 8
      %v3155 = vpop.permute.xlu0 %3154
      %3156 = vrot.lane.b32.xlu0 %v2848, 8
      %v3157 = vpop.permute.xlu0 %3156
      %3158 = vrot.lane.b32.xlu0 %v2849, 8
      %v3159 = vpop.permute.xlu0 %3158
      %3160 = vrot.lane.b32.xlu0 %v2850, 8
      %v3161 = vpop.permute.xlu0 %3160
      %3162 = vrot.lane.b32.xlu0 %v2851, 8
      %v3163 = vpop.permute.xlu0 %3162
      %3164 = vrot.lane.b32.xlu0 %v2852, 8
      %v3165 = vpop.permute.xlu0 %3164
      %3166 = vrot.lane.b32.xlu0 %v2853, 8
      %v3167 = vpop.permute.xlu0 %3166
      %3168 = vrot.lane.b32.xlu0 %v2854, 8
      %v3169 = vpop.permute.xlu0 %3168
      %3170 = vrot.lane.b32.xlu0 %v2855, 8
      %v3171 = vpop.permute.xlu0 %3170
      %3172 = vrot.lane.b32.xlu0 %v2856, 8
      %v3173 = vpop.permute.xlu0 %3172
      %3174 = vrot.lane.b32.xlu0 %v2857, 8
      %v3175 = vpop.permute.xlu0 %3174
      %3176 = vrot.lane.b32.xlu0 %v2858, 8
      %v3177 = vpop.permute.xlu0 %3176
      %3178 = vrot.lane.b32.xlu0 %v2859, 8
      %v3179 = vpop.permute.xlu0 %3178
      %3180 = vrot.lane.b32.xlu0 %v2860, 8
      %v3181 = vpop.permute.xlu0 %3180
      %3182 = vrot.lane.b32.xlu0 %v2861, 8
      %v3183 = vpop.permute.xlu0 %3182
      %3184 = vrot.lane.b32.xlu0 %v2862, 8
      %v3185 = vpop.permute.xlu0 %3184
      %3186 = vrot.lane.b32.xlu0 %v2863, 8
      %v3187 = vpop.permute.xlu0 %3186
      %3188 = vrot.lane.b32.xlu0 %v2864, 8
      %v3189 = vpop.permute.xlu0 %3188
      %3190 = vrot.lane.b32.xlu0 %v2865, 8
      %v3191 = vpop.permute.xlu0 %3190
      %3192 = vrot.lane.b32.xlu0 %v2866, 8
      %v3193 = vpop.permute.xlu0 %3192
      %3194 = vrot.lane.b32.xlu0 %v2867, 8
      %v3195 = vpop.permute.xlu0 %3194
      %3196 = vrot.lane.b32.xlu0 %v2868, 8
      %v3197 = vpop.permute.xlu0 %3196
      %3198 = vrot.lane.b32.xlu0 %v2869, 8
      %v3199 = vpop.permute.xlu0 %3198
      %3200 = vrot.lane.b32.xlu0 %v2870, 8
      %v3201 = vpop.permute.xlu0 %3200
      %3202 = vrot.lane.b32.xlu0 %v2871, 8
      %v3203 = vpop.permute.xlu0 %3202
      %3204 = vrot.lane.b32.xlu0 %v2872, 8
      %v3205 = vpop.permute.xlu0 %3204
      %3206 = vrot.lane.b32.xlu0 %v2873, 8
      %v3207 = vpop.permute.xlu0 %3206
      %3208 = vrot.lane.b32.xlu0 %v2874, 8
      %v3209 = vpop.permute.xlu0 %3208
      %3210 = vrot.lane.b32.xlu0 %v2875, 8
      %v3211 = vpop.permute.xlu0 %3210
      %3212 = vrot.lane.b32.xlu0 %v2876, 8
      %v3213 = vpop.permute.xlu0 %3212
      %3214 = vrot.lane.b32.xlu0 %v2877, 8
      %v3215 = vpop.permute.xlu0 %3214
      %3216 = vrot.lane.b32.xlu0 %v2878, 8
      %v3217 = vpop.permute.xlu0 %3216
      %3292 = vrot.lane.b32.xlu0 %v2879, 16
      %v3293 = vpop.permute.xlu0 %3292
      %3294 = vrot.lane.b32.xlu0 %v2880, 16
      %v3295 = vpop.permute.xlu0 %3294
      %3296 = vrot.lane.b32.xlu0 %v2881, 16
      %v3297 = vpop.permute.xlu0 %3296
      %3298 = vrot.lane.b32.xlu0 %v2882, 16
      %v3299 = vpop.permute.xlu0 %3298
      %3300 = vrot.lane.b32.xlu0 %v2883, 16
      %v3301 = vpop.permute.xlu0 %3300
      %3302 = vrot.lane.b32.xlu0 %v2884, 16
      %v3303 = vpop.permute.xlu0 %3302
      %3304 = vrot.lane.b32.xlu0 %v2885, 16
      %v3305 = vpop.permute.xlu0 %3304
      %3306 = vrot.lane.b32.xlu0 %v2886, 16
      %v3307 = vpop.permute.xlu0 %3306
      %3308 = vrot.lane.b32.xlu0 %v2887, 16
      %v3309 = vpop.permute.xlu0 %3308
      %3310 = vrot.lane.b32.xlu0 %v2888, 16
      %v3311 = vpop.permute.xlu0 %3310
      %3312 = vrot.lane.b32.xlu0 %v2889, 16
      %v3313 = vpop.permute.xlu0 %3312
      %3314 = vrot.lane.b32.xlu0 %v2890, 16
      %v3315 = vpop.permute.xlu0 %3314
      %3316 = vrot.lane.b32.xlu0 %v2891, 16
      %v3317 = vpop.permute.xlu0 %3316
      %3318 = vrot.lane.b32.xlu0 %v2892, 16
      %v3319 = vpop.permute.xlu0 %3318
      %3320 = vrot.lane.b32.xlu0 %v2893, 16
      %v3321 = vpop.permute.xlu0 %3320
      %3322 = vrot.lane.b32.xlu0 %v2894, 16
      %v3323 = vpop.permute.xlu0 %3322
      %3324 = vrot.lane.b32.xlu0 %v2895, 16
      %v3325 = vpop.permute.xlu0 %3324
      %3326 = vrot.lane.b32.xlu0 %v2896, 16
      %v3327 = vpop.permute.xlu0 %3326
      %3328 = vrot.lane.b32.xlu0 %v2897, 16
      %v3329 = vpop.permute.xlu0 %3328
      %3330 = vrot.lane.b32.xlu0 %v2898, 16
      %v3331 = vpop.permute.xlu0 %3330
      %3332 = vrot.lane.b32.xlu0 %v2899, 16
      %v3333 = vpop.permute.xlu0 %3332
      %3334 = vrot.lane.b32.xlu0 %v2900, 16
      %v3335 = vpop.permute.xlu0 %3334
      %3336 = vrot.lane.b32.xlu0 %v2901, 16
      %v3337 = vpop.permute.xlu0 %3336
      %3338 = vrot.lane.b32.xlu0 %v2902, 16
      %v3339 = vpop.permute.xlu0 %3338
      %3340 = vrot.lane.b32.xlu0 %v2903, 16
      %v3341 = vpop.permute.xlu0 %3340
      %3342 = vrot.lane.b32.xlu0 %v2904, 16
      %v3343 = vpop.permute.xlu0 %3342
      %3344 = vrot.lane.b32.xlu0 %v2905, 16
      %v3345 = vpop.permute.xlu0 %3344
      %3346 = vrot.lane.b32.xlu0 %v2906, 16
      %v3347 = vpop.permute.xlu0 %3346
      %3348 = vrot.lane.b32.xlu0 %v2907, 16
      %v3349 = vpop.permute.xlu0 %3348
      %3350 = vrot.lane.b32.xlu0 %v2908, 16
      %v3351 = vpop.permute.xlu0 %3350
      %3352 = vrot.lane.b32.xlu0 %v2909, 16
      %v3353 = vpop.permute.xlu0 %3352
      %3354 = vrot.lane.b32.xlu0 %v2910, 16
      %v3355 = vpop.permute.xlu0 %3354
      %3356 = vrot.lane.b32.xlu0 %v2911, 16
      %v3357 = vpop.permute.xlu0 %3356
      %3358 = vrot.lane.b32.xlu0 %v2912, 16
      %v3359 = vpop.permute.xlu0 %3358
      %3360 = vrot.lane.b32.xlu0 %v2913, 16
      %v3361 = vpop.permute.xlu0 %3360
      %3362 = vrot.lane.b32.xlu0 %v2914, 16
      %v3363 = vpop.permute.xlu0 %3362
      %3364 = vrot.lane.b32.xlu0 %v2915, 16
      %v3365 = vpop.permute.xlu0 %3364
      %3406 = vrot.lane.b32.xlu0 %v2881, 24
      %v3407 = vpop.permute.xlu0 %3406
      %3408 = vrot.lane.b32.xlu0 %v2882, 24
      %v3409 = vpop.permute.xlu0 %3408
      %3410 = vrot.lane.b32.xlu0 %v2883, 24
      %v3411 = vpop.permute.xlu0 %3410
      %3412 = vrot.lane.b32.xlu0 %v2884, 24
      %v3413 = vpop.permute.xlu0 %3412
      %3414 = vrot.lane.b32.xlu0 %v2885, 24
      %v3415 = vpop.permute.xlu0 %3414
      %3416 = vrot.lane.b32.xlu0 %v2886, 24
      %v3417 = vpop.permute.xlu0 %3416
      %3418 = vrot.lane.b32.xlu0 %v2887, 24
      %v3419 = vpop.permute.xlu0 %3418
      %3420 = vrot.lane.b32.xlu0 %v2888, 24
      %v3421 = vpop.permute.xlu0 %3420
      %3422 = vrot.lane.b32.xlu0 %v2889, 24
      %v3423 = vpop.permute.xlu0 %3422
      %3424 = vrot.lane.b32.xlu0 %v2890, 24
      %v3425 = vpop.permute.xlu0 %3424
      %3426 = vrot.lane.b32.xlu0 %v2891, 24
      %v3427 = vpop.permute.xlu0 %3426
      %3428 = vrot.lane.b32.xlu0 %v2892, 24
      %v3429 = vpop.permute.xlu0 %3428
      %3430 = vrot.lane.b32.xlu0 %v2893, 24
      %v3431 = vpop.permute.xlu0 %3430
      %3432 = vrot.lane.b32.xlu0 %v2894, 24
      %v3433 = vpop.permute.xlu0 %3432
      %3434 = vrot.lane.b32.xlu0 %v2895, 24
      %v3435 = vpop.permute.xlu0 %3434
      %3436 = vrot.lane.b32.xlu0 %v2896, 24
      %v3437 = vpop.permute.xlu0 %3436
      %3438 = vrot.lane.b32.xlu0 %v2897, 24
      %v3439 = vpop.permute.xlu0 %3438
      %3440 = vrot.lane.b32.xlu0 %v2898, 24
      %v3441 = vpop.permute.xlu0 %3440
      %3442 = vrot.lane.b32.xlu0 %v2899, 24
      %v3443 = vpop.permute.xlu0 %3442
      %3444 = vrot.lane.b32.xlu0 %v2900, 24
      %v3445 = vpop.permute.xlu0 %3444
      %3446 = vrot.lane.b32.xlu0 %v2901, 24
      %v3447 = vpop.permute.xlu0 %3446
      %3448 = vrot.lane.b32.xlu0 %v2902, 24
      %v3449 = vpop.permute.xlu0 %3448
      %3450 = vrot.lane.b32.xlu0 %v2903, 24
      %v3451 = vpop.permute.xlu0 %3450
      %3452 = vrot.lane.b32.xlu0 %v2904, 24
      %v3453 = vpop.permute.xlu0 %3452
      %3454 = vrot.lane.b32.xlu0 %v2905, 24
      %v3455 = vpop.permute.xlu0 %3454
      %3456 = vrot.lane.b32.xlu0 %v2906, 24
      %v3457 = vpop.permute.xlu0 %3456
      %3458 = vrot.lane.b32.xlu0 %v2907, 24
      %v3459 = vpop.permute.xlu0 %3458
      %3460 = vrot.lane.b32.xlu0 %v2908, 24
      %v3461 = vpop.permute.xlu0 %3460
      %3462 = vrot.lane.b32.xlu0 %v2909, 24
      %v3463 = vpop.permute.xlu0 %3462
      %3464 = vrot.lane.b32.xlu0 %v2910, 24
      %v3465 = vpop.permute.xlu0 %3464
      %3466 = vrot.lane.b32.xlu0 %v2911, 24
      %v3467 = vpop.permute.xlu0 %3466
      %3468 = vrot.lane.b32.xlu0 %v2912, 24
      %v3469 = vpop.permute.xlu0 %3468
      %3470 = vrot.lane.b32.xlu0 %v2913, 24
      %v3471 = vpop.permute.xlu0 %3470
      %3472 = vrot.lane.b32.xlu0 %v2914, 24
      %v3473 = vpop.permute.xlu0 %3472
      %3474 = vrot.lane.b32.xlu0 %v2916, 24
      %v3475 = vpop.permute.xlu0 %3474
      %3476 = vrot.lane.b32.xlu0 %v2917, 24
      %v3477 = vpop.permute.xlu0 %3476
      %3478 = vrot.lane.b32.xlu0 %v2918, 24
      %v3479 = vpop.permute.xlu0 %3478
      %3554 = vrot.lane.b32.xlu0 %v2919, 32
      %v3555 = vpop.permute.xlu0 %3554
      %3556 = vrot.lane.b32.xlu0 %v2920, 32
      %v3557 = vpop.permute.xlu0 %3556
      %3558 = vrot.lane.b32.xlu0 %v2921, 32
      %v3559 = vpop.permute.xlu0 %3558
      %3560 = vrot.lane.b32.xlu0 %v2922, 32
      %v3561 = vpop.permute.xlu0 %3560
      %3562 = vrot.lane.b32.xlu0 %v2923, 32
      %v3563 = vpop.permute.xlu0 %3562
      %3564 = vrot.lane.b32.xlu0 %v2924, 32
      %v3565 = vpop.permute.xlu0 %3564
      %3566 = vrot.lane.b32.xlu0 %v2925, 32
      %v3567 = vpop.permute.xlu0 %3566
      %3568 = vrot.lane.b32.xlu0 %v2926, 32
      %v3569 = vpop.permute.xlu0 %3568
      %3570 = vrot.lane.b32.xlu0 %v2927, 32
      %v3571 = vpop.permute.xlu0 %3570
      %3572 = vrot.lane.b32.xlu0 %v2928, 32
      %v3573 = vpop.permute.xlu0 %3572
      %3574 = vrot.lane.b32.xlu0 %v2929, 32
      %v3575 = vpop.permute.xlu0 %3574
      %3576 = vrot.lane.b32.xlu0 %v2930, 32
      %v3577 = vpop.permute.xlu0 %3576
      %3578 = vrot.lane.b32.xlu0 %v2931, 32
      %v3579 = vpop.permute.xlu0 %3578
      %3580 = vrot.lane.b32.xlu0 %v2932, 32
      %v3581 = vpop.permute.xlu0 %3580
      %3582 = vrot.lane.b32.xlu0 %v2933, 32
      %v3583 = vpop.permute.xlu0 %3582
      %3584 = vrot.lane.b32.xlu0 %v2934, 32
      %v3585 = vpop.permute.xlu0 %3584
      %3586 = vrot.lane.b32.xlu0 %v2935, 32
      %v3587 = vpop.permute.xlu0 %3586
      %3588 = vrot.lane.b32.xlu0 %v2936, 32
      %v3589 = vpop.permute.xlu0 %3588
      %3590 = vrot.lane.b32.xlu0 %v2937, 32
      %v3591 = vpop.permute.xlu0 %3590
      %3592 = vrot.lane.b32.xlu0 %v2938, 32
      %v3593 = vpop.permute.xlu0 %3592
      %3594 = vrot.lane.b32.xlu0 %v2939, 32
      %v3595 = vpop.permute.xlu0 %3594
      %3596 = vrot.lane.b32.xlu0 %v2940, 32
      %v3597 = vpop.permute.xlu0 %3596
      %3598 = vrot.lane.b32.xlu0 %v2941, 32
      %v3599 = vpop.permute.xlu0 %3598
      %3600 = vrot.lane.b32.xlu0 %v2942, 32
      %v3601 = vpop.permute.xlu0 %3600
      %3602 = vrot.lane.b32.xlu0 %v2943, 32
      %v3603 = vpop.permute.xlu0 %3602
      %3604 = vrot.lane.b32.xlu0 %v2944, 32
      %v3605 = vpop.permute.xlu0 %3604
      %3606 = vrot.lane.b32.xlu0 %v2945, 32
      %v3607 = vpop.permute.xlu0 %3606
      %3608 = vrot.lane.b32.xlu0 %v2946, 32
      %v3609 = vpop.permute.xlu0 %3608
      %3610 = vrot.lane.b32.xlu0 %v2947, 32
      %v3611 = vpop.permute.xlu0 %3610
      %3612 = vrot.lane.b32.xlu0 %v2948, 32
      %v3613 = vpop.permute.xlu0 %3612
      %3614 = vrot.lane.b32.xlu0 %v2949, 32
      %v3615 = vpop.permute.xlu0 %3614
      %3616 = vrot.lane.b32.xlu0 %v2950, 32
      %v3617 = vpop.permute.xlu0 %3616
      %3618 = vrot.lane.b32.xlu0 %v2951, 32
      %v3619 = vpop.permute.xlu0 %3618
      %3620 = vrot.lane.b32.xlu0 %v2952, 32
      %v3621 = vpop.permute.xlu0 %3620
      %3622 = vrot.lane.b32.xlu0 %v2953, 32
      %v3623 = vpop.permute.xlu0 %3622
      %3624 = vrot.lane.b32.xlu0 %v2954, 32
      %v3625 = vpop.permute.xlu0 %3624
      %3626 = vrot.lane.b32.xlu0 %v2955, 32
      %v3627 = vpop.permute.xlu0 %3626
      %3702 = vrot.lane.b32.xlu0 %v2956, 40
      %v3703 = vpop.permute.xlu0 %3702
      %3704 = vrot.lane.b32.xlu0 %v2957, 40
      %v3705 = vpop.permute.xlu0 %3704
      %3706 = vrot.lane.b32.xlu0 %v2958, 40
      %v3707 = vpop.permute.xlu0 %3706
      %3708 = vrot.lane.b32.xlu0 %v2959, 40
      %v3709 = vpop.permute.xlu0 %3708
      %3710 = vrot.lane.b32.xlu0 %v2960, 40
      %v3711 = vpop.permute.xlu0 %3710
      %3712 = vrot.lane.b32.xlu0 %v2961, 40
      %v3713 = vpop.permute.xlu0 %3712
      %3714 = vrot.lane.b32.xlu0 %v2962, 40
      %v3715 = vpop.permute.xlu0 %3714
      %3716 = vrot.lane.b32.xlu0 %v2963, 40
      %v3717 = vpop.permute.xlu0 %3716
      %3718 = vrot.lane.b32.xlu0 %v2964, 40
      %v3719 = vpop.permute.xlu0 %3718
      %3720 = vrot.lane.b32.xlu0 %v2965, 40
      %v3721 = vpop.permute.xlu0 %3720
      %3722 = vrot.lane.b32.xlu0 %v2966, 40
      %v3723 = vpop.permute.xlu0 %3722
      %3724 = vrot.lane.b32.xlu0 %v2967, 40
      %v3725 = vpop.permute.xlu0 %3724
      %3726 = vrot.lane.b32.xlu0 %v2968, 40
      %v3727 = vpop.permute.xlu0 %3726
      %3728 = vrot.lane.b32.xlu0 %v2969, 40
      %v3729 = vpop.permute.xlu0 %3728
      %3730 = vrot.lane.b32.xlu0 %v2970, 40
      %v3731 = vpop.permute.xlu0 %3730
      %3732 = vrot.lane.b32.xlu0 %v2971, 40
      %v3733 = vpop.permute.xlu0 %3732
      %3734 = vrot.lane.b32.xlu0 %v2972, 40
      %v3735 = vpop.permute.xlu0 %3734
      %3736 = vrot.lane.b32.xlu0 %v2973, 40
      %v3737 = vpop.permute.xlu0 %3736
      %3738 = vrot.lane.b32.xlu0 %v2974, 40
      %v3739 = vpop.permute.xlu0 %3738
      %3740 = vrot.lane.b32.xlu0 %v2975, 40
      %v3741 = vpop.permute.xlu0 %3740
      %3742 = vrot.lane.b32.xlu0 %v2976, 40
      %v3743 = vpop.permute.xlu0 %3742
      %3744 = vrot.lane.b32.xlu0 %v2977, 40
      %v3745 = vpop.permute.xlu0 %3744
      %3746 = vrot.lane.b32.xlu0 %v2978, 40
      %v3747 = vpop.permute.xlu0 %3746
      %3748 = vrot.lane.b32.xlu0 %v2979, 40
      %v3749 = vpop.permute.xlu0 %3748
      %3750 = vrot.lane.b32.xlu0 %v2980, 40
      %v3751 = vpop.permute.xlu0 %3750
      %3752 = vrot.lane.b32.xlu0 %v2981, 40
      %v3753 = vpop.permute.xlu0 %3752
      %3754 = vrot.lane.b32.xlu0 %v2982, 40
      %v3755 = vpop.permute.xlu0 %3754
      %3756 = vrot.lane.b32.xlu0 %v2983, 40
      %v3757 = vpop.permute.xlu0 %3756
      %3758 = vrot.lane.b32.xlu0 %v2984, 40
      %v3759 = vpop.permute.xlu0 %3758
      %3760 = vrot.lane.b32.xlu0 %v2985, 40
      %v3761 = vpop.permute.xlu0 %3760
      %3762 = vrot.lane.b32.xlu0 %v2986, 40
      %v3763 = vpop.permute.xlu0 %3762
      %3764 = vrot.lane.b32.xlu0 %v2987, 40
      %v3765 = vpop.permute.xlu0 %3764
      %3766 = vrot.lane.b32.xlu0 %v2988, 40
      %v3767 = vpop.permute.xlu0 %3766
      %3768 = vrot.lane.b32.xlu0 %v2989, 40
      %v3769 = vpop.permute.xlu0 %3768
      %3770 = vrot.lane.b32.xlu0 %v2990, 40
      %v3771 = vpop.permute.xlu0 %3770
      %3772 = vrot.lane.b32.xlu0 %v2991, 40
      %v3773 = vpop.permute.xlu0 %3772
      %3774 = vrot.lane.b32.xlu0 %v2992, 40
      %v3775 = vpop.permute.xlu0 %3774
      %3816 = vrot.lane.b32.xlu0 %v2958, 48
      %v3817 = vpop.permute.xlu0 %3816
      %3818 = vrot.lane.b32.xlu0 %v2959, 48
      %v3819 = vpop.permute.xlu0 %3818
      %3820 = vrot.lane.b32.xlu0 %v2960, 48
      %v3821 = vpop.permute.xlu0 %3820
      %3822 = vrot.lane.b32.xlu0 %v2961, 48
      %v3823 = vpop.permute.xlu0 %3822
      %3824 = vrot.lane.b32.xlu0 %v2962, 48
      %v3825 = vpop.permute.xlu0 %3824
      %3826 = vrot.lane.b32.xlu0 %v2963, 48
      %v3827 = vpop.permute.xlu0 %3826
      %3828 = vrot.lane.b32.xlu0 %v2964, 48
      %v3829 = vpop.permute.xlu0 %3828
      %3830 = vrot.lane.b32.xlu0 %v2965, 48
      %v3831 = vpop.permute.xlu0 %3830
      %3832 = vrot.lane.b32.xlu0 %v2966, 48
      %v3833 = vpop.permute.xlu0 %3832
      %3834 = vrot.lane.b32.xlu0 %v2967, 48
      %v3835 = vpop.permute.xlu0 %3834
      %3836 = vrot.lane.b32.xlu0 %v2968, 48
      %v3837 = vpop.permute.xlu0 %3836
      %3838 = vrot.lane.b32.xlu0 %v2969, 48
      %v3839 = vpop.permute.xlu0 %3838
      %3840 = vrot.lane.b32.xlu0 %v2970, 48
      %v3841 = vpop.permute.xlu0 %3840
      %3842 = vrot.lane.b32.xlu0 %v2971, 48
      %v3843 = vpop.permute.xlu0 %3842
      %3844 = vrot.lane.b32.xlu0 %v2972, 48
      %v3845 = vpop.permute.xlu0 %3844
      %3846 = vrot.lane.b32.xlu0 %v2973, 48
      %v3847 = vpop.permute.xlu0 %3846
      %3848 = vrot.lane.b32.xlu0 %v2974, 48
      %v3849 = vpop.permute.xlu0 %3848
      %3850 = vrot.lane.b32.xlu0 %v2975, 48
      %v3851 = vpop.permute.xlu0 %3850
      %3852 = vrot.lane.b32.xlu0 %v2976, 48
      %v3853 = vpop.permute.xlu0 %3852
      %3854 = vrot.lane.b32.xlu0 %v2977, 48
      %v3855 = vpop.permute.xlu0 %3854
      %3856 = vrot.lane.b32.xlu0 %v2978, 48
      %v3857 = vpop.permute.xlu0 %3856
      %3858 = vrot.lane.b32.xlu0 %v2979, 48
      %v3859 = vpop.permute.xlu0 %3858
      %3860 = vrot.lane.b32.xlu0 %v2980, 48
      %v3861 = vpop.permute.xlu0 %3860
      %3862 = vrot.lane.b32.xlu0 %v2981, 48
      %v3863 = vpop.permute.xlu0 %3862
      %3864 = vrot.lane.b32.xlu0 %v2982, 48
      %v3865 = vpop.permute.xlu0 %3864
      %3866 = vrot.lane.b32.xlu0 %v2983, 48
      %v3867 = vpop.permute.xlu0 %3866
      %3868 = vrot.lane.b32.xlu0 %v2984, 48
      %v3869 = vpop.permute.xlu0 %3868
      %3870 = vrot.lane.b32.xlu0 %v2985, 48
      %v3871 = vpop.permute.xlu0 %3870
      %3872 = vrot.lane.b32.xlu0 %v2986, 48
      %v3873 = vpop.permute.xlu0 %3872
      %3874 = vrot.lane.b32.xlu0 %v2987, 48
      %v3875 = vpop.permute.xlu0 %3874
      %3876 = vrot.lane.b32.xlu0 %v2988, 48
      %v3877 = vpop.permute.xlu0 %3876
      %3878 = vrot.lane.b32.xlu0 %v2989, 48
      %v3879 = vpop.permute.xlu0 %3878
      %3880 = vrot.lane.b32.xlu0 %v2990, 48
      %v3881 = vpop.permute.xlu0 %3880
      %3882 = vrot.lane.b32.xlu0 %v2991, 48
      %v3883 = vpop.permute.xlu0 %3882
      %3884 = vrot.lane.b32.xlu0 %v2993, 48
      %v3885 = vpop.permute.xlu0 %3884
      %3886 = vrot.lane.b32.xlu0 %v2994, 48
      %v3887 = vpop.permute.xlu0 %3886
      %3888 = vrot.lane.b32.xlu0 %v2995, 48
      %v3889 = vpop.permute.xlu0 %3888
      %3964 = vrot.lane.b32.xlu0 %v2996, 56
      %v3965 = vpop.permute.xlu0 %3964
      %3966 = vrot.lane.b32.xlu0 %v2997, 56
      %v3967 = vpop.permute.xlu0 %3966
      %3968 = vrot.lane.b32.xlu0 %v2998, 56
      %v3969 = vpop.permute.xlu0 %3968
      %3970 = vrot.lane.b32.xlu0 %v2999, 56
      %v3971 = vpop.permute.xlu0 %3970
      %3972 = vrot.lane.b32.xlu0 %v3000, 56
      %v3973 = vpop.permute.xlu0 %3972
      %3974 = vrot.lane.b32.xlu0 %v3001, 56
      %v3975 = vpop.permute.xlu0 %3974
      %3976 = vrot.lane.b32.xlu0 %v3002, 56
      %v3977 = vpop.permute.xlu0 %3976
      %3978 = vrot.lane.b32.xlu0 %v3003, 56
      %v3979 = vpop.permute.xlu0 %3978
      %3980 = vrot.lane.b32.xlu0 %v3004, 56
      %v3981 = vpop.permute.xlu0 %3980
      %3982 = vrot.lane.b32.xlu0 %v3005, 56
      %v3983 = vpop.permute.xlu0 %3982
      %3984 = vrot.lane.b32.xlu0 %v3006, 56
      %v3985 = vpop.permute.xlu0 %3984
      %3986 = vrot.lane.b32.xlu0 %v3007, 56
      %v3987 = vpop.permute.xlu0 %3986
      %3988 = vrot.lane.b32.xlu0 %v3008, 56
      %v3989 = vpop.permute.xlu0 %3988
      %3990 = vrot.lane.b32.xlu0 %v3009, 56
      %v3991 = vpop.permute.xlu0 %3990
      %3992 = vrot.lane.b32.xlu0 %v3010, 56
      %v3993 = vpop.permute.xlu0 %3992
      %3994 = vrot.lane.b32.xlu0 %v3011, 56
      %v3995 = vpop.permute.xlu0 %3994
      %3996 = vrot.lane.b32.xlu0 %v3012, 56
      %v3997 = vpop.permute.xlu0 %3996
      %3998 = vrot.lane.b32.xlu0 %v3013, 56
      %v3999 = vpop.permute.xlu0 %3998
      %4000 = vrot.lane.b32.xlu0 %v3014, 56
      %v4001 = vpop.permute.xlu0 %4000
      %4002 = vrot.lane.b32.xlu0 %v3015, 56
      %v4003 = vpop.permute.xlu0 %4002
      %4004 = vrot.lane.b32.xlu0 %v3016, 56
      %v4005 = vpop.permute.xlu0 %4004
      %4006 = vrot.lane.b32.xlu0 %v3017, 56
      %v4007 = vpop.permute.xlu0 %4006
      %4008 = vrot.lane.b32.xlu0 %v3018, 56
      %v4009 = vpop.permute.xlu0 %4008
      %4010 = vrot.lane.b32.xlu0 %v3019, 56
      %v4011 = vpop.permute.xlu0 %4010
      %4012 = vrot.lane.b32.xlu0 %v3020, 56
      %v4013 = vpop.permute.xlu0 %4012
      %4014 = vrot.lane.b32.xlu0 %v3021, 56
      %v4015 = vpop.permute.xlu0 %4014
      %4016 = vrot.lane.b32.xlu0 %v3022, 56
      %v4017 = vpop.permute.xlu0 %4016
      %4018 = vrot.lane.b32.xlu0 %v3023, 56
      %v4019 = vpop.permute.xlu0 %4018
      %4020 = vrot.lane.b32.xlu0 %v3024, 56
      %v4021 = vpop.permute.xlu0 %4020
      %4022 = vrot.lane.b32.xlu0 %v3025, 56
      %v4023 = vpop.permute.xlu0 %4022
      %4024 = vrot.lane.b32.xlu0 %v3026, 56
      %v4025 = vpop.permute.xlu0 %4024
      %4026 = vrot.lane.b32.xlu0 %v3027, 56
      %v4027 = vpop.permute.xlu0 %4026
      %4028 = vrot.lane.b32.xlu0 %v3028, 56
      %v4029 = vpop.permute.xlu0 %4028
      %4030 = vrot.lane.b32.xlu0 %v3029, 56
      %v4031 = vpop.permute.xlu0 %4030
      %4032 = vrot.lane.b32.xlu0 %v3030, 56
      %v4033 = vpop.permute.xlu0 %4032
      %4034 = vrot.lane.b32.xlu0 %v3031, 56
      %v4035 = vpop.permute.xlu0 %4034
      %4036 = vrot.lane.b32.xlu0 %v3032, 56
      %v4037 = vpop.permute.xlu0 %4036
      %4112 = vrot.lane.b32.xlu0 %v3033, 64
      %v4113 = vpop.permute.xlu0 %4112
      %4114 = vrot.lane.b32.xlu0 %v3034, 64
      %v4115 = vpop.permute.xlu0 %4114
      %4116 = vrot.lane.b32.xlu0 %v3035, 64
      %v4117 = vpop.permute.xlu0 %4116
      %4118 = vrot.lane.b32.xlu0 %v3036, 64
      %v4119 = vpop.permute.xlu0 %4118
      %4120 = vrot.lane.b32.xlu0 %v3037, 64
      %v4121 = vpop.permute.xlu0 %4120
      %4122 = vrot.lane.b32.xlu0 %v3038, 64
      %v4123 = vpop.permute.xlu0 %4122
      %4124 = vrot.lane.b32.xlu0 %v3039, 64
      %v4125 = vpop.permute.xlu0 %4124
      %4126 = vrot.lane.b32.xlu0 %v3040, 64
      %v4127 = vpop.permute.xlu0 %4126
      %4128 = vrot.lane.b32.xlu0 %v3041, 64
      %v4129 = vpop.permute.xlu0 %4128
      %4130 = vrot.lane.b32.xlu0 %v3042, 64
      %v4131 = vpop.permute.xlu0 %4130
      %4132 = vrot.lane.b32.xlu0 %v3043, 64
      %v4133 = vpop.permute.xlu0 %4132
      %4134 = vrot.lane.b32.xlu0 %v3044, 64
      %v4135 = vpop.permute.xlu0 %4134
      %4136 = vrot.lane.b32.xlu0 %v3045, 64
      %v4137 = vpop.permute.xlu0 %4136
      %4138 = vrot.lane.b32.xlu0 %v3046, 64
      %v4139 = vpop.permute.xlu0 %4138
      %4140 = vrot.lane.b32.xlu0 %v3047, 64
      %v4141 = vpop.permute.xlu0 %4140
      %4142 = vrot.lane.b32.xlu0 %v3048, 64
      %v4143 = vpop.permute.xlu0 %4142
      %4144 = vrot.lane.b32.xlu0 %v3049, 64
      %v4145 = vpop.permute.xlu0 %4144
      %4146 = vrot.lane.b32.xlu0 %v3050, 64
      %v4147 = vpop.permute.xlu0 %4146
      %4148 = vrot.lane.b32.xlu0 %v3051, 64
      %v4149 = vpop.permute.xlu0 %4148
      %4150 = vrot.lane.b32.xlu0 %v3052, 64
      %v4151 = vpop.permute.xlu0 %4150
      %4152 = vrot.lane.b32.xlu0 %v3053, 64
      %v4153 = vpop.permute.xlu0 %4152
      %4154 = vrot.lane.b32.xlu0 %v3054, 64
      %v4155 = vpop.permute.xlu0 %4154
      %4156 = vrot.lane.b32.xlu0 %v3055, 64
      %v4157 = vpop.permute.xlu0 %4156
      %4158 = vrot.lane.b32.xlu0 %v3056, 64
      %v4159 = vpop.permute.xlu0 %4158
      %4160 = vrot.lane.b32.xlu0 %v3057, 64
      %v4161 = vpop.permute.xlu0 %4160
      %4162 = vrot.lane.b32.xlu0 %v3058, 64
      %v4163 = vpop.permute.xlu0 %4162
      %4164 = vrot.lane.b32.xlu0 %v3059, 64
      %v4165 = vpop.permute.xlu0 %4164
      %4166 = vrot.lane.b32.xlu0 %v3060, 64
      %v4167 = vpop.permute.xlu0 %4166
      %4168 = vrot.lane.b32.xlu0 %v3061, 64
      %v4169 = vpop.permute.xlu0 %4168
      %4170 = vrot.lane.b32.xlu0 %v3062, 64
      %v4171 = vpop.permute.xlu0 %4170
      %4172 = vrot.lane.b32.xlu0 %v3063, 64
      %v4173 = vpop.permute.xlu0 %4172
      %4174 = vrot.lane.b32.xlu0 %v3064, 64
      %v4175 = vpop.permute.xlu0 %4174
      %4176 = vrot.lane.b32.xlu0 %v3065, 64
      %v4177 = vpop.permute.xlu0 %4176
      %4178 = vrot.lane.b32.xlu0 %v3066, 64
      %v4179 = vpop.permute.xlu0 %4178
      %4180 = vrot.lane.b32.xlu0 %v3067, 64
      %v4181 = vpop.permute.xlu0 %4180
      %4182 = vrot.lane.b32.xlu0 %v3068, 64
      %v4183 = vpop.permute.xlu0 %4182
      %4184 = vrot.lane.b32.xlu0 %v3069, 64
      %v4185 = vpop.permute.xlu0 %4184
      %4260 = vrot.lane.b32.xlu0 %v3070, 72
      %v4261 = vpop.permute.xlu0 %4260
      %4262 = vrot.lane.b32.xlu0 %v3071, 72
      %v4263 = vpop.permute.xlu0 %4262
      %4264 = vrot.lane.b32.xlu0 %v3072, 72
      %v4265 = vpop.permute.xlu0 %4264
      %4266 = vrot.lane.b32.xlu0 %v3073, 72
      %v4267 = vpop.permute.xlu0 %4266
      %4268 = vrot.lane.b32.xlu0 %v3074, 72
      %v4269 = vpop.permute.xlu0 %4268
      %4270 = vrot.lane.b32.xlu0 %v3075, 72
      %v4271 = vpop.permute.xlu0 %4270
      %4272 = vrot.lane.b32.xlu0 %v3076, 72
      %v4273 = vpop.permute.xlu0 %4272
      %4274 = vrot.lane.b32.xlu0 %v3077, 72
      %v4275 = vpop.permute.xlu0 %4274
      %4276 = vrot.lane.b32.xlu0 %v3078, 72
      %v4277 = vpop.permute.xlu0 %4276
      %4278 = vrot.lane.b32.xlu0 %v3079, 72
      %v4279 = vpop.permute.xlu0 %4278
      %4280 = vrot.lane.b32.xlu0 %v3080, 72
      %v4281 = vpop.permute.xlu0 %4280
      %4282 = vrot.lane.b32.xlu0 %v3081, 72
      %v4283 = vpop.permute.xlu0 %4282
      %4284 = vrot.lane.b32.xlu0 %v3082, 72
      %v4285 = vpop.permute.xlu0 %4284
      %4286 = vrot.lane.b32.xlu0 %v3083, 72
      %v4287 = vpop.permute.xlu0 %4286
      %4288 = vrot.lane.b32.xlu0 %v3084, 72
      %v4289 = vpop.permute.xlu0 %4288
      %4290 = vrot.lane.b32.xlu0 %v3085, 72
      %v4291 = vpop.permute.xlu0 %4290
      %4292 = vrot.lane.b32.xlu0 %v3086, 72
      %v4293 = vpop.permute.xlu0 %4292
      %4294 = vrot.lane.b32.xlu0 %v3087, 72
      %v4295 = vpop.permute.xlu0 %4294
      %4296 = vrot.lane.b32.xlu0 %v3088, 72
      %v4297 = vpop.permute.xlu0 %4296
      %4298 = vrot.lane.b32.xlu0 %v3089, 72
      %v4299 = vpop.permute.xlu0 %4298
      %4300 = vrot.lane.b32.xlu0 %v3090, 72
      %v4301 = vpop.permute.xlu0 %4300
      %4302 = vrot.lane.b32.xlu0 %v3091, 72
      %v4303 = vpop.permute.xlu0 %4302
      %4304 = vrot.lane.b32.xlu0 %v3092, 72
      %v4305 = vpop.permute.xlu0 %4304
      %4306 = vrot.lane.b32.xlu0 %v3093, 72
      %v4307 = vpop.permute.xlu0 %4306
      %4308 = vrot.lane.b32.xlu0 %v3094, 72
      %v4309 = vpop.permute.xlu0 %4308
      %4310 = vrot.lane.b32.xlu0 %v3095, 72
      %v4311 = vpop.permute.xlu0 %4310
      %4312 = vrot.lane.b32.xlu0 %v3096, 72
      %v4313 = vpop.permute.xlu0 %4312
      %4314 = vrot.lane.b32.xlu0 %v3097, 72
      %v4315 = vpop.permute.xlu0 %4314
      %4316 = vrot.lane.b32.xlu0 %v3098, 72
      %v4317 = vpop.permute.xlu0 %4316
      %4318 = vrot.lane.b32.xlu0 %v3099, 72
      %v4319 = vpop.permute.xlu0 %4318
      %4320 = vrot.lane.b32.xlu0 %v3100, 72
      %v4321 = vpop.permute.xlu0 %4320
      %4322 = vrot.lane.b32.xlu0 %v3101, 72
      %v4323 = vpop.permute.xlu0 %4322
      %4324 = vrot.lane.b32.xlu0 %v3102, 72
      %v4325 = vpop.permute.xlu0 %4324
      %4326 = vrot.lane.b32.xlu0 %v3103, 72
      %v4327 = vpop.permute.xlu0 %4326
      %4328 = vrot.lane.b32.xlu0 %v3104, 72
      %v4329 = vpop.permute.xlu0 %4328
      %4330 = vrot.lane.b32.xlu0 %v3105, 72
      %v4331 = vpop.permute.xlu0 %4330
      %4332 = vrot.lane.b32.xlu0 %v3106, 72
      %v4333 = vpop.permute.xlu0 %4332
      %v4371 = vsel %vm363, %v2805, %v3145
      %v4372 = vsel %vm363, %v2806, %v3147
      %v4373 = vsel %vm363, %v2807, %v3149
      %v4374 = vsel %vm363, %v2808, %v3151
      %v4375 = vsel %vm363, %v2809, %v3153
      %v4376 = vsel %vm363, %v2810, %v3155
      %v4377 = vsel %vm363, %v2811, %v3157
      %v4378 = vsel %vm363, %v2812, %v3159
      %v4379 = vsel %vm363, %v2813, %v3161
      %v4380 = vsel %vm363, %v2814, %v3163
      %v4381 = vsel %vm363, %v2815, %v3165
      %v4382 = vsel %vm363, %v2816, %v3167
      %v4383 = vsel %vm363, %v2817, %v3169
      %v4384 = vsel %vm363, %v2818, %v3171
      %v4385 = vsel %vm363, %v2819, %v3173
      %v4386 = vsel %vm363, %v2820, %v3175
      %v4387 = vsel %vm363, %v2821, %v3177
      %v4388 = vsel %vm363, %v2822, %v3179
      %v4389 = vsel %vm363, %v2823, %v3181
      %v4390 = vsel %vm363, %v2824, %v3183
      %v4391 = vsel %vm363, %v2825, %v3185
      %v4392 = vsel %vm363, %v2826, %v3187
      %v4393 = vsel %vm363, %v2827, %v3189
      %v4394 = vsel %vm363, %v2828, %v3191
      %v4395 = vsel %vm363, %v2829, %v3193
      %v4396 = vsel %vm363, %v2830, %v3195
      %v4397 = vsel %vm363, %v2831, %v3197
      %v4398 = vsel %vm363, %v2832, %v3199
      %v4399 = vsel %vm363, %v2833, %v3201
      %v4400 = vsel %vm363, %v2834, %v3203
      %v4401 = vsel %vm363, %v2835, %v3205
      %v4402 = vsel %vm363, %v2836, %v3207
      %v4403 = vsel %vm363, %v2837, %v3209
      %v4404 = vsel %vm363, %v2838, %v3211
      %v4405 = vsel %vm363, %v2839, %v3213
      %v4406 = vsel %vm363, %v2840, %v3215
      %v4407 = vsel %vm363, %v2841, %v3217
      %v4408 = vsel %vm1866, %v4371, %v3293
      %v4409 = vsel %vm1866, %v4372, %v3295
      %v4410 = vsel %vm1866, %v4373, %v3297
      %v4411 = vsel %vm1866, %v4374, %v3299
      %v4412 = vsel %vm1866, %v4375, %v3301
      %v4413 = vsel %vm1866, %v4376, %v3303
      %v4414 = vsel %vm1866, %v4377, %v3305
      %v4415 = vsel %vm1866, %v4378, %v3307
      %v4416 = vsel %vm1866, %v4379, %v3309
      %v4417 = vsel %vm1866, %v4380, %v3311
      %v4418 = vsel %vm1866, %v4381, %v3313
      %v4419 = vsel %vm1866, %v4382, %v3315
      %v4420 = vsel %vm1866, %v4383, %v3317
      %v4421 = vsel %vm1866, %v4384, %v3319
      %v4422 = vsel %vm1866, %v4385, %v3321
      %v4423 = vsel %vm1866, %v4386, %v3323
      %v4424 = vsel %vm1866, %v4387, %v3325
      %v4425 = vsel %vm1866, %v4388, %v3327
      %v4426 = vsel %vm1866, %v4389, %v3329
      %v4427 = vsel %vm1866, %v4390, %v3331
      %v4428 = vsel %vm1866, %v4391, %v3333
      %v4429 = vsel %vm1866, %v4392, %v3335
      %v4430 = vsel %vm1866, %v4393, %v3337
      %v4431 = vsel %vm1866, %v4394, %v3339
      %v4432 = vsel %vm1866, %v4395, %v3341
      %v4433 = vsel %vm1866, %v4396, %v3343
      %v4434 = vsel %vm1866, %v4397, %v3345
      %v4435 = vsel %vm1866, %v4398, %v3347
      %v4436 = vsel %vm1866, %v4399, %v3349
      %v4437 = vsel %vm1866, %v4400, %v3351
      %v4438 = vsel %vm1866, %v4401, %v3353
      %v4439 = vsel %vm1866, %v4402, %v3355
      %v4440 = vsel %vm1866, %v4403, %v3357
      %v4441 = vsel %vm1866, %v4404, %v3359
      %v4442 = vsel %vm1866, %v4405, %v3361
      %v4443 = vsel %vm1866, %v4406, %v3363
      %v4444 = vsel %vm1866, %v4407, %v3365
      %v4445 = vsel %vm1942, %v4408, %v3407
      %v4446 = vsel %vm1942, %v4409, %v3409
      %v4447 = vsel %vm1942, %v4410, %v3411
      %v4448 = vsel %vm1942, %v4411, %v3413
      %v4449 = vsel %vm1942, %v4412, %v3415
      %v4450 = vsel %vm1942, %v4413, %v3417
      %v4451 = vsel %vm1942, %v4414, %v3419
      %v4452 = vsel %vm1942, %v4415, %v3421
      %v4453 = vsel %vm1942, %v4416, %v3423
      %v4454 = vsel %vm1942, %v4417, %v3425
      %v4455 = vsel %vm1942, %v4418, %v3427
      %v4456 = vsel %vm1942, %v4419, %v3429
      %v4457 = vsel %vm1942, %v4420, %v3431
      %v4458 = vsel %vm1942, %v4421, %v3433
      %v4459 = vsel %vm1942, %v4422, %v3435
      %v4460 = vsel %vm1942, %v4423, %v3437
      %v4461 = vsel %vm1942, %v4424, %v3439
      %v4462 = vsel %vm1942, %v4425, %v3441
      %v4463 = vsel %vm1942, %v4426, %v3443
      %v4464 = vsel %vm1942, %v4427, %v3445
      %v4465 = vsel %vm1942, %v4428, %v3447
      %v4466 = vsel %vm1942, %v4429, %v3449
      %v4467 = vsel %vm1942, %v4430, %v3451
      %v4468 = vsel %vm1942, %v4431, %v3453
      %v4469 = vsel %vm1942, %v4432, %v3455
      %v4470 = vsel %vm1942, %v4433, %v3457
      %v4471 = vsel %vm1942, %v4434, %v3459
      %v4472 = vsel %vm1942, %v4435, %v3461
      %v4473 = vsel %vm1942, %v4436, %v3463
      %v4474 = vsel %vm1942, %v4437, %v3465
      %v4475 = vsel %vm1942, %v4438, %v3467
      %v4476 = vsel %vm1942, %v4439, %v3469
      %v4477 = vsel %vm1942, %v4440, %v3471
      %v4478 = vsel %vm1942, %v4441, %v3473
      %v4479 = vsel %vm1942, %v4442, %v3475
      %v4480 = vsel %vm1942, %v4443, %v3477
      %v4481 = vsel %vm1942, %v4444, %v3479
      %v4482 = vsel %vm2018, %v4445, %v3555
      %v4483 = vsel %vm2018, %v4446, %v3557
      %v4484 = vsel %vm2018, %v4447, %v3559
      %v4485 = vsel %vm2018, %v4448, %v3561
      %v4486 = vsel %vm2018, %v4449, %v3563
      %v4487 = vsel %vm2018, %v4450, %v3565
      %v4488 = vsel %vm2018, %v4451, %v3567
      %v4489 = vsel %vm2018, %v4452, %v3569
      %v4490 = vsel %vm2018, %v4453, %v3571
      %v4491 = vsel %vm2018, %v4454, %v3573
      %v4492 = vsel %vm2018, %v4455, %v3575
      %v4493 = vsel %vm2018, %v4456, %v3577
      %v4494 = vsel %vm2018, %v4457, %v3579
      %v4495 = vsel %vm2018, %v4458, %v3581
      %v4496 = vsel %vm2018, %v4459, %v3583
      %v4497 = vsel %vm2018, %v4460, %v3585
      %v4498 = vsel %vm2018, %v4461, %v3587
      %v4499 = vsel %vm2018, %v4462, %v3589
      %v4500 = vsel %vm2018, %v4463, %v3591
      %v4501 = vsel %vm2018, %v4464, %v3593
      %v4502 = vsel %vm2018, %v4465, %v3595
      %v4503 = vsel %vm2018, %v4466, %v3597
      %v4504 = vsel %vm2018, %v4467, %v3599
      %v4505 = vsel %vm2018, %v4468, %v3601
      %v4506 = vsel %vm2018, %v4469, %v3603
      %v4507 = vsel %vm2018, %v4470, %v3605
      %v4508 = vsel %vm2018, %v4471, %v3607
      %v4509 = vsel %vm2018, %v4472, %v3609
      %v4510 = vsel %vm2018, %v4473, %v3611
      %v4511 = vsel %vm2018, %v4474, %v3613
      %v4512 = vsel %vm2018, %v4475, %v3615
      %v4513 = vsel %vm2018, %v4476, %v3617
      %v4514 = vsel %vm2018, %v4477, %v3619
      %v4515 = vsel %vm2018, %v4478, %v3621
      %v4516 = vsel %vm2018, %v4479, %v3623
      %v4517 = vsel %vm2018, %v4480, %v3625
      %v4518 = vsel %vm2018, %v4481, %v3627
      %vm4519 = vcmask 326656
      %v4520 = vsel %vm4519, %v4482, %v3703
      %v4521 = vsel %vm4519, %v4483, %v3705
      %v4522 = vsel %vm4519, %v4484, %v3707
      %v4523 = vsel %vm4519, %v4485, %v3709
      %v4524 = vsel %vm4519, %v4486, %v3711
      %v4525 = vsel %vm4519, %v4487, %v3713
      %v4526 = vsel %vm4519, %v4488, %v3715
      %v4527 = vsel %vm4519, %v4489, %v3717
      %v4528 = vsel %vm4519, %v4490, %v3719
      %v4529 = vsel %vm4519, %v4491, %v3721
      %v4530 = vsel %vm4519, %v4492, %v3723
      %v4531 = vsel %vm4519, %v4493, %v3725
      %v4532 = vsel %vm4519, %v4494, %v3727
      %v4533 = vsel %vm4519, %v4495, %v3729
      %v4534 = vsel %vm4519, %v4496, %v3731
      %v4535 = vsel %vm4519, %v4497, %v3733
      %v4536 = vsel %vm4519, %v4498, %v3735
      %v4537 = vsel %vm4519, %v4499, %v3737
      %v4538 = vsel %vm4519, %v4500, %v3739
      %v4539 = vsel %vm4519, %v4501, %v3741
      %v4540 = vsel %vm4519, %v4502, %v3743
      %v4541 = vsel %vm4519, %v4503, %v3745
      %v4542 = vsel %vm4519, %v4504, %v3747
      %v4543 = vsel %vm4519, %v4505, %v3749
      %v4544 = vsel %vm4519, %v4506, %v3751
      %v4545 = vsel %vm4519, %v4507, %v3753
      %v4546 = vsel %vm4519, %v4508, %v3755
      %v4547 = vsel %vm4519, %v4509, %v3757
      %v4548 = vsel %vm4519, %v4510, %v3759
      %v4549 = vsel %vm4519, %v4511, %v3761
      %v4550 = vsel %vm4519, %v4512, %v3763
      %v4551 = vsel %vm4519, %v4513, %v3765
      %v4552 = vsel %vm4519, %v4514, %v3767
      %v4553 = vsel %vm4519, %v4515, %v3769
      %v4554 = vsel %vm4519, %v4516, %v3771
      %v4555 = vsel %vm4519, %v4517, %v3773
      %v4556 = vsel %vm4519, %v4518, %v3775
      %vm4557 = vcmask 392192
      %v4558 = vsel %vm4557, %v4520, %v3817
      %v4559 = vsel %vm4557, %v4521, %v3819
      %v4560 = vsel %vm4557, %v4522, %v3821
      %v4561 = vsel %vm4557, %v4523, %v3823
      %v4562 = vsel %vm4557, %v4524, %v3825
      %v4563 = vsel %vm4557, %v4525, %v3827
      %v4564 = vsel %vm4557, %v4526, %v3829
      %v4565 = vsel %vm4557, %v4527, %v3831
      %v4566 = vsel %vm4557, %v4528, %v3833
      %v4567 = vsel %vm4557, %v4529, %v3835
      %v4568 = vsel %vm4557, %v4530, %v3837
      %v4569 = vsel %vm4557, %v4531, %v3839
      %v4570 = vsel %vm4557, %v4532, %v3841
      %v4571 = vsel %vm4557, %v4533, %v3843
      %v4572 = vsel %vm4557, %v4534, %v3845
      %v4573 = vsel %vm4557, %v4535, %v3847
      %v4574 = vsel %vm4557, %v4536, %v3849
      %v4575 = vsel %vm4557, %v4537, %v3851
      %v4576 = vsel %vm4557, %v4538, %v3853
      %v4577 = vsel %vm4557, %v4539, %v3855
      %v4578 = vsel %vm4557, %v4540, %v3857
      %v4579 = vsel %vm4557, %v4541, %v3859
      %v4580 = vsel %vm4557, %v4542, %v3861
      %v4581 = vsel %vm4557, %v4543, %v3863
      %v4582 = vsel %vm4557, %v4544, %v3865
      %v4583 = vsel %vm4557, %v4545, %v3867
      %v4584 = vsel %vm4557, %v4546, %v3869
      %v4585 = vsel %vm4557, %v4547, %v3871
      %v4586 = vsel %vm4557, %v4548, %v3873
      %v4587 = vsel %vm4557, %v4549, %v3875
      %v4588 = vsel %vm4557, %v4550, %v3877
      %v4589 = vsel %vm4557, %v4551, %v3879
      %v4590 = vsel %vm4557, %v4552, %v3881
      %v4591 = vsel %vm4557, %v4553, %v3883
      %v4592 = vsel %vm4557, %v4554, %v3885
      %v4593 = vsel %vm4557, %v4555, %v3887
      %v4594 = vsel %vm4557, %v4556, %v3889
      %vm4595 = vcmask 457728
      %v4596 = vsel %vm4595, %v4558, %v3965
      %v4597 = vsel %vm4595, %v4559, %v3967
      %v4598 = vsel %vm4595, %v4560, %v3969
      %v4599 = vsel %vm4595, %v4561, %v3971
      %v4600 = vsel %vm4595, %v4562, %v3973
      %v4601 = vsel %vm4595, %v4563, %v3975
      %v4602 = vsel %vm4595, %v4564, %v3977
      %v4603 = vsel %vm4595, %v4565, %v3979
      %v4604 = vsel %vm4595, %v4566, %v3981
      %v4605 = vsel %vm4595, %v4567, %v3983
      %v4606 = vsel %vm4595, %v4568, %v3985
      %v4607 = vsel %vm4595, %v4569, %v3987
      %v4608 = vsel %vm4595, %v4570, %v3989
      %v4609 = vsel %vm4595, %v4571, %v3991
      %v4610 = vsel %vm4595, %v4572, %v3993
      %v4611 = vsel %vm4595, %v4573, %v3995
      %v4612 = vsel %vm4595, %v4574, %v3997
      %v4613 = vsel %vm4595, %v4575, %v3999
      %v4614 = vsel %vm4595, %v4576, %v4001
      %v4615 = vsel %vm4595, %v4577, %v4003
      %v4616 = vsel %vm4595, %v4578, %v4005
      %v4617 = vsel %vm4595, %v4579, %v4007
      %v4618 = vsel %vm4595, %v4580, %v4009
      %v4619 = vsel %vm4595, %v4581, %v4011
      %v4620 = vsel %vm4595, %v4582, %v4013
      %v4621 = vsel %vm4595, %v4583, %v4015
      %v4622 = vsel %vm4595, %v4584, %v4017
      %v4623 = vsel %vm4595, %v4585, %v4019
      %v4624 = vsel %vm4595, %v4586, %v4021
      %v4625 = vsel %vm4595, %v4587, %v4023
      %v4626 = vsel %vm4595, %v4588, %v4025
      %v4627 = vsel %vm4595, %v4589, %v4027
      %v4628 = vsel %vm4595, %v4590, %v4029
      %v4629 = vsel %vm4595, %v4591, %v4031
      %v4630 = vsel %vm4595, %v4592, %v4033
      %v4631 = vsel %vm4595, %v4593, %v4035
      %v4632 = vsel %vm4595, %v4594, %v4037
      %vm4633 = vcmask 523264
      %v4634 = vsel %vm4633, %v4596, %v4113
      %v4635 = vsel %vm4633, %v4597, %v4115
      %v4636 = vsel %vm4633, %v4598, %v4117
      %v4637 = vsel %vm4633, %v4599, %v4119
      %v4638 = vsel %vm4633, %v4600, %v4121
      %v4639 = vsel %vm4633, %v4601, %v4123
      %v4640 = vsel %vm4633, %v4602, %v4125
      %v4641 = vsel %vm4633, %v4603, %v4127
      %v4642 = vsel %vm4633, %v4604, %v4129
      %v4643 = vsel %vm4633, %v4605, %v4131
      %v4644 = vsel %vm4633, %v4606, %v4133
      %v4645 = vsel %vm4633, %v4607, %v4135
      %v4646 = vsel %vm4633, %v4608, %v4137
      %v4647 = vsel %vm4633, %v4609, %v4139
      %v4648 = vsel %vm4633, %v4610, %v4141
      %v4649 = vsel %vm4633, %v4611, %v4143
      %v4650 = vsel %vm4633, %v4612, %v4145
      %v4651 = vsel %vm4633, %v4613, %v4147
      %v4652 = vsel %vm4633, %v4614, %v4149
      %v4653 = vsel %vm4633, %v4615, %v4151
      %v4654 = vsel %vm4633, %v4616, %v4153
      %v4655 = vsel %vm4633, %v4617, %v4155
      %v4656 = vsel %vm4633, %v4618, %v4157
      %v4657 = vsel %vm4633, %v4619, %v4159
      %v4658 = vsel %vm4633, %v4620, %v4161
      %v4659 = vsel %vm4633, %v4621, %v4163
      %v4660 = vsel %vm4633, %v4622, %v4165
      %v4661 = vsel %vm4633, %v4623, %v4167
      %v4662 = vsel %vm4633, %v4624, %v4169
      %v4663 = vsel %vm4633, %v4625, %v4171
      %v4664 = vsel %vm4633, %v4626, %v4173
      %v4665 = vsel %vm4633, %v4627, %v4175
      %v4666 = vsel %vm4633, %v4628, %v4177
      %v4667 = vsel %vm4633, %v4629, %v4179
      %v4668 = vsel %vm4633, %v4630, %v4181
      %v4669 = vsel %vm4633, %v4631, %v4183
      %v4670 = vsel %vm4633, %v4632, %v4185
      %vm4671 = vcmask 588800
      %v4672 = vsel %vm4671, %v4634, %v4261
      %v4673 = vsel %vm4671, %v4635, %v4263
      %v4674 = vsel %vm4671, %v4636, %v4265
      %v4675 = vsel %vm4671, %v4637, %v4267
      %v4676 = vsel %vm4671, %v4638, %v4269
      %v4677 = vsel %vm4671, %v4639, %v4271
      %v4678 = vsel %vm4671, %v4640, %v4273
      %v4679 = vsel %vm4671, %v4641, %v4275
      %v4680 = vsel %vm4671, %v4642, %v4277
      %v4681 = vsel %vm4671, %v4643, %v4279
      %v4682 = vsel %vm4671, %v4644, %v4281
      %v4683 = vsel %vm4671, %v4645, %v4283
      %v4684 = vsel %vm4671, %v4646, %v4285
      %v4685 = vsel %vm4671, %v4647, %v4287
      %v4686 = vsel %vm4671, %v4648, %v4289
      %v4687 = vsel %vm4671, %v4649, %v4291
      %v4688 = vsel %vm4671, %v4650, %v4293
      %v4689 = vsel %vm4671, %v4651, %v4295
      %v4690 = vsel %vm4671, %v4652, %v4297
      %v4691 = vsel %vm4671, %v4653, %v4299
      %v4692 = vsel %vm4671, %v4654, %v4301
      %v4693 = vsel %vm4671, %v4655, %v4303
      %v4694 = vsel %vm4671, %v4656, %v4305
      %v4695 = vsel %vm4671, %v4657, %v4307
      %v4696 = vsel %vm4671, %v4658, %v4309
      %v4697 = vsel %vm4671, %v4659, %v4311
      %v4698 = vsel %vm4671, %v4660, %v4313
      %v4699 = vsel %vm4671, %v4661, %v4315
      %v4700 = vsel %vm4671, %v4662, %v4317
      %v4701 = vsel %vm4671, %v4663, %v4319
      %v4702 = vsel %vm4671, %v4664, %v4321
      %v4703 = vsel %vm4671, %v4665, %v4323
      %v4704 = vsel %vm4671, %v4666, %v4325
      %v4705 = vsel %vm4671, %v4667, %v4327
      %v4706 = vsel %vm4671, %v4668, %v4329
      %v4707 = vsel %vm4671, %v4669, %v4331
      %v4708 = vsel %vm4671, %v4670, %v4333
      %v4709 = vld [vmem:[%s3] sm:$0xff]
      %v4710 = vld [vmem:[%s3 + $0x8] sm:$0xff]
      %v4711 = vld [vmem:[%s3 + $0x10] sm:$0xff]
      %v4712 = vld [vmem:[%s3 + $0x18] sm:$0xff]
      %v4713 = vld [vmem:[%s3 + $0x20] sm:$0xff]
      %v4714 = vld [vmem:[%s3 + $0x28] sm:$0xff]
      %v4715 = vld [vmem:[%s3 + $0x30] sm:$0xff]
      %v4716 = vld [vmem:[%s3 + $0x38] sm:$0xff]
      %v4717 = vld [vmem:[%s3 + $0x40] sm:$0xff]
      %v4718 = vld [vmem:[%s3 + $0x48] sm:$0xf]
      %v4719 = vld [vmem:[%s4] sm:$0x1]
      %v4721 = vlaneseq
      %v4722 = vshrl.u32 %v4721, 7
      %v4723 = vsub.s32 0, %v4722
      %v4724 = vrot.slane %v4719, %v4723
      %vm4726 = vcmask 621568
      %v4728 = vsel %vm4726, %v4672, 0
      %v4731 = vsel %vm4726, %v4673, 0
      %v4734 = vsel %vm4726, %v4674, 0
      %v4737 = vsel %vm4726, %v4675, 0
      %v4740 = vsel %vm4726, %v4676, 0
      %v4743 = vsel %vm4726, %v4677, 0
      %v4746 = vsel %vm4726, %v4678, 0
      %v4749 = vsel %vm4726, %v4679, 0
      %v4752 = vsel %vm4726, %v4680, 0
      %v4755 = vsel %vm4726, %v4681, 0
      %v4758 = vsel %vm4726, %v4682, 0
      %v4761 = vsel %vm4726, %v4683, 0
      %v4764 = vsel %vm4726, %v4684, 0
      %v4767 = vsel %vm4726, %v4685, 0
      %v4770 = vsel %vm4726, %v4686, 0
      %v4773 = vsel %vm4726, %v4687, 0
      %v4776 = vsel %vm4726, %v4688, 0
      %v4779 = vsel %vm4726, %v4689, 0
      %v4782 = vsel %vm4726, %v4690, 0
      %v4785 = vsel %vm4726, %v4691, 0
      %v4788 = vsel %vm4726, %v4692, 0
      %v4791 = vsel %vm4726, %v4693, 0
      %v4794 = vsel %vm4726, %v4694, 0
      %v4797 = vsel %vm4726, %v4695, 0
      %v4800 = vsel %vm4726, %v4696, 0
      %v4803 = vsel %vm4726, %v4697, 0
      %v4806 = vsel %vm4726, %v4698, 0
      %v4809 = vsel %vm4726, %v4699, 0
      %v4812 = vsel %vm4726, %v4700, 0
      %v4815 = vsel %vm4726, %v4701, 0
      %v4818 = vsel %vm4726, %v4702, 0
      %v4821 = vsel %vm4726, %v4703, 0
      %v4824 = vsel %vm4726, %v4704, 0
      %v4827 = vsel %vm4726, %v4705, 0
      %v4830 = vsel %vm4726, %v4706, 0
      %v4833 = vsel %vm4726, %v4707, 0
      %v4836 = vsel %vm4726, %v4708, 0
      %v4839 = vsel %vm2217, %v4718, 0
      %4841 = vmatprep.subr.mxu0 0.0
      %4842 = vmatpush1.msra.mxu0 %v4709
      %4843 = vmatprep.subr.mxu0 0.0
      %4844 = vmatpush1.msra.mxu0 %v4710
      %4845 = vmatprep.subr.mxu0 0.0
      %4846 = vmatpush1.msra.mxu0 %v4711
      %4847 = vmatprep.subr.mxu0 0.0
      %4848 = vmatpush1.msra.mxu0 %v4712
      %4849 = vmatprep.subr.mxu0 0.0
      %4850 = vmatpush1.msra.mxu0 %v4713
      %4851 = vmatprep.subr.mxu0 0.0
      %4852 = vmatpush1.msra.mxu0 %v4714
      %4853 = vmatprep.subr.mxu0 0.0
      %4854 = vmatpush1.msra.mxu0 %v4715
      %4855 = vmatprep.subr.mxu0 0.0
      %4856 = vmatpush1.msra.mxu0 %v4716
      %4857 = vmatprep.subr.mxu0 0.0
      %4858 = vmatpush1.msra.mxu0 %v4717
      %4859 = vmatprep.subr.mxu0 0.0
      %4860 = vmatpush1.msra.mxu0 %v4839
      %4861 = vmatprep.subr.mxu0 0.0
      %4862 = vmatpush1.msra.mxu0 0.0
      %4863 = vmatprep.subr.mxu0 0.0
      %4864 = vmatpush1.msra.mxu0 0.0
      %4865 = vmatprep.subr.mxu0 0.0
      %4866 = vmatpush1.msra.mxu0 0.0
      %4867 = vmatprep.subr.mxu0 0.0
      %4868 = vmatpush1.msra.mxu0 0.0
      %4869 = vmatprep.subr.mxu0 0.0
      %4870 = vmatpush1.msra.mxu0 0.0
      %4871 = vmatprep.subr.mxu0 0.0
      %4872 = vmatpush1.msra.mxu0 0.0
      %4873 = vmatprep.subr.mxu0 0.0
      %4874 = vmatpush1.msra.mxu0 0.0
      %4875 = vmatprep.subr.mxu0 0.0
      %4876 = vmatpush1.msra.mxu0 0.0
      %4877 = vmatprep.subr.mxu0 0.0
      %4878 = vmatpush1.msra.mxu0 0.0
      %4879 = vmatprep.subr.mxu0 0.0
      %4880 = vmatpush1.msra.mxu0 0.0
      %4881 = vmatprep.subr.mxu0 0.0
      %4882 = vmatpush1.msra.mxu0 0.0
      %4883 = vmatprep.subr.mxu0 0.0
      %4884 = vmatpush1.msra.mxu0 0.0
      %4885 = vmatprep.subr.mxu0 0.0
      %4886 = vmatpush1.msra.mxu0 0.0
      %4887 = vmatprep.subr.mxu0 0.0
      %4888 = vmatpush1.msra.mxu0 0.0
      %4889 = vmatprep.subr.mxu0 0.0
      %4890 = vmatpush1.msra.mxu0 0.0
      %4891 = vmatprep.subr.mxu0 0.0
      %4892 = vmatpush1.msra.mxu0 0.0
      %4893 = vmatprep.subr.mxu0 0.0
      %4894 = vmatpush1.msra.mxu0 0.0
      %4895 = vmatprep.subr.mxu0 0.0
      %4896 = vmatpush1.msra.mxu0 0.0
      %4897 = vmatprep.subr.mxu0 0.0
      %4898 = vmatpush1.msra.mxu0 0.0
      %4899 = vmatprep.subr.mxu0 0.0
      %4900 = vmatpush1.msra.mxu0 0.0
      %4901 = vmatprep.subr.mxu0 0.0
      %4902 = vmatpush1.msra.mxu0 0.0
      %4903 = vmatprep.subr.mxu0 0.0
      %4904 = vmatpush1.msra.mxu0 0.0
      %4905 = vmatprep.mubr.f32.mxu0 0.0
      %4906 = vmatmul.mubr.f32.gmra.mrb[0].mxu0 %v4728
      %v4907 = vpop.f32.mrb[0].mxu0
      %v4908 = vadd.f32 %v4724, %v4907
      %v4909 = vpop.f32.mrb[0].mxu0
      %4910 = vmatprep.mubr.f32.mxu0 0.0
      %4911 = vmatmul.mubr.f32.gmra.mrb[0].mxu0 %v4731
      %v4912 = vpop.f32.mrb[0].mxu0
      %v4913 = vadd.f32 %v4724, %v4912
      %v4914 = vpop.f32.mrb[0].mxu0
      %4915 = vmatprep.mubr.f32.mxu0 0.0
      %4916 = vmatmul.mubr.f32.gmra.mrb[0].mxu0 %v4734
      %v4917 = vpop.f32.mrb[0].mxu0
      %v4918 = vadd.f32 %v4724, %v4917
      %v4919 = vpop.f32.mrb[0].mxu0
      %4920 = vmatprep.mubr.f32.mxu0 0.0
      %4921 = vmatmul.mubr.f32.gmra.mrb[0].mxu0 %v4737
      %v4922 = vpop.f32.mrb[0].mxu0
      %v4923 = vadd.f32 %v4724, %v4922
      %v4924 = vpop.f32.mrb[0].mxu0
      %4925 = vmatprep.mubr.f32.mxu0 0.0
      %4926 = vmatmul.mubr.f32.gmra.mrb[0].mxu0 %v4740
      %v4927 = vpop.f32.mrb[0].mxu0
      %v4928 = vadd.f32 %v4724, %v4927
      %v4929 = vpop.f32.mrb[0].mxu0
      %4930 = vmatprep.mubr.f32.mxu0 0.0
      %4931 = vmatmul.mubr.f32.gmra.mrb[0].mxu0 %v4743
      %v4932 = vpop.f32.mrb[0].mxu0
      %v4933 = vadd.f32 %v4724, %v4932
      %v4934 = vpop.f32.mrb[0].mxu0
      %4935 = vmatprep.mubr.f32.mxu0 0.0
      %4936 = vmatmul.mubr.f32.gmra.mrb[0].mxu0 %v4746
      %v4937 = vpop.f32.mrb[0].mxu0
      %v4938 = vadd.f32 %v4724, %v4937
      %v4939 = vpop.f32.mrb[0].mxu0
      %4940 = vmatprep.mubr.f32.mxu0 0.0
      %4941 = vmatmul.mubr.f32.gmra.mrb[0].mxu0 %v4749
      %v4942 = vpop.f32.mrb[0].mxu0
      %v4943 = vadd.f32 %v4724, %v4942
      %v4944 = vpop.f32.mrb[0].mxu0
      %4945 = vmatprep.mubr.f32.mxu0 0.0
      %4946 = vmatmul.mubr.f32.gmra.mrb[0].mxu0 %v4752
      %v4947 = vpop.f32.mrb[0].mxu0
      %v4948 = vadd.f32 %v4724, %v4947
      %v4949 = vpop.f32.mrb[0].mxu0
      %4950 = vmatprep.mubr.f32.mxu0 0.0
      %4951 = vmatmul.mubr.f32.gmra.mrb[0].mxu0 %v4755
      %v4952 = vpop.f32.mrb[0].mxu0
      %v4953 = vadd.f32 %v4724, %v4952
      %v4954 = vpop.f32.mrb[0].mxu0
      %4955 = vmatprep.mubr.f32.mxu0 0.0
      %4956 = vmatmul.mubr.f32.gmra.mrb[0].mxu0 %v4758
      %v4957 = vpop.f32.mrb[0].mxu0
      %v4958 = vadd.f32 %v4724, %v4957
      %v4959 = vpop.f32.mrb[0].mxu0
      %4960 = vmatprep.mubr.f32.mxu0 0.0
      %4961 = vmatmul.mubr.f32.gmra.mrb[0].mxu0 %v4761
      %v4962 = vpop.f32.mrb[0].mxu0
      %v4963 = vadd.f32 %v4724, %v4962
      %v4964 = vpop.f32.mrb[0].mxu0
      %4965 = vmatprep.mubr.f32.mxu0 0.0
      %4966 = vmatmul.mubr.f32.gmra.mrb[0].mxu0 %v4764
      %v4967 = vpop.f32.mrb[0].mxu0
      %v4968 = vadd.f32 %v4724, %v4967
      %v4969 = vpop.f32.mrb[0].mxu0
      %4970 = vmatprep.mubr.f32.mxu0 0.0
      %4971 = vmatmul.mubr.f32.gmra.mrb[0].mxu0 %v4767
      %v4972 = vpop.f32.mrb[0].mxu0
      %v4973 = vadd.f32 %v4724, %v4972
      %v4974 = vpop.f32.mrb[0].mxu0
      %4975 = vmatprep.mubr.f32.mxu0 0.0
      %4976 = vmatmul.mubr.f32.gmra.mrb[0].mxu0 %v4770
      %v4977 = vpop.f32.mrb[0].mxu0
      %v4978 = vadd.f32 %v4724, %v4977
      %v4979 = vpop.f32.mrb[0].mxu0
      %4980 = vmatprep.mubr.f32.mxu0 0.0
      %4981 = vmatmul.mubr.f32.gmra.mrb[0].mxu0 %v4773
      %v4982 = vpop.f32.mrb[0].mxu0
      %v4983 = vadd.f32 %v4724, %v4982
      %v4984 = vpop.f32.mrb[0].mxu0
      %4985 = vmatprep.mubr.f32.mxu0 0.0
      %4986 = vmatmul.mubr.f32.gmra.mrb[0].mxu0 %v4776
      %v4987 = vpop.f32.mrb[0].mxu0
      %v4988 = vadd.f32 %v4724, %v4987
      %v4989 = vpop.f32.mrb[0].mxu0
      %4990 = vmatprep.mubr.f32.mxu0 0.0
      %4991 = vmatmul.mubr.f32.gmra.mrb[0].mxu0 %v4779
      %v4992 = vpop.f32.mrb[0].mxu0
      %v4993 = vadd.f32 %v4724, %v4992
      %v4994 = vpop.f32.mrb[0].mxu0
      %4995 = vmatprep.mubr.f32.mxu0 0.0
      %4996 = vmatmul.mubr.f32.gmra.mrb[0].mxu0 %v4782
      %v4997 = vpop.f32.mrb[0].mxu0
      %v4998 = vadd.f32 %v4724, %v4997
      %v4999 = vpop.f32.mrb[0].mxu0
      %5000 = vmatprep.mubr.f32.mxu0 0.0
      %5001 = vmatmul.mubr.f32.gmra.mrb[0].mxu0 %v4785
      %v5002 = vpop.f32.mrb[0].mxu0
      %v5003 = vadd.f32 %v4724, %v5002
      %v5004 = vpop.f32.mrb[0].mxu0
      %5005 = vmatprep.mubr.f32.mxu0 0.0
      %5006 = vmatmul.mubr.f32.gmra.mrb[0].mxu0 %v4788
      %v5007 = vpop.f32.mrb[0].mxu0
      %v5008 = vadd.f32 %v4724, %v5007
      %v5009 = vpop.f32.mrb[0].mxu0
      %5010 = vmatprep.mubr.f32.mxu0 0.0
      %5011 = vmatmul.mubr.f32.gmra.mrb[0].mxu0 %v4791
      %v5012 = vpop.f32.mrb[0].mxu0
      %v5013 = vadd.f32 %v4724, %v5012
      %v5014 = vpop.f32.mrb[0].mxu0
      %5015 = vmatprep.mubr.f32.mxu0 0.0
      %5016 = vmatmul.mubr.f32.gmra.mrb[0].mxu0 %v4794
      %v5017 = vpop.f32.mrb[0].mxu0
      %v5018 = vadd.f32 %v4724, %v5017
      %v5019 = vpop.f32.mrb[0].mxu0
      %5020 = vmatprep.mubr.f32.mxu0 0.0
      %5021 = vmatmul.mubr.f32.gmra.mrb[0].mxu0 %v4797
      %v5022 = vpop.f32.mrb[0].mxu0
      %v5023 = vadd.f32 %v4724, %v5022
      %v5024 = vpop.f32.mrb[0].mxu0
      %5025 = vmatprep.mubr.f32.mxu0 0.0
      %5026 = vmatmul.mubr.f32.gmra.mrb[0].mxu0 %v4800
      %v5027 = vpop.f32.mrb[0].mxu0
      %v5028 = vadd.f32 %v4724, %v5027
      %v5029 = vpop.f32.mrb[0].mxu0
      %5030 = vmatprep.mubr.f32.mxu0 0.0
      %5031 = vmatmul.mubr.f32.gmra.mrb[0].mxu0 %v4803
      %v5032 = vpop.f32.mrb[0].mxu0
      %v5033 = vadd.f32 %v4724, %v5032
      %v5034 = vpop.f32.mrb[0].mxu0
      %5035 = vmatprep.mubr.f32.mxu0 0.0
      %5036 = vmatmul.mubr.f32.gmra.mrb[0].mxu0 %v4806
      %v5037 = vpop.f32.mrb[0].mxu0
      %v5038 = vadd.f32 %v4724, %v5037
      %v5039 = vpop.f32.mrb[0].mxu0
      %5040 = vmatprep.mubr.f32.mxu0 0.0
      %5041 = vmatmul.mubr.f32.gmra.mrb[0].mxu0 %v4809
      %v5042 = vpop.f32.mrb[0].mxu0
      %v5043 = vadd.f32 %v4724, %v5042
      %v5044 = vpop.f32.mrb[0].mxu0
      %5045 = vmatprep.mubr.f32.mxu0 0.0
      %5046 = vmatmul.mubr.f32.gmra.mrb[0].mxu0 %v4812
      %v5047 = vpop.f32.mrb[0].mxu0
      %v5048 = vadd.f32 %v4724, %v5047
      %v5049 = vpop.f32.mrb[0].mxu0
      %5050 = vmatprep.mubr.f32.mxu0 0.0
      %5051 = vmatmul.mubr.f32.gmra.mrb[0].mxu0 %v4815
      %v5052 = vpop.f32.mrb[0].mxu0
      %v5053 = vadd.f32 %v4724, %v5052
      %v5054 = vpop.f32.mrb[0].mxu0
      %5055 = vmatprep.mubr.f32.mxu0 0.0
      %5056 = vmatmul.mubr.f32.gmra.mrb[0].mxu0 %v4818
      %v5057 = vpop.f32.mrb[0].mxu0
      %v5058 = vadd.f32 %v4724, %v5057
      %v5059 = vpop.f32.mrb[0].mxu0
      %5060 = vmatprep.mubr.f32.mxu0 0.0
      %5061 = vmatmul.mubr.f32.gmra.mrb[0].mxu0 %v4821
      %v5062 = vpop.f32.mrb[0].mxu0
      %v5063 = vadd.f32 %v4724, %v5062
      %v5064 = vpop.f32.mrb[0].mxu0
      %5065 = vmatprep.mubr.f32.mxu0 0.0
      %5066 = vmatmul.mubr.f32.gmra.mrb[0].mxu0 %v4824
      %v5067 = vpop.f32.mrb[0].mxu0
      %v5068 = vadd.f32 %v4724, %v5067
      %v5069 = vpop.f32.mrb[0].mxu0
      %5070 = vmatprep.mubr.f32.mxu0 0.0
      %5071 = vmatmul.mubr.f32.gmra.mrb[0].mxu0 %v4827
      %v5072 = vpop.f32.mrb[0].mxu0
      %v5073 = vadd.f32 %v4724, %v5072
      %v5074 = vpop.f32.mrb[0].mxu0
      %5075 = vmatprep.mubr.f32.mxu0 0.0
      %5076 = vmatmul.mubr.f32.gmra.mrb[0].mxu0 %v4830
      %v5077 = vpop.f32.mrb[0].mxu0
      %v5078 = vadd.f32 %v4724, %v5077
      %v5079 = vpop.f32.mrb[0].mxu0
      %5080 = vmatprep.mubr.f32.mxu0 0.0
      %5081 = vmatmul.mubr.f32.gmra.mrb[0].mxu0 %v4833
      %v5082 = vpop.f32.mrb[0].mxu0
      %v5083 = vadd.f32 %v4724, %v5082
      %v5084 = vpop.f32.mrb[0].mxu0
      %5085 = vmatprep.mubr.f32.mxu0 0.0
      %5086 = vmatmul.mubr.f32.gmra.mrb[0].mxu0 %v4836
      %v5087 = vpop.f32.mrb[0].mxu0
      %v5088 = vadd.f32 %v4724, %v5087
      %v5089 = vpop.f32.mrb[0].mxu0
      %5090 = vdwg.mxu0
      %5091 = vst.msk [vmem:[#allocation3 + $0x13] sm:$0xff] %vm363, %v4908
      %5092 = vst.msk [vmem:[#allocation3 + $0x1b] sm:$0xff] %vm363, %v4913
      %5093 = vst.msk [vmem:[#allocation3 + $0x23] sm:$0xff] %vm363, %v4918
      %5094 = vst.msk [vmem:[#allocation3 + $0x2b] sm:$0xff] %vm363, %v4923
      %5095 = vst.msk [vmem:[#allocation3 + $0x33] sm:$0xff] %vm363, %v4928
      %5096 = vst.msk [vmem:[#allocation3 + $0x3b] sm:$0xff] %vm363, %v4933
      %5097 = vst.msk [vmem:[#allocation3 + $0x43] sm:$0xff] %vm363, %v4938
      %5098 = vst.msk [vmem:[#allocation3 + $0x4b] sm:$0xff] %vm363, %v4943
      %5099 = vst.msk [vmem:[#allocation3 + $0x53] sm:$0xff] %vm363, %v4948
      %5100 = vst.msk [vmem:[#allocation3 + $0x5b] sm:$0xff] %vm363, %v4953
      %5101 = vst.msk [vmem:[#allocation3 + $0x63] sm:$0xff] %vm363, %v4958
      %5102 = vst.msk [vmem:[#allocation3 + $0x6b] sm:$0xff] %vm363, %v4963
      %5103 = vst.msk [vmem:[#allocation3 + $0x73] sm:$0xff] %vm363, %v4968
      %5104 = vst.msk [vmem:[#allocation3 + $0x7b] sm:$0xff] %vm363, %v4973
      %5105 = vst.msk [vmem:[#allocation3 + $0x83] sm:$0xff] %vm363, %v4978
      %5106 = vst.msk [vmem:[#allocation3 + $0x8b] sm:$0xff] %vm363, %v4983
      %5107 = vst.msk [vmem:[#allocation3 + $0x93] sm:$0xff] %vm363, %v4988
      %5108 = vst.msk [vmem:[#allocation3 + $0x9b] sm:$0xff] %vm363, %v4993
      %5109 = vst.msk [vmem:[#allocation3 + $0xa3] sm:$0xff] %vm363, %v4998
      %5110 = vst.msk [vmem:[#allocation3 + $0xab] sm:$0xff] %vm363, %v5003
      %5111 = vst.msk [vmem:[#allocation3 + $0xb3] sm:$0xff] %vm363, %v5008
      %5112 = vst.msk [vmem:[#allocation3 + $0xbb] sm:$0xff] %vm363, %v5013
      %5113 = vst.msk [vmem:[#allocation3 + $0xc3] sm:$0xff] %vm363, %v5018
      %5114 = vst.msk [vmem:[#allocation3 + $0xcb] sm:$0xff] %vm363, %v5023
      %5115 = vst.msk [vmem:[#allocation3 + $0xd3] sm:$0xff] %vm363, %v5028
      %5116 = vst.msk [vmem:[#allocation3 + $0xdb] sm:$0xff] %vm363, %v5033
      %5117 = vst.msk [vmem:[#allocation3 + $0xe3] sm:$0xff] %vm363, %v5038
      %5118 = vst.msk [vmem:[#allocation3 + $0xeb] sm:$0xff] %vm363, %v5043
      %5119 = vst.msk [vmem:[#allocation3 + $0xf3] sm:$0xff] %vm363, %v5048
      %5120 = vst.msk [vmem:[#allocation3 + $0xfb] sm:$0xff] %vm363, %v5053
      %5121 = vst.msk [vmem:[#allocation3 + $0x103] sm:$0xff] %vm363, %v5058
      %5122 = vst.msk [vmem:[#allocation3 + $0x10b] sm:$0xff] %vm363, %v5063
      %5123 = vst.msk [vmem:[#allocation3 + $0x113] sm:$0xff] %vm363, %v5068
      %5124 = vst.msk [vmem:[#allocation3 + $0x11b] sm:$0xff] %vm363, %v5073
      %5125 = vst.msk [vmem:[#allocation3 + $0x123] sm:$0xff] %vm363, %v5078
      %5126 = vst.msk [vmem:[#allocation3 + $0x12b] sm:$0xff] %vm363, %v5083
      %5127 = vst.msk [vmem:[#allocation3 + $0x133] sm:$0x3] %vm2803, %v5088
      %v5128 = vld [vmem:[#allocation3 + $0x13] sm:$0xff]
      %v5129 = vld [vmem:[#allocation3 + $0x1b] sm:$0xff]
      %v5130 = vld [vmem:[#allocation3 + $0x23] sm:$0xff]
      %v5131 = vld [vmem:[#allocation3 + $0x2b] sm:$0xff]
      %v5132 = vld [vmem:[#allocation3 + $0x33] sm:$0xff]
      %v5133 = vld [vmem:[#allocation3 + $0x3b] sm:$0xff]
      %v5134 = vld [vmem:[#allocation3 + $0x43] sm:$0xff]
      %v5135 = vld [vmem:[#allocation3 + $0x4b] sm:$0xff]
      %v5136 = vld [vmem:[#allocation3 + $0x53] sm:$0xff]
      %v5137 = vld [vmem:[#allocation3 + $0x5b] sm:$0xff]
      %v5138 = vld [vmem:[#allocation3 + $0x63] sm:$0xff]
      %v5139 = vld [vmem:[#allocation3 + $0x6b] sm:$0xff]
      %v5140 = vld [vmem:[#allocation3 + $0x73] sm:$0xff]
      %v5141 = vld [vmem:[#allocation3 + $0x7b] sm:$0xff]
      %v5142 = vld [vmem:[#allocation3 + $0x83] sm:$0xff]
      %v5143 = vld [vmem:[#allocation3 + $0x8b] sm:$0xff]
      %v5144 = vld [vmem:[#allocation3 + $0x93] sm:$0xff]
      %v5145 = vld [vmem:[#allocation3 + $0x9b] sm:$0xff]
      %v5146 = vld [vmem:[#allocation3 + $0xa3] sm:$0xff]
      %v5147 = vld [vmem:[#allocation3 + $0xab] sm:$0xff]
      %v5148 = vld [vmem:[#allocation3 + $0xb3] sm:$0xff]
      %v5149 = vld [vmem:[#allocation3 + $0xbb] sm:$0xff]
      %v5150 = vld [vmem:[#allocation3 + $0xc3] sm:$0xff]
      %v5151 = vld [vmem:[#allocation3 + $0xcb] sm:$0xff]
      %v5152 = vld [vmem:[#allocation3 + $0xd3] sm:$0xff]
      %v5153 = vld [vmem:[#allocation3 + $0xdb] sm:$0xff]
      %v5154 = vld [vmem:[#allocation3 + $0xe3] sm:$0xff]
      %v5155 = vld [vmem:[#allocation3 + $0xeb] sm:$0xff]
      %v5156 = vld [vmem:[#allocation3 + $0xf3] sm:$0xff]
      %v5157 = vld [vmem:[#allocation3 + $0xfb] sm:$0xff]
      %v5158 = vld [vmem:[#allocation3 + $0x103] sm:$0xff]
      %v5159 = vld [vmem:[#allocation3 + $0x10b] sm:$0xff]
      %v5160 = vld [vmem:[#allocation3 + $0x113] sm:$0xff]
      %v5161 = vld [vmem:[#allocation3 + $0x11b] sm:$0x7f]
      %v5162 = vld [vmem:[#allocation3 + $0x14] sm:$0xff]
      %v5163 = vld [vmem:[#allocation3 + $0x1c] sm:$0xff]
      %v5164 = vld [vmem:[#allocation3 + $0x24] sm:$0xff]
      %v5165 = vld [vmem:[#allocation3 + $0x2c] sm:$0xff]
      %v5166 = vld [vmem:[#allocation3 + $0x34] sm:$0xff]
      %v5167 = vld [vmem:[#allocation3 + $0x3c] sm:$0xff]
      %v5168 = vld [vmem:[#allocation3 + $0x44] sm:$0xff]
      %v5169 = vld [vmem:[#allocation3 + $0x4c] sm:$0xff]
      %v5170 = vld [vmem:[#allocation3 + $0x54] sm:$0xff]
      %v5171 = vld [vmem:[#allocation3 + $0x5c] sm:$0xff]
      %v5172 = vld [vmem:[#allocation3 + $0x64] sm:$0xff]
      %v5173 = vld [vmem:[#allocation3 + $0x6c] sm:$0xff]
      %v5174 = vld [vmem:[#allocation3 + $0x74] sm:$0xff]
      %v5175 = vld [vmem:[#allocation3 + $0x7c] sm:$0xff]
      %v5176 = vld [vmem:[#allocation3 + $0x84] sm:$0xff]
      %v5177 = vld [vmem:[#allocation3 + $0x8c] sm:$0xff]
      %v5178 = vld [vmem:[#allocation3 + $0x94] sm:$0xff]
      %v5179 = vld [vmem:[#allocation3 + $0x9c] sm:$0xff]
      %v5180 = vld [vmem:[#allocation3 + $0xa4] sm:$0xff]
      %v5181 = vld [vmem:[#allocation3 + $0xac] sm:$0xff]
      %v5182 = vld [vmem:[#allocation3 + $0xb4] sm:$0xff]
      %v5183 = vld [vmem:[#allocation3 + $0xbc] sm:$0xff]
      %v5184 = vld [vmem:[#allocation3 + $0xc4] sm:$0xff]
      %v5185 = vld [vmem:[#allocation3 + $0xcc] sm:$0xff]
      %v5186 = vld [vmem:[#allocation3 + $0xd4] sm:$0xff]
      %v5187 = vld [vmem:[#allocation3 + $0xdc] sm:$0xff]
      %v5188 = vld [vmem:[#allocation3 + $0xe4] sm:$0xff]
      %v5189 = vld [vmem:[#allocation3 + $0xec] sm:$0xff]
      %v5190 = vld [vmem:[#allocation3 + $0xf4] sm:$0xff]
      %v5191 = vld [vmem:[#allocation3 + $0xfc] sm:$0xff]
      %v5192 = vld [vmem:[#allocation3 + $0x104] sm:$0xff]
      %v5193 = vld [vmem:[#allocation3 + $0x10c] sm:$0xff]
      %v5194 = vld [vmem:[#allocation3 + $0x114] sm:$0xff]
      %v5195 = vld [vmem:[#allocation3 + $0x11c] sm:$0x7f]
      %v5196 = vadd.f32 %v5128, %v5162
      %v5197 = vadd.f32 %v5129, %v5163
      %v5198 = vadd.f32 %v5130, %v5164
      %v5199 = vadd.f32 %v5131, %v5165
      %v5200 = vadd.f32 %v5132, %v5166
      %v5201 = vadd.f32 %v5133, %v5167
      %v5202 = vadd.f32 %v5134, %v5168
      %v5203 = vadd.f32 %v5135, %v5169
      %v5204 = vadd.f32 %v5136, %v5170
      %v5205 = vadd.f32 %v5137, %v5171
      %v5206 = vadd.f32 %v5138, %v5172
      %v5207 = vadd.f32 %v5139, %v5173
      %v5208 = vadd.f32 %v5140, %v5174
      %v5209 = vadd.f32 %v5141, %v5175
      %v5210 = vadd.f32 %v5142, %v5176
      %v5211 = vadd.f32 %v5143, %v5177
      %v5212 = vadd.f32 %v5144, %v5178
      %v5213 = vadd.f32 %v5145, %v5179
      %v5214 = vadd.f32 %v5146, %v5180
      %v5215 = vadd.f32 %v5147, %v5181
      %v5216 = vadd.f32 %v5148, %v5182
      %v5217 = vadd.f32 %v5149, %v5183
      %v5218 = vadd.f32 %v5150, %v5184
      %v5219 = vadd.f32 %v5151, %v5185
      %v5220 = vadd.f32 %v5152, %v5186
      %v5221 = vadd.f32 %v5153, %v5187
      %v5222 = vadd.f32 %v5154, %v5188
      %v5223 = vadd.f32 %v5155, %v5189
      %v5224 = vadd.f32 %v5156, %v5190
      %v5225 = vadd.f32 %v5157, %v5191
      %v5226 = vadd.f32 %v5158, %v5192
      %v5227 = vadd.f32 %v5159, %v5193
      %v5228 = vadd.f32 %v5160, %v5194
      %v5229 = vadd.f32 %v5161, %v5195
      %v5230 = vld [vmem:[#allocation3 + $0x25] sm:$0xff]
      %v5231 = vld [vmem:[#allocation3 + $0x2d] sm:$0xff]
      %v5232 = vld [vmem:[#allocation3 + $0x35] sm:$0xff]
      %v5233 = vld [vmem:[#allocation3 + $0x3d] sm:$0xff]
      %v5234 = vld [vmem:[#allocation3 + $0x45] sm:$0xff]
      %v5235 = vld [vmem:[#allocation3 + $0x4d] sm:$0xff]
      %v5236 = vld [vmem:[#allocation3 + $0x55] sm:$0xff]
      %v5237 = vld [vmem:[#allocation3 + $0x5d] sm:$0xff]
      %v5238 = vld [vmem:[#allocation3 + $0x65] sm:$0xff]
      %v5239 = vld [vmem:[#allocation3 + $0x6d] sm:$0xff]
      %v5240 = vld [vmem:[#allocation3 + $0x75] sm:$0xff]
      %v5241 = vld [vmem:[#allocation3 + $0x7d] sm:$0xff]
      %v5242 = vld [vmem:[#allocation3 + $0x85] sm:$0xff]
      %v5243 = vld [vmem:[#allocation3 + $0x8d] sm:$0xff]
      %v5244 = vld [vmem:[#allocation3 + $0x95] sm:$0xff]
      %v5245 = vld [vmem:[#allocation3 + $0x9d] sm:$0xff]
      %v5246 = vld [vmem:[#allocation3 + $0xa5] sm:$0xff]
      %v5247 = vld [vmem:[#allocation3 + $0xad] sm:$0xff]
      %v5248 = vld [vmem:[#allocation3 + $0xb5] sm:$0xff]
      %v5249 = vld [vmem:[#allocation3 + $0xbd] sm:$0xff]
      %v5250 = vld [vmem:[#allocation3 + $0xc5] sm:$0xff]
      %v5251 = vld [vmem:[#allocation3 + $0xcd] sm:$0xff]
      %v5252 = vld [vmem:[#allocation3 + $0xd5] sm:$0xff]
      %v5253 = vld [vmem:[#allocation3 + $0xdd] sm:$0xff]
      %v5254 = vld [vmem:[#allocation3 + $0xe5] sm:$0xff]
      %v5255 = vld [vmem:[#allocation3 + $0xed] sm:$0xff]
      %v5256 = vld [vmem:[#allocation3 + $0xf5] sm:$0xff]
      %v5257 = vld [vmem:[#allocation3 + $0xfd] sm:$0xff]
      %v5258 = vld [vmem:[#allocation3 + $0x105] sm:$0xff]
      %v5259 = vld [vmem:[#allocation3 + $0x10d] sm:$0xff]
      %v5260 = vld [vmem:[#allocation3 + $0x115] sm:$0xff]
      %v5261 = vld [vmem:[#allocation3 + $0x11d] sm:$0xff]
      %v5262 = vld [vmem:[#allocation3 + $0x125] sm:$0xff]
      %v5263 = vld [vmem:[#allocation3 + $0x12d] sm:$0x7f]
      %v5264 = vld [vmem:[#allocation3 + $0x26] sm:$0xff]
      %v5265 = vld [vmem:[#allocation3 + $0x2e] sm:$0xff]
      %v5266 = vld [vmem:[#allocation3 + $0x36] sm:$0xff]
      %v5267 = vld [vmem:[#allocation3 + $0x3e] sm:$0xff]
      %v5268 = vld [vmem:[#allocation3 + $0x46] sm:$0xff]
      %v5269 = vld [vmem:[#allocation3 + $0x4e] sm:$0xff]
      %v5270 = vld [vmem:[#allocation3 + $0x56] sm:$0xff]
      %v5271 = vld [vmem:[#allocation3 + $0x5e] sm:$0xff]
      %v5272 = vld [vmem:[#allocation3 + $0x66] sm:$0xff]
      %v5273 = vld [vmem:[#allocation3 + $0x6e] sm:$0xff]
      %v5274 = vld [vmem:[#allocation3 + $0x76] sm:$0xff]
      %v5275 = vld [vmem:[#allocation3 + $0x7e] sm:$0xff]
      %v5276 = vld [vmem:[#allocation3 + $0x86] sm:$0xff]
      %v5277 = vld [vmem:[#allocation3 + $0x8e] sm:$0xff]
      %v5278 = vld [vmem:[#allocation3 + $0x96] sm:$0xff]
      %v5279 = vld [vmem:[#allocation3 + $0x9e] sm:$0xff]
      %v5280 = vld [vmem:[#allocation3 + $0xa6] sm:$0xff]
      %v5281 = vld [vmem:[#allocation3 + $0xae] sm:$0xff]
      %v5282 = vld [vmem:[#allocation3 + $0xb6] sm:$0xff]
      %v5283 = vld [vmem:[#allocation3 + $0xbe] sm:$0xff]
      %v5284 = vld [vmem:[#allocation3 + $0xc6] sm:$0xff]
      %v5285 = vld [vmem:[#allocation3 + $0xce] sm:$0xff]
      %v5286 = vld [vmem:[#allocation3 + $0xd6] sm:$0xff]
      %v5287 = vld [vmem:[#allocation3 + $0xde] sm:$0xff]
      %v5288 = vld [vmem:[#allocation3 + $0xe6] sm:$0xff]
      %v5289 = vld [vmem:[#allocation3 + $0xee] sm:$0xff]
      %v5290 = vld [vmem:[#allocation3 + $0xf6] sm:$0xff]
      %v5291 = vld [vmem:[#allocation3 + $0xfe] sm:$0xff]
      %v5292 = vld [vmem:[#allocation3 + $0x106] sm:$0xff]
      %v5293 = vld [vmem:[#allocation3 + $0x10e] sm:$0xff]
      %v5294 = vld [vmem:[#allocation3 + $0x116] sm:$0xff]
      %v5295 = vld [vmem:[#allocation3 + $0x11e] sm:$0xff]
      %v5296 = vld [vmem:[#allocation3 + $0x126] sm:$0xff]
      %v5297 = vld [vmem:[#allocation3 + $0x12e] sm:$0x7f]
      %v5298 = vadd.f32 %v5230, %v5264
      %v5299 = vadd.f32 %v5231, %v5265
      %v5300 = vadd.f32 %v5232, %v5266
      %v5301 = vadd.f32 %v5233, %v5267
      %v5302 = vadd.f32 %v5234, %v5268
      %v5303 = vadd.f32 %v5235, %v5269
      %v5304 = vadd.f32 %v5236, %v5270
      %v5305 = vadd.f32 %v5237, %v5271
      %v5306 = vadd.f32 %v5238, %v5272
      %v5307 = vadd.f32 %v5239, %v5273
      %v5308 = vadd.f32 %v5240, %v5274
      %v5309 = vadd.f32 %v5241, %v5275
      %v5310 = vadd.f32 %v5242, %v5276
      %v5311 = vadd.f32 %v5243, %v5277
      %v5312 = vadd.f32 %v5244, %v5278
      %v5313 = vadd.f32 %v5245, %v5279
      %v5314 = vadd.f32 %v5246, %v5280
      %v5315 = vadd.f32 %v5247, %v5281
      %v5316 = vadd.f32 %v5248, %v5282
      %v5317 = vadd.f32 %v5249, %v5283
      %v5318 = vadd.f32 %v5250, %v5284
      %v5319 = vadd.f32 %v5251, %v5285
      %v5320 = vadd.f32 %v5252, %v5286
      %v5321 = vadd.f32 %v5253, %v5287
      %v5322 = vadd.f32 %v5254, %v5288
      %v5323 = vadd.f32 %v5255, %v5289
      %v5324 = vadd.f32 %v5256, %v5290
      %v5325 = vadd.f32 %v5257, %v5291
      %v5326 = vadd.f32 %v5258, %v5292
      %v5327 = vadd.f32 %v5259, %v5293
      %v5328 = vadd.f32 %v5260, %v5294
      %v5329 = vadd.f32 %v5261, %v5295
      %v5330 = vadd.f32 %v5262, %v5296
      %v5331 = vadd.f32 %v5263, %v5297
      %v5332 = vadd.f32 %v5196, %v5298
      %v5333 = vadd.f32 %v5197, %v5299
      %v5334 = vadd.f32 %v5198, %v5300
      %v5335 = vadd.f32 %v5199, %v5301
      %v5336 = vadd.f32 %v5200, %v5302
      %v5337 = vadd.f32 %v5201, %v5303
      %v5338 = vadd.f32 %v5202, %v5304
      %v5339 = vadd.f32 %v5203, %v5305
      %v5340 = vadd.f32 %v5204, %v5306
      %v5341 = vadd.f32 %v5205, %v5307
      %v5342 = vadd.f32 %v5206, %v5308
      %v5343 = vadd.f32 %v5207, %v5309
      %v5344 = vadd.f32 %v5208, %v5310
      %v5345 = vadd.f32 %v5209, %v5311
      %v5346 = vadd.f32 %v5210, %v5312
      %v5347 = vadd.f32 %v5211, %v5313
      %v5348 = vadd.f32 %v5212, %v5314
      %v5349 = vadd.f32 %v5213, %v5315
      %v5350 = vadd.f32 %v5214, %v5316
      %v5351 = vadd.f32 %v5215, %v5317
      %v5352 = vadd.f32 %v5216, %v5318
      %v5353 = vadd.f32 %v5217, %v5319
      %v5354 = vadd.f32 %v5218, %v5320
      %v5355 = vadd.f32 %v5219, %v5321
      %v5356 = vadd.f32 %v5220, %v5322
      %v5357 = vadd.f32 %v5221, %v5323
      %v5358 = vadd.f32 %v5222, %v5324
      %v5359 = vadd.f32 %v5223, %v5325
      %v5360 = vadd.f32 %v5224, %v5326
      %v5361 = vadd.f32 %v5225, %v5327
      %v5362 = vadd.f32 %v5226, %v5328
      %v5363 = vadd.f32 %v5227, %v5329
      %v5364 = vadd.f32 %v5228, %v5330
      %v5365 = vadd.f32 %v5229, %v5331
      %v5366 = vmul.f32 %v5332, 0.25
      %v5367 = vmul.f32 %v5333, 0.25
      %v5368 = vmul.f32 %v5334, 0.25
      %v5369 = vmul.f32 %v5335, 0.25
      %v5370 = vmul.f32 %v5336, 0.25
      %v5371 = vmul.f32 %v5337, 0.25
      %v5372 = vmul.f32 %v5338, 0.25
      %v5373 = vmul.f32 %v5339, 0.25
      %v5374 = vmul.f32 %v5340, 0.25
      %v5375 = vmul.f32 %v5341, 0.25
      %v5376 = vmul.f32 %v5342, 0.25
      %v5377 = vmul.f32 %v5343, 0.25
      %v5378 = vmul.f32 %v5344, 0.25
      %v5379 = vmul.f32 %v5345, 0.25
      %v5380 = vmul.f32 %v5346, 0.25
      %v5381 = vmul.f32 %v5347, 0.25
      %v5382 = vmul.f32 %v5348, 0.25
      %v5383 = vmul.f32 %v5349, 0.25
      %v5384 = vmul.f32 %v5350, 0.25
      %v5385 = vmul.f32 %v5351, 0.25
      %v5386 = vmul.f32 %v5352, 0.25
      %v5387 = vmul.f32 %v5353, 0.25
      %v5388 = vmul.f32 %v5354, 0.25
      %v5389 = vmul.f32 %v5355, 0.25
      %v5390 = vmul.f32 %v5356, 0.25
      %v5391 = vmul.f32 %v5357, 0.25
      %v5392 = vmul.f32 %v5358, 0.25
      %v5393 = vmul.f32 %v5359, 0.25
      %v5394 = vmul.f32 %v5360, 0.25
      %v5395 = vmul.f32 %v5361, 0.25
      %v5396 = vmul.f32 %v5362, 0.25
      %v5397 = vmul.f32 %v5363, 0.25
      %v5398 = vmul.f32 %v5364, 0.25
      %v5399 = vmul.f32 %v5365, 0.25
      %5400 = vst.msk [vmem:[#allocation3] sm:$0xff] %vm363, %v5366
      %5401 = vst.msk [vmem:[#allocation3 + $0x8] sm:$0xff] %vm363, %v5367
      %5402 = vst.msk [vmem:[#allocation3 + $0x10] sm:$0xff] %vm363, %v5368
      %5403 = vst.msk [vmem:[#allocation3 + $0x18] sm:$0xff] %vm363, %v5369
      %5404 = vst.msk [vmem:[#allocation3 + $0x20] sm:$0xff] %vm363, %v5370
      %5405 = vst.msk [vmem:[#allocation3 + $0x28] sm:$0xff] %vm363, %v5371
      %5406 = vst.msk [vmem:[#allocation3 + $0x30] sm:$0xff] %vm363, %v5372
      %5407 = vst.msk [vmem:[#allocation3 + $0x38] sm:$0xff] %vm363, %v5373
      %5408 = vst.msk [vmem:[#allocation3 + $0x40] sm:$0xff] %vm363, %v5374
      %5409 = vst.msk [vmem:[#allocation3 + $0x48] sm:$0xff] %vm363, %v5375
      %5410 = vst.msk [vmem:[#allocation3 + $0x50] sm:$0xff] %vm363, %v5376
      %5411 = vst.msk [vmem:[#allocation3 + $0x58] sm:$0xff] %vm363, %v5377
      %5412 = vst.msk [vmem:[#allocation3 + $0x60] sm:$0xff] %vm363, %v5378
      %5413 = vst.msk [vmem:[#allocation3 + $0x68] sm:$0xff] %vm363, %v5379
      %5414 = vst.msk [vmem:[#allocation3 + $0x70] sm:$0xff] %vm363, %v5380
      %5415 = vst.msk [vmem:[#allocation3 + $0x78] sm:$0xff] %vm363, %v5381
      %5416 = vst.msk [vmem:[#allocation3 + $0x80] sm:$0xff] %vm363, %v5382
      %5417 = vst.msk [vmem:[#allocation3 + $0x88] sm:$0xff] %vm363, %v5383
      %5418 = vst.msk [vmem:[#allocation3 + $0x90] sm:$0xff] %vm363, %v5384
      %5419 = vst.msk [vmem:[#allocation3 + $0x98] sm:$0xff] %vm363, %v5385
      %5420 = vst.msk [vmem:[#allocation3 + $0xa0] sm:$0xff] %vm363, %v5386
      %5421 = vst.msk [vmem:[#allocation3 + $0xa8] sm:$0xff] %vm363, %v5387
      %5422 = vst.msk [vmem:[#allocation3 + $0xb0] sm:$0xff] %vm363, %v5388
      %5423 = vst.msk [vmem:[#allocation3 + $0xb8] sm:$0xff] %vm363, %v5389
      %5424 = vst.msk [vmem:[#allocation3 + $0xc0] sm:$0xff] %vm363, %v5390
      %5425 = vst.msk [vmem:[#allocation3 + $0xc8] sm:$0xff] %vm363, %v5391
      %5426 = vst.msk [vmem:[#allocation3 + $0xd0] sm:$0xff] %vm363, %v5392
      %5427 = vst.msk [vmem:[#allocation3 + $0xd8] sm:$0xff] %vm363, %v5393
      %5428 = vst.msk [vmem:[#allocation3 + $0xe0] sm:$0xff] %vm363, %v5394
      %5429 = vst.msk [vmem:[#allocation3 + $0xe8] sm:$0xff] %vm363, %v5395
      %5430 = vst.msk [vmem:[#allocation3 + $0xf0] sm:$0xff] %vm363, %v5396
      %5431 = vst.msk [vmem:[#allocation3 + $0xf8] sm:$0xff] %vm363, %v5397
      %5432 = vst.msk [vmem:[#allocation3 + $0x100] sm:$0xff] %vm363, %v5398
      %vm5433 = vcmask 63488
      %5434 = vst.msk [vmem:[#allocation3 + $0x108] sm:$0x7f] %vm5433, %v5399
      %v5435 = vld [vmem:[#allocation3] ss:$2 sm:$0xff]
      %5436 = vst.msk [vmem:[%s253] sm:$0xff] %vm363, %v5435
      %s5437 = scalar_lea.vmem [#allocation3], 36
      %v5438 = vld [vmem:[%s5437] ss:$2 sm:$0xff]
      %5439 = vst.msk [vmem:[%s253 + $0x8] sm:$0xff] %vm363, %v5438
      %s5440 = scalar_lea.vmem [#allocation3], 72
      %v5441 = vld [vmem:[%s5440] ss:$2 sm:$0xff]
      %5442 = vst.msk [vmem:[%s253 + $0x10] sm:$0xff] %vm363, %v5441
      %s5443 = scalar_lea.vmem [#allocation3], 108
      %v5444 = vld [vmem:[%s5443] ss:$2 sm:$0xff]
      %5445 = vst.msk [vmem:[%s253 + $0x18] sm:$0xff] %vm363, %v5444
      %s5446 = scalar_lea.vmem [#allocation3], 144
      %v5447 = vld [vmem:[%s5446] ss:$2 sm:$0xff]
      %5448 = vst.msk [vmem:[%s253 + $0x20] sm:$0xff] %vm363, %v5447
      %s5449 = scalar_lea.vmem [#allocation3], 180
      %v5450 = vld [vmem:[%s5449] ss:$2 sm:$0xff]
      %5451 = vst.msk [vmem:[%s253 + $0x28] sm:$0xff] %vm363, %v5450
      %s5452 = scalar_lea.vmem [#allocation3], 216
      %v5453 = vld [vmem:[%s5452] ss:$2 sm:$0xff]
      %5454 = vst.msk [vmem:[%s253 + $0x30] sm:$0xff] %vm363, %v5453
      %s5455 = scalar_lea.vmem [#allocation3], 252
      %v5456 = vld [vmem:[%s5455] ss:$2 sm:$0xff]
      %5457 = vst.msk [vmem:[%s253 + $0x38] sm:$0xff] %vm363, %v5456
      %s5458 = smul.u32 8, %s17
      %p5459 = scmp.lt.s32.totalorder %s5458, 15
      %s5460 = scalar_select %p5459, %s5458, 15
      %s5461 = smul.addr %s5460, 8
      %s5462 = scalar_lea.vmem %s6, %s5461
      // Predicated region
      $region45: #{tpu_custom_call.1} parent=43 // pred_check
        %p5463 = pneg %p166
      $region46: #{tpu_custom_call.1} parent=43 // pred_check_branch
        %5465 = sbr.rel (%p5463) target = $region48
      $region47: #{tpu_custom_call.1} parent=43 // pred_region
        %s5466 = smul.u32 8, %s17
      $region48: #{tpu_custom_call.1} parent=43 // pred_fallthru
        _
    $region44: #{tpu_custom_call.1} parent=5 // pred_fallthru
      _
    %p5467 = scmp.le.s32.totalorder 2, %s12
    // Predicated region
    $region49: #{tpu_custom_call.1} parent=5 // pred_check
      %p5468 = pneg %p5467
    $region50: #{tpu_custom_call.1} parent=5 // pred_check_branch
      %5470 = sbr.rel (%p5468) target = $region52
    $region51: #{tpu_custom_call.1} parent=5 // pred_region
      %s5471 = ssub.s32 %s12, 2
      // Predicated region
      $region53: #{tpu_custom_call.1} parent=51 // pred_check
        %p5472 = pneg %p172
      $region54: #{tpu_custom_call.1} parent=51 // pred_check_branch
        %5474 = sbr.rel (%p5472) target = $region56
      $region55: #{tpu_custom_call.1} parent=51 // pred_region
        %s5475 = smul.u32 8, %s18
        %p5476 = scmp.lt.s32.totalorder %s5475, 15
        %s5477 = scalar_select %p5476, %s5475, 15
        %s5478 = smul.addr %s5477, 8
        %s5479 = scalar_lea.vmem %s6, %s5478
      $region56: #{tpu_custom_call.1} parent=51 // pred_fallthru
        _
    $region52: #{tpu_custom_call.1} parent=5 // pred_fallthru
      _
  $region6: #{tpu_custom_call.1} parent=0 // loop_footer
    %s16 = sadd.s32 1, %s12
  $region7: #{tpu_custom_call.1} parent=0 // loop_footer_branch
    %11 = sbr.rel target = $region3
  $region8: #{tpu_custom_call.1} parent=0 // loop_exit
    _

</llo_original>
